<compile_context>
chip_gen: v6e
topology: v6e:2x2x1
jax: 0.10.0
libtpu: 0.0.40
codegen_flags: <defaults>
</compile_context>

<pallas_src>
import functools

import numpy as np

import jax
import jax.numpy as jnp
from jax.experimental import pallas as pl
from jax.experimental.pallas import tpu as pltpu

_MIB = 1024 * 1024


def _round_up(x, m):
    return (x + m - 1) // m * m


# ----------------------------------------------------------------------------
# Fused forward kernel: one grid step == one sample.
# ----------------------------------------------------------------------------
def _ppo_fused_kernel(patches_ref, w1c_ref, b1c_ref,
                      s2_ref, w2c_ref, b2c_ref,
                      s3_ref, w3c_ref, b3c_ref,
                      w1p_ref, b1p_ref, w2p_ref, b2p_ref, w3p_ref, b3p_ref,
                      w1v_ref, b1v_ref, w2v_ref, b2v_ref, w3v_ref, b3v_ref,
                      out_ref):
    f32 = jnp.float32
    bf16 = jnp.bfloat16

    # ---- conv1: pre-built im2col patches (M1, K1) @ (K1, 32) ----------------
    p1 = patches_ref[0]                                            # (M1, K1) bf16
    z = jnp.dot(p1, w1c_ref[...], preferred_element_type=f32) + b1c_ref[...]
    z = jnp.maximum(z, 0.0).astype(bf16)                           # (M1, 32)

    # ---- conv2: per-tap row gather via 0/1 selection matmul + weight GEMM ---
    n_t2, m2 = s2_ref.shape[0], s2_ref.shape[1]
    c2_out = w2c_ref.shape[2]
    acc = jnp.zeros((m2, c2_out), f32)
    for t in range(n_t2):                                          # 16 taps, unrolled
        g = jnp.dot(s2_ref[t], z, preferred_element_type=f32).astype(bf16)   # (M2, 32)
        acc = acc + jnp.dot(g, w2c_ref[t], preferred_element_type=f32)
    z = jnp.maximum(acc + b2c_ref[...], 0.0).astype(bf16)          # (M2, 64)

    # ---- conv3: same per-tap scheme ------------------------------------------
    n_t3, m3 = s3_ref.shape[0], s3_ref.shape[1]
    c3_out = w3c_ref.shape[2]
    acc = jnp.zeros((m3, c3_out), f32)
    for t in range(n_t3):                                          # 9 taps, unrolled
        g = jnp.dot(s3_ref[t], z, preferred_element_type=f32).astype(bf16)   # (M3, 64)
        acc = acc + jnp.dot(g, w3c_ref[t], preferred_element_type=f32)
    z = jnp.maximum(acc + b3c_ref[...], 0.0).astype(bf16)          # (M3, 64)

    # ---- heads layer 1: contract over (spatial m, channel c) via a static
    #      loop over the (small) number of conv3 output positions. -------------
    hp = b1p_ref[...]                                              # (1, 192) f32
    hv = b1v_ref[...]
    for m in range(m3):
        row = z[m:m + 1, :]                                        # (1, 64) bf16
        hp = hp + jnp.dot(row, w1p_ref[m], preferred_element_type=f32)
        hv = hv + jnp.dot(row, w1v_ref[m], preferred_element_type=f32)
    hp = jnp.maximum(hp, 0.0).astype(bf16)                         # (1, 192)
    hv = jnp.maximum(hv, 0.0).astype(bf16)

    # ---- heads layer 2 --------------------------------------------------------
    hp = jnp.maximum(jnp.dot(hp, w2p_ref[...], preferred_element_type=f32)
                     + b2p_ref[...], 0.0).astype(bf16)             # (1, 384)
    hv = jnp.maximum(jnp.dot(hv, w2v_ref[...], preferred_element_type=f32)
                     + b2v_ref[...], 0.0).astype(bf16)             # (1, 384)

    # ---- heads layer 3: softmax policy (exact reciprocal) + linear value ------
    logits = jnp.dot(hp, w3p_ref[...], preferred_element_type=f32) + b3p_ref[...]  # (1, A)
    mx = jnp.max(logits, axis=-1, keepdims=True)
    e = jnp.exp(logits - mx)
    pol = e / jnp.sum(e, axis=-1, keepdims=True)                   # exact division

    val = jnp.dot(hv, w3v_ref[...], preferred_element_type=f32) + b3v_ref[...]     # (1, 1)

    # ---- pack into one lane-dense (1, 128*k) row: [policy | value | zeros] ----
    a_dim = pol.shape[-1]
    pad_w = out_ref.shape[-1] - a_dim - 1
    pieces = [pol, val]
    if pad_w > 0:
        pieces.append(jnp.zeros((1, pad_w), f32))
    out_ref[0] = jnp.concatenate(pieces, axis=-1)


# ----------------------------------------------------------------------------
# Host-side helpers
# ----------------------------------------------------------------------------
def _conv1_patches(x_nhwc, k, s):
    """im2col of the raw input, columns ordered (kh, kw, c)."""
    n, h, w, c = x_nhwc.shape
    oh = (h - k) // s + 1
    ow = (w - k) // s + 1
    cols = []
    for i in range(k):
        for j in range(k):
            cols.append(x_nhwc[:, i:i + s * (oh - 1) + 1:s,
                               j:j + s * (ow - 1) + 1:s, :])
    p = jnp.concatenate(cols, axis=-1)                 # (N, OH, OW, k*k*C)
    return p.reshape(n, oh * ow, k * k * c)


def _selection_matrices(oh_in, ow_in, k, s):
    """0/1 row-gather matrices, one per conv tap: (k*k, OH*OW, OH_in*OW_in)."""
    oh = (oh_in - k) // s + 1
    ow = (ow_in - k) // s + 1
    sel = np.zeros((k * k, oh * ow, oh_in * ow_in), np.float32)
    for i in range(k):
        for j in range(k):
            t = i * k + j
            for a in range(oh):
                for b in range(ow):
                    sel[t, a * ow + b, (a * s + i) * ow_in + (b * s + j)] = 1.0
    return jnp.asarray(sel, dtype=jnp.bfloat16)


def init_params(key, input_channels, input_height, input_width, output_dim):
    k1, s1, k2, s2, k3, s3 = 8, 4, 4, 2, 3, 1

    def osize(n, k, s):
        return (n - k) // s + 1

    oh1, ow1 = osize(input_height, k1, s1), osize(input_width, k1, s1)
    oh2, ow2 = osize(oh1, k2, s2), osize(ow1, k2, s2)
    oh3, ow3 = osize(oh2, k3, s3), osize(ow2, k3, s3)
    m3 = oh3 * ow3
    lin_in = m3 * 64

    keys = jax.random.split(key, 9)
    bf16 = jnp.bfloat16

    def kaiming(k, fan_in, shape):
        w = (2.0 / fan_in) ** 0.5 * jax.random.normal(k, shape, jnp.float32)
        return w.astype(bf16)

    params = {
        # conv trunk (synthetic kaiming; PyTorch re-inits only Linear layers)
        "conv1_w": kaiming(keys[0], k1 * k1 * input_channels,
                           (k1 * k1 * input_channels, 32)),   # rows = (kh, kw, cin)
        "conv1_b": jnp.zeros((1, 32), jnp.float32),
        "conv2_w": kaiming(keys[1], k2 * k2 * 32, (k2 * k2, 32, 64)),   # per-tap
        "conv2_b": jnp.zeros((1, 64), jnp.float32),
        "conv3_w": kaiming(keys[2], k3 * k3 * 64, (k3 * k3, 64, 64)),   # per-tap
        "conv3_b": jnp.zeros((1, 64), jnp.float32),
        # static 0/1 gather matrices (depend only on the conv geometry)
        "sel2": _selection_matrices(oh1, ow1, k2, s2),   # (16, M2, M1)
        "sel3": _selection_matrices(oh2, ow2, k3, s3),   # (9,  M3, M2)
        # heads (kaiming, bias = 0.01 as in PPOAgent._init_weights)
        "h_w1p": kaiming(keys[3], lin_in, (m3, 64, 192)),   # rows = (m, c) feat order
        "h_b1p": jnp.full((1, 192), 0.01, jnp.float32),
        "h_w2p": kaiming(keys[4], 192, (192, 384)),
        "h_b2p": jnp.full((1, 384), 0.01, jnp.float32),
        "h_w3p": kaiming(keys[5], 384, (384, output_dim)),
        "h_b3p": jnp.full((1, output_dim), 0.01, jnp.float32),
        "h_w1v": kaiming(keys[6], lin_in, (m3, 64, 192)),
        "h_b1v": jnp.full((1, 192), 0.01, jnp.float32),
        "h_w2v": kaiming(keys[7], 192, (192, 384)),
        "h_b2v": jnp.full((1, 384), 0.01, jnp.float32),
        "h_w3v": kaiming(keys[8], 384, (384, 1)),
        "h_b3v": jnp.full((1, 1), 0.01, jnp.float32),
    }
    return params


# ----------------------------------------------------------------------------
# Forward pass (matches PPOAgent.forward): ONE fused pallas_call.
# ----------------------------------------------------------------------------
@jax.jit
def ppo_forward(params, x_nchw):
    n, c, h, w = x_nchw.shape
    k1, s1 = 8, 4
    oh1 = (h - k1) // s1 + 1
    ow1 = (w - k1) // s1 + 1
    m1, kk1 = oh1 * ow1, k1 * k1 * c

    a_dim = params["h_w3p"].shape[-1]
    out_w = _round_up(a_dim + 1, 128)
    t2, m2 = params["sel2"].shape[0], params["sel2"].shape[1]
    t3, m3 = params["sel3"].shape[0], params["sel3"].shape[1]

    # Single NCHW->NHWC transpose + conv1 im2col.  This is the only
    # HBM-materialised intermediate (N * M1 * K1 bf16, ~32 KB/sample).
    # TODO(synk): allow_input_fusion=[True, ...] would let XLA fuse this
    # producer straight into the pallas_call input DMA.
    x = jnp.transpose(x_nchw, (0, 2, 3, 1))
    patches = _conv1_patches(x, k1, s1).astype(jnp.bfloat16)

    operands = (
        patches,
        params["conv1_w"], params["conv1_b"],
        params["sel2"], params["conv2_w"], params["conv2_b"],
        params["sel3"], params["conv3_w"], params["conv3_b"],
        params["h_w1p"], params["h_b1p"], params["h_w2p"], params["h_b2p"],
        params["h_w3p"], params["h_b3p"],
        params["h_w1v"], params["h_b1v"], params["h_w2v"], params["h_b2v"],
        params["h_w3v"], params["h_b3v"],
    )

    def resident(arr):
        zeros = (0,) * arr.ndim
        return pl.BlockSpec(arr.shape, lambda i, _z=zeros: _z)

    in_specs = [pl.BlockSpec((1, m1, kk1), lambda i: (i, 0, 0))]
    in_specs += [resident(op) for op in operands[1:]]

    param_bytes = sum(int(op.size) * op.dtype.itemsize for op in operands[1:])
    patch_block_bytes = m1 * kk1 * 2
    vmem_bytes = int(min(32 * _MIB,
                         max(8 * _MIB,
                             2 * (param_bytes + 2 * patch_block_bytes) + 2 * _MIB)))

    flops_per_sample = (
        2 * m1 * kk1 * 32
        + t2 * (2 * m2 * m1 * 32 + 2 * m2 * 32 * 64)
        + t3 * (2 * m3 * m2 * 64 + 2 * m3 * 64 * 64)
        + 2 * (2 * m3 * 64 * 192 + 2 * 192 * 384)
        + 2 * 384 * (a_dim + 1))
    cost = pl.CostEstimate(
        flops=n * flops_per_sample,
        transcendentals=n * a_dim,
        bytes_accessed=int(patches.size) * 2 + param_bytes + n * out_w * 4)

    out = pl.pallas_call(
        _ppo_fused_kernel,
        out_shape=jax.ShapeDtypeStruct((n, 1, out_w), jnp.float32),
        grid=(n,),
        in_specs=in_specs,
        out_specs=pl.BlockSpec((1, 1, out_w), lambda i: (i, 0, 0)),
        compiler_params=pltpu.CompilerParams(
            dimension_semantics=("parallel",),
            vmem_limit_bytes=vmem_bytes),
        cost_estimate=cost,
    )(*operands)

    # TODO(synk): for large rollout/training batches, process TB>1 samples per
    # grid step (batched-einsum taps) to amortise per-step overhead.
    out = out.reshape(n, out_w)
    return out[:, :a_dim], out[:, a_dim:a_dim + 1]


# ----------------------------------------------------------------------------
# Pure-JAX f32 reference (same weight layouts) for tolerance checking.
# ----------------------------------------------------------------------------
def _conv_taps_ref(x, w_taps, b, k, s):
    f32 = jnp.float32
    n, h, w, _ = x.shape
    oh = (h - k) // s + 1
    ow = (w - k) // s + 1
    acc = jnp.zeros((n, oh, ow, w_taps.shape[-1]), f32)
    for i in range(k):
        for j in range(k):
            win = x[:, i:i + s * (oh - 1) + 1:s, j:j + s * (ow - 1) + 1:s, :]
            acc = acc + jnp.einsum("nhwc,cd->nhwd", win,
                                   w_taps[i * k + j].astype(f32))
    return jnp.maximum(acc + b.reshape(1, 1, 1, -1), 0.0)


def reference_forward(params, x_nchw):
    f32 = jnp.float32
    x = jnp.transpose(x_nchw, (0, 2, 3, 1)).astype(f32)
    n, h, w, _ = x.shape
    oh1, ow1 = (h - 8) // 4 + 1, (w - 8) // 4 + 1

    p = _conv1_patches(x, 8, 4)                                      # f32
    z = jnp.maximum(p @ params["conv1_w"].astype(f32) + params["conv1_b"], 0.0)
    z = z.reshape(n, oh1, ow1, 32)
    z = _conv_taps_ref(z, params["conv2_w"], params["conv2_b"], 4, 2)
    z = _conv_taps_ref(z, params["conv3_w"], params["conv3_b"], 3, 1)
    feat = z.reshape(n, -1)                                          # (m, c) order

    def head(w1, b1, w2, b2, w3, b3):
        hh = jnp.maximum(feat @ w1.reshape(-1, w1.shape[-1]).astype(f32) + b1, 0.0)
        hh = jnp.maximum(hh @ w2.astype(f32) + b2, 0.0)
        return hh @ w3.astype(f32) + b3

    logits = head(params["h_w1p"], params["h_b1p"], params["h_w2p"],
                  params["h_b2p"], params["h_w3p"], params["h_b3p"])
    value = head(params["h_w1v"], params["h_b1v"], params["h_w2v"],
                 params["h_b2v"], params["h_w3v"], params["h_b3v"])
    return jax.nn.softmax(logits, axis=-1), value


if __name__ == "__main__":
    # Conv stack (k=8/s=4, k=4/s=2, k=3/s=1) needs >= 36 spatial for a valid output.
    batch, input_channels, H, W, output_dim = 2, 4, 36, 36, 6

    key = jax.random.PRNGKey(0)
    pkey, xkey = jax.random.split(key)
    params = init_params(pkey, input_channels, H, W, output_dim)
    x = jax.random.normal(xkey, (batch, input_channels, H, W), dtype=jnp.float32)

    policy, value = ppo_forward(params, x)
    jax.block_until_ready((policy, value))

    assert policy.shape == (batch, output_dim), policy.shape
    assert value.shape == (batch, 1), value.shape
    assert bool(jnp.all(policy >= 0.0))
    # exact-reciprocal softmax => rows sum to 1 at f32 accuracy
    assert jnp.allclose(jnp.sum(policy, axis=-1), 1.0, atol=1e-4)

    # bf16 kernel vs f32 reference (loose tolerance: bf16 activations/weights)
    pol_ref, val_ref = reference_forward(params, x)
    assert jnp.allclose(policy, pol_ref, atol=0.1, rtol=0.15), (
        float(jnp.max(jnp.abs(policy - pol_ref))))
    assert jnp.allclose(value, val_ref, atol=0.1, rtol=0.15), (
        float(jnp.max(jnp.abs(value - val_ref))))

    print("KERNEL_OK")
</pallas_src>

<mosaic_0001>
module attributes {stable_mosaic.version = 11 : i64} {
  func.func @_ppo_fused_kernel(%arg0: i32, %arg1: memref<1x64x256xbf16, #tpu.memory_space<vmem>>, %arg2: memref<256x32xbf16, #tpu.memory_space<vmem>>, %arg3: memref<1x32xf32, #tpu.memory_space<vmem>>, %arg4: memref<16x9x64xbf16, #tpu.memory_space<vmem>>, %arg5: memref<16x32x64xbf16, #tpu.memory_space<vmem>>, %arg6: memref<1x64xf32, #tpu.memory_space<vmem>>, %arg7: memref<9x1x9xbf16, #tpu.memory_space<vmem>>, %arg8: memref<9x64x64xbf16, #tpu.memory_space<vmem>>, %arg9: memref<1x64xf32, #tpu.memory_space<vmem>>, %arg10: memref<1x64x192xbf16, #tpu.memory_space<vmem>>, %arg11: memref<1x192xf32, #tpu.memory_space<vmem>>, %arg12: memref<192x384xbf16, #tpu.memory_space<vmem>>, %arg13: memref<1x384xf32, #tpu.memory_space<vmem>>, %arg14: memref<384x6xbf16, #tpu.memory_space<vmem>>, %arg15: memref<1x6xf32, #tpu.memory_space<vmem>>, %arg16: memref<1x64x192xbf16, #tpu.memory_space<vmem>>, %arg17: memref<1x192xf32, #tpu.memory_space<vmem>>, %arg18: memref<192x384xbf16, #tpu.memory_space<vmem>>, %arg19: memref<1x384xf32, #tpu.memory_space<vmem>>, %arg20: memref<384x1xbf16, #tpu.memory_space<vmem>>, %arg21: memref<1x1xf32, #tpu.memory_space<vmem>>, %arg22: memref<1x1x128xf32, #tpu.memory_space<vmem>>) attributes {dimension_semantics = [#tpu.dimension_semantics<parallel>], iteration_bounds = array<i64: 2>, scalar_prefetch = 0 : i64, scratch_operands = 0 : i64, tpu.core_type = #tpu.core_type<tc>, window_params = [{transform_indices = @transform_0, window_bounds = array<i64: 1, 64, 256>}, {pipeline_mode = #tpu.pipeline_mode<synchronous>, transform_indices = @transform_1, window_bounds = array<i64: 256, 32>}, {pipeline_mode = #tpu.pipeline_mode<synchronous>, transform_indices = @transform_2, window_bounds = array<i64: 1, 32>}, {pipeline_mode = #tpu.pipeline_mode<synchronous>, transform_indices = @transform_3, window_bounds = array<i64: 16, 9, 64>}, {pipeline_mode = #tpu.pipeline_mode<synchronous>, transform_indices = @transform_4, window_bounds = array<i64: 16, 32, 64>}, {pipeline_mode = #tpu.pipeline_mode<synchronous>, transform_indices = @transform_5, window_bounds = array<i64: 1, 64>}, {pipeline_mode = #tpu.pipeline_mode<synchronous>, transform_indices = @transform_6, window_bounds = array<i64: 9, 1, 9>}, {pipeline_mode = #tpu.pipeline_mode<synchronous>, transform_indices = @transform_7, window_bounds = array<i64: 9, 64, 64>}, {pipeline_mode = #tpu.pipeline_mode<synchronous>, transform_indices = @transform_8, window_bounds = array<i64: 1, 64>}, {pipeline_mode = #tpu.pipeline_mode<synchronous>, transform_indices = @transform_9, window_bounds = array<i64: 1, 64, 192>}, {pipeline_mode = #tpu.pipeline_mode<synchronous>, transform_indices = @transform_10, window_bounds = array<i64: 1, 192>}, {pipeline_mode = #tpu.pipeline_mode<synchronous>, transform_indices = @transform_11, window_bounds = array<i64: 192, 384>}, {pipeline_mode = #tpu.pipeline_mode<synchronous>, transform_indices = @transform_12, window_bounds = array<i64: 1, 384>}, {pipeline_mode = #tpu.pipeline_mode<synchronous>, transform_indices = @transform_13, window_bounds = array<i64: 384, 6>}, {pipeline_mode = #tpu.pipeline_mode<synchronous>, transform_indices = @transform_14, window_bounds = array<i64: 1, 6>}, {pipeline_mode = #tpu.pipeline_mode<synchronous>, transform_indices = @transform_15, window_bounds = array<i64: 1, 64, 192>}, {pipeline_mode = #tpu.pipeline_mode<synchronous>, transform_indices = @transform_16, window_bounds = array<i64: 1, 192>}, {pipeline_mode = #tpu.pipeline_mode<synchronous>, transform_indices = @transform_17, window_bounds = array<i64: 192, 384>}, {pipeline_mode = #tpu.pipeline_mode<synchronous>, transform_indices = @transform_18, window_bounds = array<i64: 1, 384>}, {pipeline_mode = #tpu.pipeline_mode<synchronous>, transform_indices = @transform_19, window_bounds = array<i64: 384, 1>}, {pipeline_mode = #tpu.pipeline_mode<synchronous>, transform_indices = @transform_20, window_bounds = array<i64: 1, 1>}, {transform_indices = @transform_21, window_bounds = array<i64: 1, 1, 128>}]} {
    %c0 = arith.constant 0 : index
    %c0_0 = arith.constant 0 : index
    %c0_1 = arith.constant 0 : index
    %0 = vector.load %arg1[%c0, %c0_0, %c0_1] : memref<1x64x256xbf16, #tpu.memory_space<vmem>>, vector<1x64x256xbf16>
    %1 = vector.shape_cast %0 : vector<1x64x256xbf16> to vector<64x256xbf16>
    %c0_2 = arith.constant 0 : index
    %c0_3 = arith.constant 0 : index
    %2 = vector.load %arg2[%c0_2, %c0_3] : memref<256x32xbf16, #tpu.memory_space<vmem>>, vector<256x32xbf16>
    %cst = arith.constant dense<0.000000e+00> : vector<64x32xf32>
    %3 = tpu.matmul %1, %2, %cst {dimension_numbers = #tpu.dot_dimension_numbers<[1], [0], [0], [1], [0, 0, 1, 1], [], []>} : vector<64x256xbf16>, vector<256x32xbf16>, vector<64x32xf32> -> vector<64x32xf32>
    %c0_4 = arith.constant 0 : index
    %c0_5 = arith.constant 0 : index
    %4 = vector.load %arg3[%c0_4, %c0_5] : memref<1x32xf32, #tpu.memory_space<vmem>>, vector<1x32xf32>
    %5 = vector.broadcast %4 : vector<1x32xf32> to vector<64x32xf32>
    %6 = arith.addf %3, %5 : vector<64x32xf32>
    %cst_6 = arith.constant 0.000000e+00 : f32
    %7 = vector.broadcast %cst_6 : f32 to vector<64x32xf32>
    %8 = arith.maximumf %6, %7 : vector<64x32xf32>
    %9 = arith.truncf %8 : vector<64x32xf32> to vector<64x32xbf16>
    %cst_7 = arith.constant 0.000000e+00 : f32
    %10 = vector.broadcast %cst_7 : f32 to vector<9x64xf32>
    %c0_8 = arith.constant 0 : index
    %c0_9 = arith.constant 0 : index
    %c0_10 = arith.constant 0 : index
    %11 = vector.load %arg4[%c0_8, %c0_9, %c0_10] : memref<16x9x64xbf16, #tpu.memory_space<vmem>>, vector<1x9x64xbf16>
    %12 = vector.shape_cast %11 : vector<1x9x64xbf16> to vector<9x64xbf16>
    %cst_11 = arith.constant dense<0.000000e+00> : vector<9x32xf32>
    %13 = tpu.matmul %12, %9, %cst_11 {dimension_numbers = #tpu.dot_dimension_numbers<[1], [0], [0], [1], [0, 0, 1, 1], [], []>} : vector<9x64xbf16>, vector<64x32xbf16>, vector<9x32xf32> -> vector<9x32xf32>
    %14 = arith.truncf %13 : vector<9x32xf32> to vector<9x32xbf16>
    %c0_12 = arith.constant 0 : index
    %c0_13 = arith.constant 0 : index
    %c0_14 = arith.constant 0 : index
    %15 = vector.load %arg5[%c0_12, %c0_13, %c0_14] : memref<16x32x64xbf16, #tpu.memory_space<vmem>>, vector<1x32x64xbf16>
    %16 = vector.shape_cast %15 : vector<1x32x64xbf16> to vector<32x64xbf16>
    %cst_15 = arith.constant dense<0.000000e+00> : vector<9x64xf32>
    %17 = tpu.matmul %14, %16, %cst_15 {dimension_numbers = #tpu.dot_dimension_numbers<[1], [0], [0], [1], [0, 0, 1, 1], [], []>} : vector<9x32xbf16>, vector<32x64xbf16>, vector<9x64xf32> -> vector<9x64xf32>
    %18 = arith.addf %10, %17 : vector<9x64xf32>
    %c1 = arith.constant 1 : index
    %c0_16 = arith.constant 0 : index
    %c0_17 = arith.constant 0 : index
    %19 = vector.load %arg4[%c1, %c0_16, %c0_17] : memref<16x9x64xbf16, #tpu.memory_space<vmem>>, vector<1x9x64xbf16>
    %20 = vector.shape_cast %19 : vector<1x9x64xbf16> to vector<9x64xbf16>
    %cst_18 = arith.constant dense<0.000000e+00> : vector<9x32xf32>
    %21 = tpu.matmul %20, %9, %cst_18 {dimension_numbers = #tpu.dot_dimension_numbers<[1], [0], [0], [1], [0, 0, 1, 1], [], []>} : vector<9x64xbf16>, vector<64x32xbf16>, vector<9x32xf32> -> vector<9x32xf32>
    %22 = arith.truncf %21 : vector<9x32xf32> to vector<9x32xbf16>
    %c1_19 = arith.constant 1 : index
    %c0_20 = arith.constant 0 : index
    %c0_21 = arith.constant 0 : index
    %23 = vector.load %arg5[%c1_19, %c0_20, %c0_21] : memref<16x32x64xbf16, #tpu.memory_space<vmem>>, vector<1x32x64xbf16>
    %24 = vector.shape_cast %23 : vector<1x32x64xbf16> to vector<32x64xbf16>
    %cst_22 = arith.constant dense<0.000000e+00> : vector<9x64xf32>
    %25 = tpu.matmul %22, %24, %cst_22 {dimension_numbers = #tpu.dot_dimension_numbers<[1], [0], [0], [1], [0, 0, 1, 1], [], []>} : vector<9x32xbf16>, vector<32x64xbf16>, vector<9x64xf32> -> vector<9x64xf32>
    %26 = arith.addf %18, %25 : vector<9x64xf32>
    %c2 = arith.constant 2 : index
    %c0_23 = arith.constant 0 : index
    %c0_24 = arith.constant 0 : index
    %27 = vector.load %arg4[%c2, %c0_23, %c0_24] : memref<16x9x64xbf16, #tpu.memory_space<vmem>>, vector<1x9x64xbf16>
    %28 = vector.shape_cast %27 : vector<1x9x64xbf16> to vector<9x64xbf16>
    %cst_25 = arith.constant dense<0.000000e+00> : vector<9x32xf32>
    %29 = tpu.matmul %28, %9, %cst_25 {dimension_numbers = #tpu.dot_dimension_numbers<[1], [0], [0], [1], [0, 0, 1, 1], [], []>} : vector<9x64xbf16>, vector<64x32xbf16>, vector<9x32xf32> -> vector<9x32xf32>
    %30 = arith.truncf %29 : vector<9x32xf32> to vector<9x32xbf16>
    %c2_26 = arith.constant 2 : index
    %c0_27 = arith.constant 0 : index
    %c0_28 = arith.constant 0 : index
    %31 = vector.load %arg5[%c2_26, %c0_27, %c0_28] : memref<16x32x64xbf16, #tpu.memory_space<vmem>>, vector<1x32x64xbf16>
    %32 = vector.shape_cast %31 : vector<1x32x64xbf16> to vector<32x64xbf16>
    %cst_29 = arith.constant dense<0.000000e+00> : vector<9x64xf32>
    %33 = tpu.matmul %30, %32, %cst_29 {dimension_numbers = #tpu.dot_dimension_numbers<[1], [0], [0], [1], [0, 0, 1, 1], [], []>} : vector<9x32xbf16>, vector<32x64xbf16>, vector<9x64xf32> -> vector<9x64xf32>
    %34 = arith.addf %26, %33 : vector<9x64xf32>
    %c3 = arith.constant 3 : index
    %c0_30 = arith.constant 0 : index
    %c0_31 = arith.constant 0 : index
    %35 = vector.load %arg4[%c3, %c0_30, %c0_31] : memref<16x9x64xbf16, #tpu.memory_space<vmem>>, vector<1x9x64xbf16>
    %36 = vector.shape_cast %35 : vector<1x9x64xbf16> to vector<9x64xbf16>
    %cst_32 = arith.constant dense<0.000000e+00> : vector<9x32xf32>
    %37 = tpu.matmul %36, %9, %cst_32 {dimension_numbers = #tpu.dot_dimension_numbers<[1], [0], [0], [1], [0, 0, 1, 1], [], []>} : vector<9x64xbf16>, vector<64x32xbf16>, vector<9x32xf32> -> vector<9x32xf32>
    %38 = arith.truncf %37 : vector<9x32xf32> to vector<9x32xbf16>
    %c3_33 = arith.constant 3 : index
    %c0_34 = arith.constant 0 : index
    %c0_35 = arith.constant 0 : index
    %39 = vector.load %arg5[%c3_33, %c0_34, %c0_35] : memref<16x32x64xbf16, #tpu.memory_space<vmem>>, vector<1x32x64xbf16>
    %40 = vector.shape_cast %39 : vector<1x32x64xbf16> to vector<32x64xbf16>
    %cst_36 = arith.constant dense<0.000000e+00> : vector<9x64xf32>
    %41 = tpu.matmul %38, %40, %cst_36 {dimension_numbers = #tpu.dot_dimension_numbers<[1], [0], [0], [1], [0, 0, 1, 1], [], []>} : vector<9x32xbf16>, vector<32x64xbf16>, vector<9x64xf32> -> vector<9x64xf32>
    %42 = arith.addf %34, %41 : vector<9x64xf32>
    %c4 = arith.constant 4 : index
    %c0_37 = arith.constant 0 : index
    %c0_38 = arith.constant 0 : index
    %43 = vector.load %arg4[%c4, %c0_37, %c0_38] : memref<16x9x64xbf16, #tpu.memory_space<vmem>>, vector<1x9x64xbf16>
    %44 = vector.shape_cast %43 : vector<1x9x64xbf16> to vector<9x64xbf16>
    %cst_39 = arith.constant dense<0.000000e+00> : vector<9x32xf32>
    %45 = tpu.matmul %44, %9, %cst_39 {dimension_numbers = #tpu.dot_dimension_numbers<[1], [0], [0], [1], [0, 0, 1, 1], [], []>} : vector<9x64xbf16>, vector<64x32xbf16>, vector<9x32xf32> -> vector<9x32xf32>
    %46 = arith.truncf %45 : vector<9x32xf32> to vector<9x32xbf16>
    %c4_40 = arith.constant 4 : index
    %c0_41 = arith.constant 0 : index
    %c0_42 = arith.constant 0 : index
    %47 = vector.load %arg5[%c4_40, %c0_41, %c0_42] : memref<16x32x64xbf16, #tpu.memory_space<vmem>>, vector<1x32x64xbf16>
    %48 = vector.shape_cast %47 : vector<1x32x64xbf16> to vector<32x64xbf16>
    %cst_43 = arith.constant dense<0.000000e+00> : vector<9x64xf32>
    %49 = tpu.matmul %46, %48, %cst_43 {dimension_numbers = #tpu.dot_dimension_numbers<[1], [0], [0], [1], [0, 0, 1, 1], [], []>} : vector<9x32xbf16>, vector<32x64xbf16>, vector<9x64xf32> -> vector<9x64xf32>
    %50 = arith.addf %42, %49 : vector<9x64xf32>
    %c5 = arith.constant 5 : index
    %c0_44 = arith.constant 0 : index
    %c0_45 = arith.constant 0 : index
    %51 = vector.load %arg4[%c5, %c0_44, %c0_45] : memref<16x9x64xbf16, #tpu.memory_space<vmem>>, vector<1x9x64xbf16>
    %52 = vector.shape_cast %51 : vector<1x9x64xbf16> to vector<9x64xbf16>
    %cst_46 = arith.constant dense<0.000000e+00> : vector<9x32xf32>
    %53 = tpu.matmul %52, %9, %cst_46 {dimension_numbers = #tpu.dot_dimension_numbers<[1], [0], [0], [1], [0, 0, 1, 1], [], []>} : vector<9x64xbf16>, vector<64x32xbf16>, vector<9x32xf32> -> vector<9x32xf32>
    %54 = arith.truncf %53 : vector<9x32xf32> to vector<9x32xbf16>
    %c5_47 = arith.constant 5 : index
    %c0_48 = arith.constant 0 : index
    %c0_49 = arith.constant 0 : index
    %55 = vector.load %arg5[%c5_47, %c0_48, %c0_49] : memref<16x32x64xbf16, #tpu.memory_space<vmem>>, vector<1x32x64xbf16>
    %56 = vector.shape_cast %55 : vector<1x32x64xbf16> to vector<32x64xbf16>
    %cst_50 = arith.constant dense<0.000000e+00> : vector<9x64xf32>
    %57 = tpu.matmul %54, %56, %cst_50 {dimension_numbers = #tpu.dot_dimension_numbers<[1], [0], [0], [1], [0, 0, 1, 1], [], []>} : vector<9x32xbf16>, vector<32x64xbf16>, vector<9x64xf32> -> vector<9x64xf32>
    %58 = arith.addf %50, %57 : vector<9x64xf32>
    %c6 = arith.constant 6 : index
    %c0_51 = arith.constant 0 : index
    %c0_52 = arith.constant 0 : index
    %59 = vector.load %arg4[%c6, %c0_51, %c0_52] : memref<16x9x64xbf16, #tpu.memory_space<vmem>>, vector<1x9x64xbf16>
    %60 = vector.shape_cast %59 : vector<1x9x64xbf16> to vector<9x64xbf16>
    %cst_53 = arith.constant dense<0.000000e+00> : vector<9x32xf32>
    %61 = tpu.matmul %60, %9, %cst_53 {dimension_numbers = #tpu.dot_dimension_numbers<[1], [0], [0], [1], [0, 0, 1, 1], [], []>} : vector<9x64xbf16>, vector<64x32xbf16>, vector<9x32xf32> -> vector<9x32xf32>
    %62 = arith.truncf %61 : vector<9x32xf32> to vector<9x32xbf16>
    %c6_54 = arith.constant 6 : index
    %c0_55 = arith.constant 0 : index
    %c0_56 = arith.constant 0 : index
    %63 = vector.load %arg5[%c6_54, %c0_55, %c0_56] : memref<16x32x64xbf16, #tpu.memory_space<vmem>>, vector<1x32x64xbf16>
    %64 = vector.shape_cast %63 : vector<1x32x64xbf16> to vector<32x64xbf16>
    %cst_57 = arith.constant dense<0.000000e+00> : vector<9x64xf32>
    %65 = tpu.matmul %62, %64, %cst_57 {dimension_numbers = #tpu.dot_dimension_numbers<[1], [0], [0], [1], [0, 0, 1, 1], [], []>} : vector<9x32xbf16>, vector<32x64xbf16>, vector<9x64xf32> -> vector<9x64xf32>
    %66 = arith.addf %58, %65 : vector<9x64xf32>
    %c7 = arith.constant 7 : index
    %c0_58 = arith.constant 0 : index
    %c0_59 = arith.constant 0 : index
    %67 = vector.load %arg4[%c7, %c0_58, %c0_59] : memref<16x9x64xbf16, #tpu.memory_space<vmem>>, vector<1x9x64xbf16>
    %68 = vector.shape_cast %67 : vector<1x9x64xbf16> to vector<9x64xbf16>
    %cst_60 = arith.constant dense<0.000000e+00> : vector<9x32xf32>
    %69 = tpu.matmul %68, %9, %cst_60 {dimension_numbers = #tpu.dot_dimension_numbers<[1], [0], [0], [1], [0, 0, 1, 1], [], []>} : vector<9x64xbf16>, vector<64x32xbf16>, vector<9x32xf32> -> vector<9x32xf32>
    %70 = arith.truncf %69 : vector<9x32xf32> to vector<9x32xbf16>
    %c7_61 = arith.constant 7 : index
    %c0_62 = arith.constant 0 : index
    %c0_63 = arith.constant 0 : index
    %71 = vector.load %arg5[%c7_61, %c0_62, %c0_63] : memref<16x32x64xbf16, #tpu.memory_space<vmem>>, vector<1x32x64xbf16>
    %72 = vector.shape_cast %71 : vector<1x32x64xbf16> to vector<32x64xbf16>
    %cst_64 = arith.constant dense<0.000000e+00> : vector<9x64xf32>
    %73 = tpu.matmul %70, %72, %cst_64 {dimension_numbers = #tpu.dot_dimension_numbers<[1], [0], [0], [1], [0, 0, 1, 1], [], []>} : vector<9x32xbf16>, vector<32x64xbf16>, vector<9x64xf32> -> vector<9x64xf32>
    %74 = arith.addf %66, %73 : vector<9x64xf32>
    %c8 = arith.constant 8 : index
    %c0_65 = arith.constant 0 : index
    %c0_66 = arith.constant 0 : index
    %75 = vector.load %arg4[%c8, %c0_65, %c0_66] : memref<16x9x64xbf16, #tpu.memory_space<vmem>>, vector<1x9x64xbf16>
    %76 = vector.shape_cast %75 : vector<1x9x64xbf16> to vector<9x64xbf16>
    %cst_67 = arith.constant dense<0.000000e+00> : vector<9x32xf32>
    %77 = tpu.matmul %76, %9, %cst_67 {dimension_numbers = #tpu.dot_dimension_numbers<[1], [0], [0], [1], [0, 0, 1, 1], [], []>} : vector<9x64xbf16>, vector<64x32xbf16>, vector<9x32xf32> -> vector<9x32xf32>
    %78 = arith.truncf %77 : vector<9x32xf32> to vector<9x32xbf16>
    %c8_68 = arith.constant 8 : index
    %c0_69 = arith.constant 0 : index
    %c0_70 = arith.constant 0 : index
    %79 = vector.load %arg5[%c8_68, %c0_69, %c0_70] : memref<16x32x64xbf16, #tpu.memory_space<vmem>>, vector<1x32x64xbf16>
    %80 = vector.shape_cast %79 : vector<1x32x64xbf16> to vector<32x64xbf16>
    %cst_71 = arith.constant dense<0.000000e+00> : vector<9x64xf32>
    %81 = tpu.matmul %78, %80, %cst_71 {dimension_numbers = #tpu.dot_dimension_numbers<[1], [0], [0], [1], [0, 0, 1, 1], [], []>} : vector<9x32xbf16>, vector<32x64xbf16>, vector<9x64xf32> -> vector<9x64xf32>
    %82 = arith.addf %74, %81 : vector<9x64xf32>
    %c9 = arith.constant 9 : index
    %c0_72 = arith.constant 0 : index
    %c0_73 = arith.constant 0 : index
    %83 = vector.load %arg4[%c9, %c0_72, %c0_73] : memref<16x9x64xbf16, #tpu.memory_space<vmem>>, vector<1x9x64xbf16>
    %84 = vector.shape_cast %83 : vector<1x9x64xbf16> to vector<9x64xbf16>
    %cst_74 = arith.constant dense<0.000000e+00> : vector<9x32xf32>
    %85 = tpu.matmul %84, %9, %cst_74 {dimension_numbers = #tpu.dot_dimension_numbers<[1], [0], [0], [1], [0, 0, 1, 1], [], []>} : vector<9x64xbf16>, vector<64x32xbf16>, vector<9x32xf32> -> vector<9x32xf32>
    %86 = arith.truncf %85 : vector<9x32xf32> to vector<9x32xbf16>
    %c9_75 = arith.constant 9 : index
    %c0_76 = arith.constant 0 : index
    %c0_77 = arith.constant 0 : index
    %87 = vector.load %arg5[%c9_75, %c0_76, %c0_77] : memref<16x32x64xbf16, #tpu.memory_space<vmem>>, vector<1x32x64xbf16>
    %88 = vector.shape_cast %87 : vector<1x32x64xbf16> to vector<32x64xbf16>
    %cst_78 = arith.constant dense<0.000000e+00> : vector<9x64xf32>
    %89 = tpu.matmul %86, %88, %cst_78 {dimension_numbers = #tpu.dot_dimension_numbers<[1], [0], [0], [1], [0, 0, 1, 1], [], []>} : vector<9x32xbf16>, vector<32x64xbf16>, vector<9x64xf32> -> vector<9x64xf32>
    %90 = arith.addf %82, %89 : vector<9x64xf32>
    %c10 = arith.constant 10 : index
    %c0_79 = arith.constant 0 : index
    %c0_80 = arith.constant 0 : index
    %91 = vector.load %arg4[%c10, %c0_79, %c0_80] : memref<16x9x64xbf16, #tpu.memory_space<vmem>>, vector<1x9x64xbf16>
    %92 = vector.shape_cast %91 : vector<1x9x64xbf16> to vector<9x64xbf16>
    %cst_81 = arith.constant dense<0.000000e+00> : vector<9x32xf32>
    %93 = tpu.matmul %92, %9, %cst_81 {dimension_numbers = #tpu.dot_dimension_numbers<[1], [0], [0], [1], [0, 0, 1, 1], [], []>} : vector<9x64xbf16>, vector<64x32xbf16>, vector<9x32xf32> -> vector<9x32xf32>
    %94 = arith.truncf %93 : vector<9x32xf32> to vector<9x32xbf16>
    %c10_82 = arith.constant 10 : index
    %c0_83 = arith.constant 0 : index
    %c0_84 = arith.constant 0 : index
    %95 = vector.load %arg5[%c10_82, %c0_83, %c0_84] : memref<16x32x64xbf16, #tpu.memory_space<vmem>>, vector<1x32x64xbf16>
    %96 = vector.shape_cast %95 : vector<1x32x64xbf16> to vector<32x64xbf16>
    %cst_85 = arith.constant dense<0.000000e+00> : vector<9x64xf32>
    %97 = tpu.matmul %94, %96, %cst_85 {dimension_numbers = #tpu.dot_dimension_numbers<[1], [0], [0], [1], [0, 0, 1, 1], [], []>} : vector<9x32xbf16>, vector<32x64xbf16>, vector<9x64xf32> -> vector<9x64xf32>
    %98 = arith.addf %90, %97 : vector<9x64xf32>
    %c11 = arith.constant 11 : index
    %c0_86 = arith.constant 0 : index
    %c0_87 = arith.constant 0 : index
    %99 = vector.load %arg4[%c11, %c0_86, %c0_87] : memref<16x9x64xbf16, #tpu.memory_space<vmem>>, vector<1x9x64xbf16>
    %100 = vector.shape_cast %99 : vector<1x9x64xbf16> to vector<9x64xbf16>
    %cst_88 = arith.constant dense<0.000000e+00> : vector<9x32xf32>
    %101 = tpu.matmul %100, %9, %cst_88 {dimension_numbers = #tpu.dot_dimension_numbers<[1], [0], [0], [1], [0, 0, 1, 1], [], []>} : vector<9x64xbf16>, vector<64x32xbf16>, vector<9x32xf32> -> vector<9x32xf32>
    %102 = arith.truncf %101 : vector<9x32xf32> to vector<9x32xbf16>
    %c11_89 = arith.constant 11 : index
    %c0_90 = arith.constant 0 : index
    %c0_91 = arith.constant 0 : index
    %103 = vector.load %arg5[%c11_89, %c0_90, %c0_91] : memref<16x32x64xbf16, #tpu.memory_space<vmem>>, vector<1x32x64xbf16>
    %104 = vector.shape_cast %103 : vector<1x32x64xbf16> to vector<32x64xbf16>
    %cst_92 = arith.constant dense<0.000000e+00> : vector<9x64xf32>
    %105 = tpu.matmul %102, %104, %cst_92 {dimension_numbers = #tpu.dot_dimension_numbers<[1], [0], [0], [1], [0, 0, 1, 1], [], []>} : vector<9x32xbf16>, vector<32x64xbf16>, vector<9x64xf32> -> vector<9x64xf32>
    %106 = arith.addf %98, %105 : vector<9x64xf32>
    %c12 = arith.constant 12 : index
    %c0_93 = arith.constant 0 : index
    %c0_94 = arith.constant 0 : index
    %107 = vector.load %arg4[%c12, %c0_93, %c0_94] : memref<16x9x64xbf16, #tpu.memory_space<vmem>>, vector<1x9x64xbf16>
    %108 = vector.shape_cast %107 : vector<1x9x64xbf16> to vector<9x64xbf16>
    %cst_95 = arith.constant dense<0.000000e+00> : vector<9x32xf32>
    %109 = tpu.matmul %108, %9, %cst_95 {dimension_numbers = #tpu.dot_dimension_numbers<[1], [0], [0], [1], [0, 0, 1, 1], [], []>} : vector<9x64xbf16>, vector<64x32xbf16>, vector<9x32xf32> -> vector<9x32xf32>
    %110 = arith.truncf %109 : vector<9x32xf32> to vector<9x32xbf16>
    %c12_96 = arith.constant 12 : index
    %c0_97 = arith.constant 0 : index
    %c0_98 = arith.constant 0 : index
    %111 = vector.load %arg5[%c12_96, %c0_97, %c0_98] : memref<16x32x64xbf16, #tpu.memory_space<vmem>>, vector<1x32x64xbf16>
    %112 = vector.shape_cast %111 : vector<1x32x64xbf16> to vector<32x64xbf16>
    %cst_99 = arith.constant dense<0.000000e+00> : vector<9x64xf32>
    %113 = tpu.matmul %110, %112, %cst_99 {dimension_numbers = #tpu.dot_dimension_numbers<[1], [0], [0], [1], [0, 0, 1, 1], [], []>} : vector<9x32xbf16>, vector<32x64xbf16>, vector<9x64xf32> -> vector<9x64xf32>
    %114 = arith.addf %106, %113 : vector<9x64xf32>
    %c13 = arith.constant 13 : index
    %c0_100 = arith.constant 0 : index
    %c0_101 = arith.constant 0 : index
    %115 = vector.load %arg4[%c13, %c0_100, %c0_101] : memref<16x9x64xbf16, #tpu.memory_space<vmem>>, vector<1x9x64xbf16>
    %116 = vector.shape_cast %115 : vector<1x9x64xbf16> to vector<9x64xbf16>
    %cst_102 = arith.constant dense<0.000000e+00> : vector<9x32xf32>
    %117 = tpu.matmul %116, %9, %cst_102 {dimension_numbers = #tpu.dot_dimension_numbers<[1], [0], [0], [1], [0, 0, 1, 1], [], []>} : vector<9x64xbf16>, vector<64x32xbf16>, vector<9x32xf32> -> vector<9x32xf32>
    %118 = arith.truncf %117 : vector<9x32xf32> to vector<9x32xbf16>
    %c13_103 = arith.constant 13 : index
    %c0_104 = arith.constant 0 : index
    %c0_105 = arith.constant 0 : index
    %119 = vector.load %arg5[%c13_103, %c0_104, %c0_105] : memref<16x32x64xbf16, #tpu.memory_space<vmem>>, vector<1x32x64xbf16>
    %120 = vector.shape_cast %119 : vector<1x32x64xbf16> to vector<32x64xbf16>
    %cst_106 = arith.constant dense<0.000000e+00> : vector<9x64xf32>
    %121 = tpu.matmul %118, %120, %cst_106 {dimension_numbers = #tpu.dot_dimension_numbers<[1], [0], [0], [1], [0, 0, 1, 1], [], []>} : vector<9x32xbf16>, vector<32x64xbf16>, vector<9x64xf32> -> vector<9x64xf32>
    %122 = arith.addf %114, %121 : vector<9x64xf32>
    %c14 = arith.constant 14 : index
    %c0_107 = arith.constant 0 : index
    %c0_108 = arith.constant 0 : index
    %123 = vector.load %arg4[%c14, %c0_107, %c0_108] : memref<16x9x64xbf16, #tpu.memory_space<vmem>>, vector<1x9x64xbf16>
    %124 = vector.shape_cast %123 : vector<1x9x64xbf16> to vector<9x64xbf16>
    %cst_109 = arith.constant dense<0.000000e+00> : vector<9x32xf32>
    %125 = tpu.matmul %124, %9, %cst_109 {dimension_numbers = #tpu.dot_dimension_numbers<[1], [0], [0], [1], [0, 0, 1, 1], [], []>} : vector<9x64xbf16>, vector<64x32xbf16>, vector<9x32xf32> -> vector<9x32xf32>
    %126 = arith.truncf %125 : vector<9x32xf32> to vector<9x32xbf16>
    %c14_110 = arith.constant 14 : index
    %c0_111 = arith.constant 0 : index
    %c0_112 = arith.constant 0 : index
    %127 = vector.load %arg5[%c14_110, %c0_111, %c0_112] : memref<16x32x64xbf16, #tpu.memory_space<vmem>>, vector<1x32x64xbf16>
    %128 = vector.shape_cast %127 : vector<1x32x64xbf16> to vector<32x64xbf16>
    %cst_113 = arith.constant dense<0.000000e+00> : vector<9x64xf32>
    %129 = tpu.matmul %126, %128, %cst_113 {dimension_numbers = #tpu.dot_dimension_numbers<[1], [0], [0], [1], [0, 0, 1, 1], [], []>} : vector<9x32xbf16>, vector<32x64xbf16>, vector<9x64xf32> -> vector<9x64xf32>
    %130 = arith.addf %122, %129 : vector<9x64xf32>
    %c15 = arith.constant 15 : index
    %c0_114 = arith.constant 0 : index
    %c0_115 = arith.constant 0 : index
    %131 = vector.load %arg4[%c15, %c0_114, %c0_115] : memref<16x9x64xbf16, #tpu.memory_space<vmem>>, vector<1x9x64xbf16>
    %132 = vector.shape_cast %131 : vector<1x9x64xbf16> to vector<9x64xbf16>
    %cst_116 = arith.constant dense<0.000000e+00> : vector<9x32xf32>
    %133 = tpu.matmul %132, %9, %cst_116 {dimension_numbers = #tpu.dot_dimension_numbers<[1], [0], [0], [1], [0, 0, 1, 1], [], []>} : vector<9x64xbf16>, vector<64x32xbf16>, vector<9x32xf32> -> vector<9x32xf32>
    %134 = arith.truncf %133 : vector<9x32xf32> to vector<9x32xbf16>
    %c15_117 = arith.constant 15 : index
    %c0_118 = arith.constant 0 : index
    %c0_119 = arith.constant 0 : index
    %135 = vector.load %arg5[%c15_117, %c0_118, %c0_119] : memref<16x32x64xbf16, #tpu.memory_space<vmem>>, vector<1x32x64xbf16>
    %136 = vector.shape_cast %135 : vector<1x32x64xbf16> to vector<32x64xbf16>
    %cst_120 = arith.constant dense<0.000000e+00> : vector<9x64xf32>
    %137 = tpu.matmul %134, %136, %cst_120 {dimension_numbers = #tpu.dot_dimension_numbers<[1], [0], [0], [1], [0, 0, 1, 1], [], []>} : vector<9x32xbf16>, vector<32x64xbf16>, vector<9x64xf32> -> vector<9x64xf32>
    %138 = arith.addf %130, %137 : vector<9x64xf32>
    %c0_121 = arith.constant 0 : index
    %c0_122 = arith.constant 0 : index
    %139 = vector.load %arg6[%c0_121, %c0_122] : memref<1x64xf32, #tpu.memory_space<vmem>>, vector<1x64xf32>
    %140 = vector.broadcast %139 : vector<1x64xf32> to vector<9x64xf32>
    %141 = arith.addf %138, %140 : vector<9x64xf32>
    %cst_123 = arith.constant 0.000000e+00 : f32
    %142 = vector.broadcast %cst_123 : f32 to vector<9x64xf32>
    %143 = arith.maximumf %141, %142 : vector<9x64xf32>
    %144 = arith.truncf %143 : vector<9x64xf32> to vector<9x64xbf16>
    %cst_124 = arith.constant 0.000000e+00 : f32
    %145 = vector.broadcast %cst_124 : f32 to vector<1x64xf32>
    %c0_125 = arith.constant 0 : index
    %c0_126 = arith.constant 0 : index
    %c0_127 = arith.constant 0 : index
    %146 = vector.load %arg7[%c0_125, %c0_126, %c0_127] : memref<9x1x9xbf16, #tpu.memory_space<vmem>>, vector<1x1x9xbf16>
    %147 = vector.shape_cast %146 : vector<1x1x9xbf16> to vector<1x9xbf16>
    %cst_128 = arith.constant dense<0.000000e+00> : vector<1x64xf32>
    %148 = tpu.matmul %147, %144, %cst_128 {dimension_numbers = #tpu.dot_dimension_numbers<[1], [0], [0], [1], [0, 0, 1, 1], [], []>} : vector<1x9xbf16>, vector<9x64xbf16>, vector<1x64xf32> -> vector<1x64xf32>
    %149 = arith.truncf %148 : vector<1x64xf32> to vector<1x64xbf16>
    %c0_129 = arith.constant 0 : index
    %c0_130 = arith.constant 0 : index
    %c0_131 = arith.constant 0 : index
    %150 = vector.load %arg8[%c0_129, %c0_130, %c0_131] : memref<9x64x64xbf16, #tpu.memory_space<vmem>>, vector<1x64x64xbf16>
    %151 = vector.shape_cast %150 : vector<1x64x64xbf16> to vector<64x64xbf16>
    %cst_132 = arith.constant dense<0.000000e+00> : vector<1x64xf32>
    %152 = tpu.matmul %149, %151, %cst_132 {dimension_numbers = #tpu.dot_dimension_numbers<[1], [0], [0], [1], [0, 0, 1, 1], [], []>} : vector<1x64xbf16>, vector<64x64xbf16>, vector<1x64xf32> -> vector<1x64xf32>
    %153 = arith.addf %145, %152 : vector<1x64xf32>
    %c1_133 = arith.constant 1 : index
    %c0_134 = arith.constant 0 : index
    %c0_135 = arith.constant 0 : index
    %154 = vector.load %arg7[%c1_133, %c0_134, %c0_135] : memref<9x1x9xbf16, #tpu.memory_space<vmem>>, vector<1x1x9xbf16>
    %155 = vector.shape_cast %154 : vector<1x1x9xbf16> to vector<1x9xbf16>
    %cst_136 = arith.constant dense<0.000000e+00> : vector<1x64xf32>
    %156 = tpu.matmul %155, %144, %cst_136 {dimension_numbers = #tpu.dot_dimension_numbers<[1], [0], [0], [1], [0, 0, 1, 1], [], []>} : vector<1x9xbf16>, vector<9x64xbf16>, vector<1x64xf32> -> vector<1x64xf32>
    %157 = arith.truncf %156 : vector<1x64xf32> to vector<1x64xbf16>
    %c1_137 = arith.constant 1 : index
    %c0_138 = arith.constant 0 : index
    %c0_139 = arith.constant 0 : index
    %158 = vector.load %arg8[%c1_137, %c0_138, %c0_139] : memref<9x64x64xbf16, #tpu.memory_space<vmem>>, vector<1x64x64xbf16>
    %159 = vector.shape_cast %158 : vector<1x64x64xbf16> to vector<64x64xbf16>
    %cst_140 = arith.constant dense<0.000000e+00> : vector<1x64xf32>
    %160 = tpu.matmul %157, %159, %cst_140 {dimension_numbers = #tpu.dot_dimension_numbers<[1], [0], [0], [1], [0, 0, 1, 1], [], []>} : vector<1x64xbf16>, vector<64x64xbf16>, vector<1x64xf32> -> vector<1x64xf32>
    %161 = arith.addf %153, %160 : vector<1x64xf32>
    %c2_141 = arith.constant 2 : index
    %c0_142 = arith.constant 0 : index
    %c0_143 = arith.constant 0 : index
    %162 = vector.load %arg7[%c2_141, %c0_142, %c0_143] : memref<9x1x9xbf16, #tpu.memory_space<vmem>>, vector<1x1x9xbf16>
    %163 = vector.shape_cast %162 : vector<1x1x9xbf16> to vector<1x9xbf16>
    %cst_144 = arith.constant dense<0.000000e+00> : vector<1x64xf32>
    %164 = tpu.matmul %163, %144, %cst_144 {dimension_numbers = #tpu.dot_dimension_numbers<[1], [0], [0], [1], [0, 0, 1, 1], [], []>} : vector<1x9xbf16>, vector<9x64xbf16>, vector<1x64xf32> -> vector<1x64xf32>
    %165 = arith.truncf %164 : vector<1x64xf32> to vector<1x64xbf16>
    %c2_145 = arith.constant 2 : index
    %c0_146 = arith.constant 0 : index
    %c0_147 = arith.constant 0 : index
    %166 = vector.load %arg8[%c2_145, %c0_146, %c0_147] : memref<9x64x64xbf16, #tpu.memory_space<vmem>>, vector<1x64x64xbf16>
    %167 = vector.shape_cast %166 : vector<1x64x64xbf16> to vector<64x64xbf16>
    %cst_148 = arith.constant dense<0.000000e+00> : vector<1x64xf32>
    %168 = tpu.matmul %165, %167, %cst_148 {dimension_numbers = #tpu.dot_dimension_numbers<[1], [0], [0], [1], [0, 0, 1, 1], [], []>} : vector<1x64xbf16>, vector<64x64xbf16>, vector<1x64xf32> -> vector<1x64xf32>
    %169 = arith.addf %161, %168 : vector<1x64xf32>
    %c3_149 = arith.constant 3 : index
    %c0_150 = arith.constant 0 : index
    %c0_151 = arith.constant 0 : index
    %170 = vector.load %arg7[%c3_149, %c0_150, %c0_151] : memref<9x1x9xbf16, #tpu.memory_space<vmem>>, vector<1x1x9xbf16>
    %171 = vector.shape_cast %170 : vector<1x1x9xbf16> to vector<1x9xbf16>
    %cst_152 = arith.constant dense<0.000000e+00> : vector<1x64xf32>
    %172 = tpu.matmul %171, %144, %cst_152 {dimension_numbers = #tpu.dot_dimension_numbers<[1], [0], [0], [1], [0, 0, 1, 1], [], []>} : vector<1x9xbf16>, vector<9x64xbf16>, vector<1x64xf32> -> vector<1x64xf32>
    %173 = arith.truncf %172 : vector<1x64xf32> to vector<1x64xbf16>
    %c3_153 = arith.constant 3 : index
    %c0_154 = arith.constant 0 : index
    %c0_155 = arith.constant 0 : index
    %174 = vector.load %arg8[%c3_153, %c0_154, %c0_155] : memref<9x64x64xbf16, #tpu.memory_space<vmem>>, vector<1x64x64xbf16>
    %175 = vector.shape_cast %174 : vector<1x64x64xbf16> to vector<64x64xbf16>
    %cst_156 = arith.constant dense<0.000000e+00> : vector<1x64xf32>
    %176 = tpu.matmul %173, %175, %cst_156 {dimension_numbers = #tpu.dot_dimension_numbers<[1], [0], [0], [1], [0, 0, 1, 1], [], []>} : vector<1x64xbf16>, vector<64x64xbf16>, vector<1x64xf32> -> vector<1x64xf32>
    %177 = arith.addf %169, %176 : vector<1x64xf32>
    %c4_157 = arith.constant 4 : index
    %c0_158 = arith.constant 0 : index
    %c0_159 = arith.constant 0 : index
    %178 = vector.load %arg7[%c4_157, %c0_158, %c0_159] : memref<9x1x9xbf16, #tpu.memory_space<vmem>>, vector<1x1x9xbf16>
    %179 = vector.shape_cast %178 : vector<1x1x9xbf16> to vector<1x9xbf16>
    %cst_160 = arith.constant dense<0.000000e+00> : vector<1x64xf32>
    %180 = tpu.matmul %179, %144, %cst_160 {dimension_numbers = #tpu.dot_dimension_numbers<[1], [0], [0], [1], [0, 0, 1, 1], [], []>} : vector<1x9xbf16>, vector<9x64xbf16>, vector<1x64xf32> -> vector<1x64xf32>
    %181 = arith.truncf %180 : vector<1x64xf32> to vector<1x64xbf16>
    %c4_161 = arith.constant 4 : index
    %c0_162 = arith.constant 0 : index
    %c0_163 = arith.constant 0 : index
    %182 = vector.load %arg8[%c4_161, %c0_162, %c0_163] : memref<9x64x64xbf16, #tpu.memory_space<vmem>>, vector<1x64x64xbf16>
    %183 = vector.shape_cast %182 : vector<1x64x64xbf16> to vector<64x64xbf16>
    %cst_164 = arith.constant dense<0.000000e+00> : vector<1x64xf32>
    %184 = tpu.matmul %181, %183, %cst_164 {dimension_numbers = #tpu.dot_dimension_numbers<[1], [0], [0], [1], [0, 0, 1, 1], [], []>} : vector<1x64xbf16>, vector<64x64xbf16>, vector<1x64xf32> -> vector<1x64xf32>
    %185 = arith.addf %177, %184 : vector<1x64xf32>
    %c5_165 = arith.constant 5 : index
    %c0_166 = arith.constant 0 : index
    %c0_167 = arith.constant 0 : index
    %186 = vector.load %arg7[%c5_165, %c0_166, %c0_167] : memref<9x1x9xbf16, #tpu.memory_space<vmem>>, vector<1x1x9xbf16>
    %187 = vector.shape_cast %186 : vector<1x1x9xbf16> to vector<1x9xbf16>
    %cst_168 = arith.constant dense<0.000000e+00> : vector<1x64xf32>
    %188 = tpu.matmul %187, %144, %cst_168 {dimension_numbers = #tpu.dot_dimension_numbers<[1], [0], [0], [1], [0, 0, 1, 1], [], []>} : vector<1x9xbf16>, vector<9x64xbf16>, vector<1x64xf32> -> vector<1x64xf32>
    %189 = arith.truncf %188 : vector<1x64xf32> to vector<1x64xbf16>
    %c5_169 = arith.constant 5 : index
    %c0_170 = arith.constant 0 : index
    %c0_171 = arith.constant 0 : index
    %190 = vector.load %arg8[%c5_169, %c0_170, %c0_171] : memref<9x64x64xbf16, #tpu.memory_space<vmem>>, vector<1x64x64xbf16>
    %191 = vector.shape_cast %190 : vector<1x64x64xbf16> to vector<64x64xbf16>
    %cst_172 = arith.constant dense<0.000000e+00> : vector<1x64xf32>
    %192 = tpu.matmul %189, %191, %cst_172 {dimension_numbers = #tpu.dot_dimension_numbers<[1], [0], [0], [1], [0, 0, 1, 1], [], []>} : vector<1x64xbf16>, vector<64x64xbf16>, vector<1x64xf32> -> vector<1x64xf32>
    %193 = arith.addf %185, %192 : vector<1x64xf32>
    %c6_173 = arith.constant 6 : index
    %c0_174 = arith.constant 0 : index
    %c0_175 = arith.constant 0 : index
    %194 = vector.load %arg7[%c6_173, %c0_174, %c0_175] : memref<9x1x9xbf16, #tpu.memory_space<vmem>>, vector<1x1x9xbf16>
    %195 = vector.shape_cast %194 : vector<1x1x9xbf16> to vector<1x9xbf16>
    %cst_176 = arith.constant dense<0.000000e+00> : vector<1x64xf32>
    %196 = tpu.matmul %195, %144, %cst_176 {dimension_numbers = #tpu.dot_dimension_numbers<[1], [0], [0], [1], [0, 0, 1, 1], [], []>} : vector<1x9xbf16>, vector<9x64xbf16>, vector<1x64xf32> -> vector<1x64xf32>
    %197 = arith.truncf %196 : vector<1x64xf32> to vector<1x64xbf16>
    %c6_177 = arith.constant 6 : index
    %c0_178 = arith.constant 0 : index
    %c0_179 = arith.constant 0 : index
    %198 = vector.load %arg8[%c6_177, %c0_178, %c0_179] : memref<9x64x64xbf16, #tpu.memory_space<vmem>>, vector<1x64x64xbf16>
    %199 = vector.shape_cast %198 : vector<1x64x64xbf16> to vector<64x64xbf16>
    %cst_180 = arith.constant dense<0.000000e+00> : vector<1x64xf32>
    %200 = tpu.matmul %197, %199, %cst_180 {dimension_numbers = #tpu.dot_dimension_numbers<[1], [0], [0], [1], [0, 0, 1, 1], [], []>} : vector<1x64xbf16>, vector<64x64xbf16>, vector<1x64xf32> -> vector<1x64xf32>
    %201 = arith.addf %193, %200 : vector<1x64xf32>
    %c7_181 = arith.constant 7 : index
    %c0_182 = arith.constant 0 : index
    %c0_183 = arith.constant 0 : index
    %202 = vector.load %arg7[%c7_181, %c0_182, %c0_183] : memref<9x1x9xbf16, #tpu.memory_space<vmem>>, vector<1x1x9xbf16>
    %203 = vector.shape_cast %202 : vector<1x1x9xbf16> to vector<1x9xbf16>
    %cst_184 = arith.constant dense<0.000000e+00> : vector<1x64xf32>
    %204 = tpu.matmul %203, %144, %cst_184 {dimension_numbers = #tpu.dot_dimension_numbers<[1], [0], [0], [1], [0, 0, 1, 1], [], []>} : vector<1x9xbf16>, vector<9x64xbf16>, vector<1x64xf32> -> vector<1x64xf32>
    %205 = arith.truncf %204 : vector<1x64xf32> to vector<1x64xbf16>
    %c7_185 = arith.constant 7 : index
    %c0_186 = arith.constant 0 : index
    %c0_187 = arith.constant 0 : index
    %206 = vector.load %arg8[%c7_185, %c0_186, %c0_187] : memref<9x64x64xbf16, #tpu.memory_space<vmem>>, vector<1x64x64xbf16>
    %207 = vector.shape_cast %206 : vector<1x64x64xbf16> to vector<64x64xbf16>
    %cst_188 = arith.constant dense<0.000000e+00> : vector<1x64xf32>
    %208 = tpu.matmul %205, %207, %cst_188 {dimension_numbers = #tpu.dot_dimension_numbers<[1], [0], [0], [1], [0, 0, 1, 1], [], []>} : vector<1x64xbf16>, vector<64x64xbf16>, vector<1x64xf32> -> vector<1x64xf32>
    %209 = arith.addf %201, %208 : vector<1x64xf32>
    %c8_189 = arith.constant 8 : index
    %c0_190 = arith.constant 0 : index
    %c0_191 = arith.constant 0 : index
    %210 = vector.load %arg7[%c8_189, %c0_190, %c0_191] : memref<9x1x9xbf16, #tpu.memory_space<vmem>>, vector<1x1x9xbf16>
    %211 = vector.shape_cast %210 : vector<1x1x9xbf16> to vector<1x9xbf16>
    %cst_192 = arith.constant dense<0.000000e+00> : vector<1x64xf32>
    %212 = tpu.matmul %211, %144, %cst_192 {dimension_numbers = #tpu.dot_dimension_numbers<[1], [0], [0], [1], [0, 0, 1, 1], [], []>} : vector<1x9xbf16>, vector<9x64xbf16>, vector<1x64xf32> -> vector<1x64xf32>
    %213 = arith.truncf %212 : vector<1x64xf32> to vector<1x64xbf16>
    %c8_193 = arith.constant 8 : index
    %c0_194 = arith.constant 0 : index
    %c0_195 = arith.constant 0 : index
    %214 = vector.load %arg8[%c8_193, %c0_194, %c0_195] : memref<9x64x64xbf16, #tpu.memory_space<vmem>>, vector<1x64x64xbf16>
    %215 = vector.shape_cast %214 : vector<1x64x64xbf16> to vector<64x64xbf16>
    %cst_196 = arith.constant dense<0.000000e+00> : vector<1x64xf32>
    %216 = tpu.matmul %213, %215, %cst_196 {dimension_numbers = #tpu.dot_dimension_numbers<[1], [0], [0], [1], [0, 0, 1, 1], [], []>} : vector<1x64xbf16>, vector<64x64xbf16>, vector<1x64xf32> -> vector<1x64xf32>
    %217 = arith.addf %209, %216 : vector<1x64xf32>
    %c0_197 = arith.constant 0 : index
    %c0_198 = arith.constant 0 : index
    %218 = vector.load %arg9[%c0_197, %c0_198] : memref<1x64xf32, #tpu.memory_space<vmem>>, vector<1x64xf32>
    %219 = arith.addf %217, %218 : vector<1x64xf32>
    %cst_199 = arith.constant 0.000000e+00 : f32
    %220 = vector.broadcast %cst_199 : f32 to vector<1x64xf32>
    %221 = arith.maximumf %219, %220 : vector<1x64xf32>
    %222 = arith.truncf %221 : vector<1x64xf32> to vector<1x64xbf16>
    %c0_200 = arith.constant 0 : index
    %c0_201 = arith.constant 0 : index
    %223 = vector.load %arg11[%c0_200, %c0_201] : memref<1x192xf32, #tpu.memory_space<vmem>>, vector<1x192xf32>
    %c0_202 = arith.constant 0 : index
    %c0_203 = arith.constant 0 : index
    %224 = vector.load %arg17[%c0_202, %c0_203] : memref<1x192xf32, #tpu.memory_space<vmem>>, vector<1x192xf32>
    %c0_204 = arith.constant 0 : index
    %c0_205 = arith.constant 0 : index
    %c0_206 = arith.constant 0 : index
    %225 = vector.load %arg10[%c0_204, %c0_205, %c0_206] : memref<1x64x192xbf16, #tpu.memory_space<vmem>>, vector<1x64x192xbf16>
    %226 = vector.shape_cast %225 : vector<1x64x192xbf16> to vector<64x192xbf16>
    %cst_207 = arith.constant dense<0.000000e+00> : vector<1x192xf32>
    %227 = tpu.matmul %222, %226, %cst_207 {dimension_numbers = #tpu.dot_dimension_numbers<[1], [0], [0], [1], [0, 0, 1, 1], [], []>} : vector<1x64xbf16>, vector<64x192xbf16>, vector<1x192xf32> -> vector<1x192xf32>
    %228 = arith.addf %223, %227 : vector<1x192xf32>
    %c0_208 = arith.constant 0 : index
    %c0_209 = arith.constant 0 : index
    %c0_210 = arith.constant 0 : index
    %229 = vector.load %arg16[%c0_208, %c0_209, %c0_210] : memref<1x64x192xbf16, #tpu.memory_space<vmem>>, vector<1x64x192xbf16>
    %230 = vector.shape_cast %229 : vector<1x64x192xbf16> to vector<64x192xbf16>
    %cst_211 = arith.constant dense<0.000000e+00> : vector<1x192xf32>
    %231 = tpu.matmul %222, %230, %cst_211 {dimension_numbers = #tpu.dot_dimension_numbers<[1], [0], [0], [1], [0, 0, 1, 1], [], []>} : vector<1x64xbf16>, vector<64x192xbf16>, vector<1x192xf32> -> vector<1x192xf32>
    %232 = arith.addf %224, %231 : vector<1x192xf32>
    %cst_212 = arith.constant 0.000000e+00 : f32
    %233 = vector.broadcast %cst_212 : f32 to vector<1x192xf32>
    %234 = arith.maximumf %228, %233 : vector<1x192xf32>
    %235 = arith.truncf %234 : vector<1x192xf32> to vector<1x192xbf16>
    %cst_213 = arith.constant 0.000000e+00 : f32
    %236 = vector.broadcast %cst_213 : f32 to vector<1x192xf32>
    %237 = arith.maximumf %232, %236 : vector<1x192xf32>
    %238 = arith.truncf %237 : vector<1x192xf32> to vector<1x192xbf16>
    %c0_214 = arith.constant 0 : index
    %c0_215 = arith.constant 0 : index
    %239 = vector.load %arg12[%c0_214, %c0_215] : memref<192x384xbf16, #tpu.memory_space<vmem>>, vector<192x384xbf16>
    %cst_216 = arith.constant dense<0.000000e+00> : vector<1x384xf32>
    %240 = tpu.matmul %235, %239, %cst_216 {dimension_numbers = #tpu.dot_dimension_numbers<[1], [0], [0], [1], [0, 0, 1, 1], [], []>} : vector<1x192xbf16>, vector<192x384xbf16>, vector<1x384xf32> -> vector<1x384xf32>
    %c0_217 = arith.constant 0 : index
    %c0_218 = arith.constant 0 : index
    %241 = vector.load %arg13[%c0_217, %c0_218] : memref<1x384xf32, #tpu.memory_space<vmem>>, vector<1x384xf32>
    %242 = arith.addf %240, %241 : vector<1x384xf32>
    %cst_219 = arith.constant 0.000000e+00 : f32
    %243 = vector.broadcast %cst_219 : f32 to vector<1x384xf32>
    %244 = arith.maximumf %242, %243 : vector<1x384xf32>
    %245 = arith.truncf %244 : vector<1x384xf32> to vector<1x384xbf16>
    %c0_220 = arith.constant 0 : index
    %c0_221 = arith.constant 0 : index
    %246 = vector.load %arg18[%c0_220, %c0_221] : memref<192x384xbf16, #tpu.memory_space<vmem>>, vector<192x384xbf16>
    %cst_222 = arith.constant dense<0.000000e+00> : vector<1x384xf32>
    %247 = tpu.matmul %238, %246, %cst_222 {dimension_numbers = #tpu.dot_dimension_numbers<[1], [0], [0], [1], [0, 0, 1, 1], [], []>} : vector<1x192xbf16>, vector<192x384xbf16>, vector<1x384xf32> -> vector<1x384xf32>
    %c0_223 = arith.constant 0 : index
    %c0_224 = arith.constant 0 : index
    %248 = vector.load %arg19[%c0_223, %c0_224] : memref<1x384xf32, #tpu.memory_space<vmem>>, vector<1x384xf32>
    %249 = arith.addf %247, %248 : vector<1x384xf32>
    %cst_225 = arith.constant 0.000000e+00 : f32
    %250 = vector.broadcast %cst_225 : f32 to vector<1x384xf32>
    %251 = arith.maximumf %249, %250 : vector<1x384xf32>
    %252 = arith.truncf %251 : vector<1x384xf32> to vector<1x384xbf16>
    %c0_226 = arith.constant 0 : index
    %c0_227 = arith.constant 0 : index
    %253 = vector.load %arg14[%c0_226, %c0_227] : memref<384x6xbf16, #tpu.memory_space<vmem>>, vector<384x6xbf16>
    %cst_228 = arith.constant dense<0.000000e+00> : vector<1x6xf32>
    %254 = tpu.matmul %245, %253, %cst_228 {dimension_numbers = #tpu.dot_dimension_numbers<[1], [0], [0], [1], [0, 0, 1, 1], [], []>} : vector<1x384xbf16>, vector<384x6xbf16>, vector<1x6xf32> -> vector<1x6xf32>
    %c0_229 = arith.constant 0 : index
    %c0_230 = arith.constant 0 : index
    %255 = vector.load %arg15[%c0_229, %c0_230] : memref<1x6xf32, #tpu.memory_space<vmem>>, vector<1x6xf32>
    %256 = arith.addf %254, %255 : vector<1x6xf32>
    %cst_231 = arith.constant dense<0xFF800000> : vector<1xf32>
    %257 = vector.multi_reduction <maximumf>, %256, %cst_231 [1] : vector<1x6xf32> to vector<1xf32>
    %258 = vector.shape_cast %257 : vector<1xf32> to vector<1x1xf32>
    %259 = vector.broadcast %258 : vector<1x1xf32> to vector<1x6xf32>
    %260 = arith.subf %256, %259 : vector<1x6xf32>
    %261 = math.exp %260 : vector<1x6xf32>
    %cst_232 = arith.constant dense<0.000000e+00> : vector<1xf32>
    %262 = vector.multi_reduction <add>, %261, %cst_232 [1] : vector<1x6xf32> to vector<1xf32>
    %263 = vector.shape_cast %262 : vector<1xf32> to vector<1x1xf32>
    %264 = vector.broadcast %263 : vector<1x1xf32> to vector<1x6xf32>
    %265 = arith.divf %261, %264 : vector<1x6xf32>
    %c0_233 = arith.constant 0 : index
    %c0_234 = arith.constant 0 : index
    %266 = vector.load %arg20[%c0_233, %c0_234] : memref<384x1xbf16, #tpu.memory_space<vmem>>, vector<384x1xbf16>
    %cst_235 = arith.constant dense<0.000000e+00> : vector<1x1xf32>
    %267 = tpu.matmul %252, %266, %cst_235 {dimension_numbers = #tpu.dot_dimension_numbers<[1], [0], [0], [1], [0, 0, 1, 1], [], []>} : vector<1x384xbf16>, vector<384x1xbf16>, vector<1x1xf32> -> vector<1x1xf32>
    %c0_236 = arith.constant 0 : index
    %c0_237 = arith.constant 0 : index
    %268 = vector.load %arg21[%c0_236, %c0_237] : memref<1x1xf32, #tpu.memory_space<vmem>>, vector<1x1xf32>
    %269 = arith.addf %267, %268 : vector<1x1xf32>
    %cst_238 = arith.constant 0.000000e+00 : f32
    %270 = vector.broadcast %cst_238 : f32 to vector<1x121xf32>
    %271 = tpu.concatenate %265, %269, %270 in 1 : vector<1x6xf32>, vector<1x1xf32>, vector<1x121xf32> -> vector<1x128xf32>
    %c0_239 = arith.constant 0 : index
    %c0_240 = arith.constant 0 : index
    %c0_241 = arith.constant 0 : index
    %272 = vector.load %arg22[%c0_239, %c0_240, %c0_241] : memref<1x1x128xf32, #tpu.memory_space<vmem>>, vector<1x1x128xf32>
    %273 = vector.shape_cast %272 : vector<1x1x128xf32> to vector<1x128xf32>
    %274 = vector.shape_cast %271 : vector<1x128xf32> to vector<1x1x128xf32>
    tpu.vector_store %arg22[%c0_239, %c0_240, %c0_241], %274 {strides = array<i32>} : memref<1x1x128xf32, #tpu.memory_space<vmem>>, vector<1x1x128xf32>,
    return
  }
  func.func @transform_0(%arg0: i32) -> (i32, i32, i32) {
    %c0_i32 = arith.constant 0 : i32
    %c0_i32_0 = arith.constant 0 : i32
    %c0_i32_1 = arith.constant 0 : i32
    return %arg0, %c0_i32, %c0_i32_0 : i32, i32, i32
  }
  func.func @transform_1(%arg0: i32) -> (i32, i32) {
    %c0_i32 = arith.constant 0 : i32
    %c0_i32_0 = arith.constant 0 : i32
    %c0_i32_1 = arith.constant 0 : i32
    return %c0_i32, %c0_i32_0 : i32, i32
  }
  func.func @transform_2(%arg0: i32) -> (i32, i32) {
    %c0_i32 = arith.constant 0 : i32
    %c0_i32_0 = arith.constant 0 : i32
    %c0_i32_1 = arith.constant 0 : i32
    return %c0_i32, %c0_i32_0 : i32, i32
  }
  func.func @transform_3(%arg0: i32) -> (i32, i32, i32) {
    %c0_i32 = arith.constant 0 : i32
    %c0_i32_0 = arith.constant 0 : i32
    %c0_i32_1 = arith.constant 0 : i32
    %c0_i32_2 = arith.constant 0 : i32
    return %c0_i32, %c0_i32_0, %c0_i32_1 : i32, i32, i32
  }
  func.func @transform_4(%arg0: i32) -> (i32, i32, i32) {
    %c0_i32 = arith.constant 0 : i32
    %c0_i32_0 = arith.constant 0 : i32
    %c0_i32_1 = arith.constant 0 : i32
    %c0_i32_2 = arith.constant 0 : i32
    return %c0_i32, %c0_i32_0, %c0_i32_1 : i32, i32, i32
  }
  func.func @transform_5(%arg0: i32) -> (i32, i32) {
    %c0_i32 = arith.constant 0 : i32
    %c0_i32_0 = arith.constant 0 : i32
    %c0_i32_1 = arith.constant 0 : i32
    return %c0_i32, %c0_i32_0 : i32, i32
  }
  func.func @transform_6(%arg0: i32) -> (i32, i32, i32) {
    %c0_i32 = arith.constant 0 : i32
    %c0_i32_0 = arith.constant 0 : i32
    %c0_i32_1 = arith.constant 0 : i32
    %c0_i32_2 = arith.constant 0 : i32
    return %c0_i32, %c0_i32_0, %c0_i32_1 : i32, i32, i32
  }
  func.func @transform_7(%arg0: i32) -> (i32, i32, i32) {
    %c0_i32 = arith.constant 0 : i32
    %c0_i32_0 = arith.constant 0 : i32
    %c0_i32_1 = arith.constant 0 : i32
    %c0_i32_2 = arith.constant 0 : i32
    return %c0_i32, %c0_i32_0, %c0_i32_1 : i32, i32, i32
  }
  func.func @transform_8(%arg0: i32) -> (i32, i32) {
    %c0_i32 = arith.constant 0 : i32
    %c0_i32_0 = arith.constant 0 : i32
    %c0_i32_1 = arith.constant 0 : i32
    return %c0_i32, %c0_i32_0 : i32, i32
  }
  func.func @transform_9(%arg0: i32) -> (i32, i32, i32) {
    %c0_i32 = arith.constant 0 : i32
    %c0_i32_0 = arith.constant 0 : i32
    %c0_i32_1 = arith.constant 0 : i32
    %c0_i32_2 = arith.constant 0 : i32
    return %c0_i32, %c0_i32_0, %c0_i32_1 : i32, i32, i32
  }
  func.func @transform_10(%arg0: i32) -> (i32, i32) {
    %c0_i32 = arith.constant 0 : i32
    %c0_i32_0 = arith.constant 0 : i32
    %c0_i32_1 = arith.constant 0 : i32
    return %c0_i32, %c0_i32_0 : i32, i32
  }
  func.func @transform_11(%arg0: i32) -> (i32, i32) {
    %c0_i32 = arith.constant 0 : i32
    %c0_i32_0 = arith.constant 0 : i32
    %c0_i32_1 = arith.constant 0 : i32
    return %c0_i32, %c0_i32_0 : i32, i32
  }
  func.func @transform_12(%arg0: i32) -> (i32, i32) {
    %c0_i32 = arith.constant 0 : i32
    %c0_i32_0 = arith.constant 0 : i32
    %c0_i32_1 = arith.constant 0 : i32
    return %c0_i32, %c0_i32_0 : i32, i32
  }
  func.func @transform_13(%arg0: i32) -> (i32, i32) {
    %c0_i32 = arith.constant 0 : i32
    %c0_i32_0 = arith.constant 0 : i32
    %c0_i32_1 = arith.constant 0 : i32
    return %c0_i32, %c0_i32_0 : i32, i32
  }
  func.func @transform_14(%arg0: i32) -> (i32, i32) {
    %c0_i32 = arith.constant 0 : i32
    %c0_i32_0 = arith.constant 0 : i32
    %c0_i32_1 = arith.constant 0 : i32
    return %c0_i32, %c0_i32_0 : i32, i32
  }
  func.func @transform_15(%arg0: i32) -> (i32, i32, i32) {
    %c0_i32 = arith.constant 0 : i32
    %c0_i32_0 = arith.constant 0 : i32
    %c0_i32_1 = arith.constant 0 : i32
    %c0_i32_2 = arith.constant 0 : i32
    return %c0_i32, %c0_i32_0, %c0_i32_1 : i32, i32, i32
  }
  func.func @transform_16(%arg0: i32) -> (i32, i32) {
    %c0_i32 = arith.constant 0 : i32
    %c0_i32_0 = arith.constant 0 : i32
    %c0_i32_1 = arith.constant 0 : i32
    return %c0_i32, %c0_i32_0 : i32, i32
  }
  func.func @transform_17(%arg0: i32) -> (i32, i32) {
    %c0_i32 = arith.constant 0 : i32
    %c0_i32_0 = arith.constant 0 : i32
    %c0_i32_1 = arith.constant 0 : i32
    return %c0_i32, %c0_i32_0 : i32, i32
  }
  func.func @transform_18(%arg0: i32) -> (i32, i32) {
    %c0_i32 = arith.constant 0 : i32
    %c0_i32_0 = arith.constant 0 : i32
    %c0_i32_1 = arith.constant 0 : i32
    return %c0_i32, %c0_i32_0 : i32, i32
  }
  func.func @transform_19(%arg0: i32) -> (i32, i32) {
    %c0_i32 = arith.constant 0 : i32
    %c0_i32_0 = arith.constant 0 : i32
    %c0_i32_1 = arith.constant 0 : i32
    return %c0_i32, %c0_i32_0 : i32, i32
  }
  func.func @transform_20(%arg0: i32) -> (i32, i32) {
    %c0_i32 = arith.constant 0 : i32
    %c0_i32_0 = arith.constant 0 : i32
    %c0_i32_1 = arith.constant 0 : i32
    return %c0_i32, %c0_i32_0 : i32, i32
  }
  func.func @transform_21(%arg0: i32) -> (i32, i32, i32) {
    %c0_i32 = arith.constant 0 : i32
    %c0_i32_0 = arith.constant 0 : i32
    %c0_i32_1 = arith.constant 0 : i32
    return %arg0, %c0_i32, %c0_i32_0 : i32, i32, i32
  }
}

</mosaic_0001>

<llo_original>
// kernel: ppo_forward.1
$region0: #{ppo_forward.1}
  #allocation0 [shape = 'u32[]', space=smem, size = 0x4, offset = 0x4, fixed_abs, tag = 'smem constant byte address 0x4 - core index']
  #allocation1 [shape = 'u32[144,128]{1,0:T(1,128)}', space=vmem, size = 0x12000, scoped, tag = 'internal scratch']
  #allocation2 [shape = 'f32[1,1]{1,0:T(1,128)S(1)}', space=vmem, size = 0x200, scoped, tag = 'scoped memory for ppo_forward.1']
  %s0 = inlined_call_operand.vmem [shape: bf16[2,64,256], index: 0, kind: input, shape index: {}]
  %s1 = inlined_call_operand.vmem [shape: bf16[256,32], index: 1, kind: input, shape index: {}]
  %s2 = inlined_call_operand.vmem [shape: f32[1,32], index: 2, kind: input, shape index: {}]
  %s3 = inlined_call_operand.vmem [shape: bf16[16,9,64], index: 3, kind: input, shape index: {}]
  %s4 = inlined_call_operand.vmem [shape: bf16[16,32,64], index: 4, kind: input, shape index: {}]
  %s5 = inlined_call_operand.vmem [shape: f32[1,64], index: 5, kind: input, shape index: {}]
  %s6 = inlined_call_operand.vmem [shape: bf16[9,1,9], index: 6, kind: input, shape index: {}]
  %s7 = inlined_call_operand.vmem [shape: bf16[9,64,64], index: 7, kind: input, shape index: {}]
  %s8 = inlined_call_operand.vmem [shape: f32[1,64], index: 8, kind: input, shape index: {}]
  %s9 = inlined_call_operand.vmem [shape: bf16[1,64,192], index: 9, kind: input, shape index: {}]
  %s10 = inlined_call_operand.vmem [shape: f32[1,192], index: 10, kind: input, shape index: {}]
  %s11 = inlined_call_operand.vmem [shape: bf16[192,384], index: 11, kind: input, shape index: {}]
  %s12 = inlined_call_operand.vmem [shape: f32[1,384], index: 12, kind: input, shape index: {}]
  %s13 = inlined_call_operand.vmem [shape: bf16[384,6], index: 13, kind: input, shape index: {}]
  %s14 = inlined_call_operand.vmem [shape: f32[1,6], index: 14, kind: input, shape index: {}]
  %s15 = inlined_call_operand.vmem [shape: bf16[1,64,192], index: 15, kind: input, shape index: {}]
  %s16 = inlined_call_operand.vmem [shape: f32[1,192], index: 16, kind: input, shape index: {}]
  %s17 = inlined_call_operand.vmem [shape: bf16[192,384], index: 17, kind: input, shape index: {}]
  %s18 = inlined_call_operand.vmem [shape: f32[1,384], index: 18, kind: input, shape index: {}]
  %s19 = inlined_call_operand.vmem [shape: bf16[384,1], index: 19, kind: input, shape index: {}]
  %s20 = inlined_call_operand.<no memory space> [shape: f32[1,1], index: 20, kind: input, shape index: {}]
  %s21 = inlined_call_operand.vmem [shape: f32[2,1,128], index: 21, kind: output, shape index: {}]
  %s22 = sld [smem:[#allocation0]]
  $region117: #{ppo_forward.1} parent=0
    _
  %s24 = ssub.s32 1, %s22
  %s25 = scalar_select 0, %s24, %s22
  %v26 = vstv %s20
  %27 = vst [vmem:[#allocation2] sm:$0x1] %v26
  loop: start=0, step=1, limit=4
  $region2: #{ppo_forward.1} parent=0 // loop_pre_header
    _
  $region3: #{ppo_forward.1} parent=0 // loop_header
    %s29 = sphi 0, %s33
    %p30 = scmp.ge.s32.totalorder %s29, 4
    %s39 = sphi 0, %s41
    %s42 = sphi 0, %s39
    %s43 = sphi 0, %s42
    %s59 = sphi 0, %s43
    %s63 = sphi 0, %s63
    %s65 = sphi 0, %s63
    %s66 = sphi 0, %s65
    %s80 = sphi 0, %s66
    %s84 = sphi 0, %s84
    %s86 = sphi 0, %s84
    %s87 = sphi 0, %s86
    %s101 = sphi 0, %s87
    %s105 = sphi 0, %s105
    %s107 = sphi 0, %s105
    %s108 = sphi 0, %s107
    %s122 = sphi 0, %s108
    %s126 = sphi 0, %s126
    %s128 = sphi 0, %s126
    %s129 = sphi 0, %s128
    %s143 = sphi 0, %s129
    %s147 = sphi 0, %s147
    %s149 = sphi 0, %s147
    %s150 = sphi 0, %s149
    %s164 = sphi 0, %s150
    %s168 = sphi 0, %s168
    %s170 = sphi 0, %s168
    %s171 = sphi 0, %s170
    %s185 = sphi 0, %s171
    %s189 = sphi 0, %s189
    %s191 = sphi 0, %s189
    %s192 = sphi 0, %s191
    %s206 = sphi 0, %s192
    %s210 = sphi 0, %s210
    %s212 = sphi 0, %s210
    %s213 = sphi 0, %s212
    %s227 = sphi 0, %s213
    %s231 = sphi 0, %s231
    %s233 = sphi 0, %s231
    %s234 = sphi 0, %s233
    %s248 = sphi 0, %s234
    %s252 = sphi 0, %s252
    %s254 = sphi 0, %s252
    %s255 = sphi 0, %s254
    %s269 = sphi 0, %s255
    %s273 = sphi 0, %s273
    %s275 = sphi 0, %s273
    %s276 = sphi 0, %s275
    %s290 = sphi 0, %s276
    %s294 = sphi 0, %s294
    %s296 = sphi 0, %s294
    %s297 = sphi 0, %s296
    %s311 = sphi 0, %s297
    %s315 = sphi 0, %s315
    %s317 = sphi 0, %s315
    %s318 = sphi 0, %s317
    %s332 = sphi 0, %s318
    %s336 = sphi 0, %s336
    %s338 = sphi 0, %s336
    %s339 = sphi 0, %s338
    %s353 = sphi 0, %s339
    %s357 = sphi 0, %s357
    %s359 = sphi 0, %s357
    %s360 = sphi 0, %s359
    %s374 = sphi 0, %s360
    %s378 = sphi 0, %s378
    %s380 = sphi 0, %s378
    %s381 = sphi 0, %s380
    %s395 = sphi 0, %s381
    %s399 = sphi 0, %s399
    %s401 = sphi 0, %s399
    %s402 = sphi 0, %s401
    %s416 = sphi 0, %s402
    %s420 = sphi 0, %s420
    %s422 = sphi 0, %s420
    %s423 = sphi 0, %s422
    %s437 = sphi 0, %s423
    %s441 = sphi 0, %s441
    %s443 = sphi 0, %s441
    %s444 = sphi 0, %s443
    %s458 = sphi 0, %s444
    %s462 = sphi 0, %s462
    %s464 = sphi 0, %s462
    %s465 = sphi 0, %s464
    %s479 = sphi 0, %s465
    %s485 = sphi 0, %s487
    %s488 = sphi 0, %s485
    %s489 = sphi 0, %s488
    %s505 = sphi 0, %s489
  $region4: #{ppo_forward.1} parent=0 // loop_header_branch
    %32 = sbr.rel (%p30) target = $region8
  $region5: #{ppo_forward.1} parent=0 // loop_body
    %s34 = ssub.s32 %s29, 1
    %s35 = ssub.s32 %s29, 2
    %s36 = sadd.s32 %s29, 1
    %s37 = ssub.s32 %s29, %s36
    %p38 = scmp.eq.s32.totalorder %s37, 0
    %s40 = sadd.s32 %s39, 1
    %s41 = scalar_select %p38, %s39, %s40
    %p44 = pneg %p38
    %p45 = scmp.eq.s32.totalorder %s29, 1
    %p46 = por %p44, %p45
    %p47 = scmp.ne.s32.totalorder %s39, %s42
    %p48 = scmp.eq.s32.totalorder %s29, 0
    %p49 = por %p47, %p48
    %p50 = scmp.ne.s32.totalorder %s39, %s42
    %p51 = scmp.eq.s32.totalorder %s34, 1
    %p52 = por %p50, %p51
    %p53 = scmp.ne.s32.totalorder %s42, %s43
    %p54 = scmp.eq.s32.totalorder %s34, 0
    %p55 = por %p53, %p54
    %p56 = scmp.ne.s32.totalorder %s42, %s43
    %p57 = scmp.eq.s32.totalorder %s35, 1
    %p58 = por %p56, %p57
    %p60 = scmp.ne.s32.totalorder %s43, %s59
    %p61 = scmp.eq.s32.totalorder %s35, 0
    %p62 = por %p60, %p61
    %s64 = sadd.s32 %s63, 1
    %p67 = scmp.eq.s32.totalorder %s29, 1
    %p68 = scmp.ne.s32.totalorder %s63, %s65
    %p69 = scmp.eq.s32.totalorder %s29, 0
    %p70 = por %p68, %p69
    %p71 = scmp.ne.s32.totalorder %s63, %s65
    %p72 = scmp.eq.s32.totalorder %s34, 1
    %p73 = por %p71, %p72
    %p74 = scmp.ne.s32.totalorder %s65, %s66
    %p75 = scmp.eq.s32.totalorder %s34, 0
    %p76 = por %p74, %p75
    %p77 = scmp.ne.s32.totalorder %s65, %s66
    %p78 = scmp.eq.s32.totalorder %s35, 1
    %p79 = por %p77, %p78
    %p81 = scmp.ne.s32.totalorder %s66, %s80
    %p82 = scmp.eq.s32.totalorder %s35, 0
    %p83 = por %p81, %p82
    %s85 = sadd.s32 %s84, 1
    %p88 = scmp.eq.s32.totalorder %s29, 1
    %p89 = scmp.ne.s32.totalorder %s84, %s86
    %p90 = scmp.eq.s32.totalorder %s29, 0
    %p91 = por %p89, %p90
    %p92 = scmp.ne.s32.totalorder %s84, %s86
    %p93 = scmp.eq.s32.totalorder %s34, 1
    %p94 = por %p92, %p93
    %p95 = scmp.ne.s32.totalorder %s86, %s87
    %p96 = scmp.eq.s32.totalorder %s34, 0
    %p97 = por %p95, %p96
    %p98 = scmp.ne.s32.totalorder %s86, %s87
    %p99 = scmp.eq.s32.totalorder %s35, 1
    %p100 = por %p98, %p99
    %p102 = scmp.ne.s32.totalorder %s87, %s101
    %p103 = scmp.eq.s32.totalorder %s35, 0
    %p104 = por %p102, %p103
    %s106 = sadd.s32 %s105, 1
    %p109 = scmp.eq.s32.totalorder %s29, 1
    %p110 = scmp.ne.s32.totalorder %s105, %s107
    %p111 = scmp.eq.s32.totalorder %s29, 0
    %p112 = por %p110, %p111
    %p113 = scmp.ne.s32.totalorder %s105, %s107
    %p114 = scmp.eq.s32.totalorder %s34, 1
    %p115 = por %p113, %p114
    %p116 = scmp.ne.s32.totalorder %s107, %s108
    %p117 = scmp.eq.s32.totalorder %s34, 0
    %p118 = por %p116, %p117
    %p119 = scmp.ne.s32.totalorder %s107, %s108
    %p120 = scmp.eq.s32.totalorder %s35, 1
    %p121 = por %p119, %p120
    %p123 = scmp.ne.s32.totalorder %s108, %s122
    %p124 = scmp.eq.s32.totalorder %s35, 0
    %p125 = por %p123, %p124
    %s127 = sadd.s32 %s126, 1
    %p130 = scmp.eq.s32.totalorder %s29, 1
    %p131 = scmp.ne.s32.totalorder %s126, %s128
    %p132 = scmp.eq.s32.totalorder %s29, 0
    %p133 = por %p131, %p132
    %p134 = scmp.ne.s32.totalorder %s126, %s128
    %p135 = scmp.eq.s32.totalorder %s34, 1
    %p136 = por %p134, %p135
    %p137 = scmp.ne.s32.totalorder %s128, %s129
    %p138 = scmp.eq.s32.totalorder %s34, 0
    %p139 = por %p137, %p138
    %p140 = scmp.ne.s32.totalorder %s128, %s129
    %p141 = scmp.eq.s32.totalorder %s35, 1
    %p142 = por %p140, %p141
    %p144 = scmp.ne.s32.totalorder %s129, %s143
    %p145 = scmp.eq.s32.totalorder %s35, 0
    %p146 = por %p144, %p145
    %s148 = sadd.s32 %s147, 1
    %p151 = scmp.eq.s32.totalorder %s29, 1
    %p152 = scmp.ne.s32.totalorder %s147, %s149
    %p153 = scmp.eq.s32.totalorder %s29, 0
    %p154 = por %p152, %p153
    %p155 = scmp.ne.s32.totalorder %s147, %s149
    %p156 = scmp.eq.s32.totalorder %s34, 1
    %p157 = por %p155, %p156
    %p158 = scmp.ne.s32.totalorder %s149, %s150
    %p159 = scmp.eq.s32.totalorder %s34, 0
    %p160 = por %p158, %p159
    %p161 = scmp.ne.s32.totalorder %s149, %s150
    %p162 = scmp.eq.s32.totalorder %s35, 1
    %p163 = por %p161, %p162
    %p165 = scmp.ne.s32.totalorder %s150, %s164
    %p166 = scmp.eq.s32.totalorder %s35, 0
    %p167 = por %p165, %p166
    %s169 = sadd.s32 %s168, 1
    %p172 = scmp.eq.s32.totalorder %s29, 1
    %p173 = scmp.ne.s32.totalorder %s168, %s170
    %p174 = scmp.eq.s32.totalorder %s29, 0
    %p175 = por %p173, %p174
    %p176 = scmp.ne.s32.totalorder %s168, %s170
    %p177 = scmp.eq.s32.totalorder %s34, 1
    %p178 = por %p176, %p177
    %p179 = scmp.ne.s32.totalorder %s170, %s171
    %p180 = scmp.eq.s32.totalorder %s34, 0
    %p181 = por %p179, %p180
    %p182 = scmp.ne.s32.totalorder %s170, %s171
    %p183 = scmp.eq.s32.totalorder %s35, 1
    %p184 = por %p182, %p183
    %p186 = scmp.ne.s32.totalorder %s171, %s185
    %p187 = scmp.eq.s32.totalorder %s35, 0
    %p188 = por %p186, %p187
    %s190 = sadd.s32 %s189, 1
    %p193 = scmp.eq.s32.totalorder %s29, 1
    %p194 = scmp.ne.s32.totalorder %s189, %s191
    %p195 = scmp.eq.s32.totalorder %s29, 0
    %p196 = por %p194, %p195
    %p197 = scmp.ne.s32.totalorder %s189, %s191
    %p198 = scmp.eq.s32.totalorder %s34, 1
    %p199 = por %p197, %p198
    %p200 = scmp.ne.s32.totalorder %s191, %s192
    %p201 = scmp.eq.s32.totalorder %s34, 0
    %p202 = por %p200, %p201
    %p203 = scmp.ne.s32.totalorder %s191, %s192
    %p204 = scmp.eq.s32.totalorder %s35, 1
    %p205 = por %p203, %p204
    %p207 = scmp.ne.s32.totalorder %s192, %s206
    %p208 = scmp.eq.s32.totalorder %s35, 0
    %p209 = por %p207, %p208
    %s211 = sadd.s32 %s210, 1
    %p214 = scmp.eq.s32.totalorder %s29, 1
    %p215 = scmp.ne.s32.totalorder %s210, %s212
    %p216 = scmp.eq.s32.totalorder %s29, 0
    %p217 = por %p215, %p216
    %p218 = scmp.ne.s32.totalorder %s210, %s212
    %p219 = scmp.eq.s32.totalorder %s34, 1
    %p220 = por %p218, %p219
    %p221 = scmp.ne.s32.totalorder %s212, %s213
    %p222 = scmp.eq.s32.totalorder %s34, 0
    %p223 = por %p221, %p222
    %p224 = scmp.ne.s32.totalorder %s212, %s213
    %p225 = scmp.eq.s32.totalorder %s35, 1
    %p226 = por %p224, %p225
    %p228 = scmp.ne.s32.totalorder %s213, %s227
    %p229 = scmp.eq.s32.totalorder %s35, 0
    %p230 = por %p228, %p229
    %s232 = sadd.s32 %s231, 1
    %p235 = scmp.eq.s32.totalorder %s29, 1
    %p236 = scmp.ne.s32.totalorder %s231, %s233
    %p237 = scmp.eq.s32.totalorder %s29, 0
    %p238 = por %p236, %p237
    %p239 = scmp.ne.s32.totalorder %s231, %s233
    %p240 = scmp.eq.s32.totalorder %s34, 1
    %p241 = por %p239, %p240
    %p242 = scmp.ne.s32.totalorder %s233, %s234
    %p243 = scmp.eq.s32.totalorder %s34, 0
    %p244 = por %p242, %p243
    %p245 = scmp.ne.s32.totalorder %s233, %s234
    %p246 = scmp.eq.s32.totalorder %s35, 1
    %p247 = por %p245, %p246
    %p249 = scmp.ne.s32.totalorder %s234, %s248
    %p250 = scmp.eq.s32.totalorder %s35, 0
    %p251 = por %p249, %p250
    %s253 = sadd.s32 %s252, 1
    %p256 = scmp.eq.s32.totalorder %s29, 1
    %p257 = scmp.ne.s32.totalorder %s252, %s254
    %p258 = scmp.eq.s32.totalorder %s29, 0
    %p259 = por %p257, %p258
    %p260 = scmp.ne.s32.totalorder %s252, %s254
    %p261 = scmp.eq.s32.totalorder %s34, 1
    %p262 = por %p260, %p261
    %p263 = scmp.ne.s32.totalorder %s254, %s255
    %p264 = scmp.eq.s32.totalorder %s34, 0
    %p265 = por %p263, %p264
    %p266 = scmp.ne.s32.totalorder %s254, %s255
    %p267 = scmp.eq.s32.totalorder %s35, 1
    %p268 = por %p266, %p267
    %p270 = scmp.ne.s32.totalorder %s255, %s269
    %p271 = scmp.eq.s32.totalorder %s35, 0
    %p272 = por %p270, %p271
    %s274 = sadd.s32 %s273, 1
    %p277 = scmp.eq.s32.totalorder %s29, 1
    %p278 = scmp.ne.s32.totalorder %s273, %s275
    %p279 = scmp.eq.s32.totalorder %s29, 0
    %p280 = por %p278, %p279
    %p281 = scmp.ne.s32.totalorder %s273, %s275
    %p282 = scmp.eq.s32.totalorder %s34, 1
    %p283 = por %p281, %p282
    %p284 = scmp.ne.s32.totalorder %s275, %s276
    %p285 = scmp.eq.s32.totalorder %s34, 0
    %p286 = por %p284, %p285
    %p287 = scmp.ne.s32.totalorder %s275, %s276
    %p288 = scmp.eq.s32.totalorder %s35, 1
    %p289 = por %p287, %p288
    %p291 = scmp.ne.s32.totalorder %s276, %s290
    %p292 = scmp.eq.s32.totalorder %s35, 0
    %p293 = por %p291, %p292
    %s295 = sadd.s32 %s294, 1
    %p298 = scmp.eq.s32.totalorder %s29, 1
    %p299 = scmp.ne.s32.totalorder %s294, %s296
    %p300 = scmp.eq.s32.totalorder %s29, 0
    %p301 = por %p299, %p300
    %p302 = scmp.ne.s32.totalorder %s294, %s296
    %p303 = scmp.eq.s32.totalorder %s34, 1
    %p304 = por %p302, %p303
    %p305 = scmp.ne.s32.totalorder %s296, %s297
    %p306 = scmp.eq.s32.totalorder %s34, 0
    %p307 = por %p305, %p306
    %p308 = scmp.ne.s32.totalorder %s296, %s297
    %p309 = scmp.eq.s32.totalorder %s35, 1
    %p310 = por %p308, %p309
    %p312 = scmp.ne.s32.totalorder %s297, %s311
    %p313 = scmp.eq.s32.totalorder %s35, 0
    %p314 = por %p312, %p313
    %s316 = sadd.s32 %s315, 1
    %p319 = scmp.eq.s32.totalorder %s29, 1
    %p320 = scmp.ne.s32.totalorder %s315, %s317
    %p321 = scmp.eq.s32.totalorder %s29, 0
    %p322 = por %p320, %p321
    %p323 = scmp.ne.s32.totalorder %s315, %s317
    %p324 = scmp.eq.s32.totalorder %s34, 1
    %p325 = por %p323, %p324
    %p326 = scmp.ne.s32.totalorder %s317, %s318
    %p327 = scmp.eq.s32.totalorder %s34, 0
    %p328 = por %p326, %p327
    %p329 = scmp.ne.s32.totalorder %s317, %s318
    %p330 = scmp.eq.s32.totalorder %s35, 1
    %p331 = por %p329, %p330
    %p333 = scmp.ne.s32.totalorder %s318, %s332
    %p334 = scmp.eq.s32.totalorder %s35, 0
    %p335 = por %p333, %p334
    %s337 = sadd.s32 %s336, 1
    %p340 = scmp.eq.s32.totalorder %s29, 1
    %p341 = scmp.ne.s32.totalorder %s336, %s338
    %p342 = scmp.eq.s32.totalorder %s29, 0
    %p343 = por %p341, %p342
    %p344 = scmp.ne.s32.totalorder %s336, %s338
    %p345 = scmp.eq.s32.totalorder %s34, 1
    %p346 = por %p344, %p345
    %p347 = scmp.ne.s32.totalorder %s338, %s339
    %p348 = scmp.eq.s32.totalorder %s34, 0
    %p349 = por %p347, %p348
    %p350 = scmp.ne.s32.totalorder %s338, %s339
    %p351 = scmp.eq.s32.totalorder %s35, 1
    %p352 = por %p350, %p351
    %p354 = scmp.ne.s32.totalorder %s339, %s353
    %p355 = scmp.eq.s32.totalorder %s35, 0
    %p356 = por %p354, %p355
    %s358 = sadd.s32 %s357, 1
    %p361 = scmp.eq.s32.totalorder %s29, 1
    %p362 = scmp.ne.s32.totalorder %s357, %s359
    %p363 = scmp.eq.s32.totalorder %s29, 0
    %p364 = por %p362, %p363
    %p365 = scmp.ne.s32.totalorder %s357, %s359
    %p366 = scmp.eq.s32.totalorder %s34, 1
    %p367 = por %p365, %p366
    %p368 = scmp.ne.s32.totalorder %s359, %s360
    %p369 = scmp.eq.s32.totalorder %s34, 0
    %p370 = por %p368, %p369
    %p371 = scmp.ne.s32.totalorder %s359, %s360
    %p372 = scmp.eq.s32.totalorder %s35, 1
    %p373 = por %p371, %p372
    %p375 = scmp.ne.s32.totalorder %s360, %s374
    %p376 = scmp.eq.s32.totalorder %s35, 0
    %p377 = por %p375, %p376
    %s379 = sadd.s32 %s378, 1
    %p382 = scmp.eq.s32.totalorder %s29, 1
    %p383 = scmp.ne.s32.totalorder %s378, %s380
    %p384 = scmp.eq.s32.totalorder %s29, 0
    %p385 = por %p383, %p384
    %p386 = scmp.ne.s32.totalorder %s378, %s380
    %p387 = scmp.eq.s32.totalorder %s34, 1
    %p388 = por %p386, %p387
    %p389 = scmp.ne.s32.totalorder %s380, %s381
    %p390 = scmp.eq.s32.totalorder %s34, 0
    %p391 = por %p389, %p390
    %p392 = scmp.ne.s32.totalorder %s380, %s381
    %p393 = scmp.eq.s32.totalorder %s35, 1
    %p394 = por %p392, %p393
    %p396 = scmp.ne.s32.totalorder %s381, %s395
    %p397 = scmp.eq.s32.totalorder %s35, 0
    %p398 = por %p396, %p397
    %s400 = sadd.s32 %s399, 1
    %p403 = scmp.eq.s32.totalorder %s29, 1
    %p404 = scmp.ne.s32.totalorder %s399, %s401
    %p405 = scmp.eq.s32.totalorder %s29, 0
    %p406 = por %p404, %p405
    %p407 = scmp.ne.s32.totalorder %s399, %s401
    %p408 = scmp.eq.s32.totalorder %s34, 1
    %p409 = por %p407, %p408
    %p410 = scmp.ne.s32.totalorder %s401, %s402
    %p411 = scmp.eq.s32.totalorder %s34, 0
    %p412 = por %p410, %p411
    %p413 = scmp.ne.s32.totalorder %s401, %s402
    %p414 = scmp.eq.s32.totalorder %s35, 1
    %p415 = por %p413, %p414
    %p417 = scmp.ne.s32.totalorder %s402, %s416
    %p418 = scmp.eq.s32.totalorder %s35, 0
    %p419 = por %p417, %p418
    %s421 = sadd.s32 %s420, 1
    %p424 = scmp.eq.s32.totalorder %s29, 1
    %p425 = scmp.ne.s32.totalorder %s420, %s422
    %p426 = scmp.eq.s32.totalorder %s29, 0
    %p427 = por %p425, %p426
    %p428 = scmp.ne.s32.totalorder %s420, %s422
    %p429 = scmp.eq.s32.totalorder %s34, 1
    %p430 = por %p428, %p429
    %p431 = scmp.ne.s32.totalorder %s422, %s423
    %p432 = scmp.eq.s32.totalorder %s34, 0
    %p433 = por %p431, %p432
    %p434 = scmp.ne.s32.totalorder %s422, %s423
    %p435 = scmp.eq.s32.totalorder %s35, 1
    %p436 = por %p434, %p435
    %p438 = scmp.ne.s32.totalorder %s423, %s437
    %p439 = scmp.eq.s32.totalorder %s35, 0
    %p440 = por %p438, %p439
    %s442 = sadd.s32 %s441, 1
    %p445 = scmp.eq.s32.totalorder %s29, 1
    %p446 = scmp.ne.s32.totalorder %s441, %s443
    %p447 = scmp.eq.s32.totalorder %s29, 0
    %p448 = por %p446, %p447
    %p449 = scmp.ne.s32.totalorder %s441, %s443
    %p450 = scmp.eq.s32.totalorder %s34, 1
    %p451 = por %p449, %p450
    %p452 = scmp.ne.s32.totalorder %s443, %s444
    %p453 = scmp.eq.s32.totalorder %s34, 0
    %p454 = por %p452, %p453
    %p455 = scmp.ne.s32.totalorder %s443, %s444
    %p456 = scmp.eq.s32.totalorder %s35, 1
    %p457 = por %p455, %p456
    %p459 = scmp.ne.s32.totalorder %s444, %s458
    %p460 = scmp.eq.s32.totalorder %s35, 0
    %p461 = por %p459, %p460
    %s463 = sadd.s32 %s462, 1
    %p466 = scmp.eq.s32.totalorder %s29, 1
    %p467 = scmp.ne.s32.totalorder %s462, %s464
    %p468 = scmp.eq.s32.totalorder %s29, 0
    %p469 = por %p467, %p468
    %p470 = scmp.ne.s32.totalorder %s462, %s464
    %p471 = scmp.eq.s32.totalorder %s34, 1
    %p472 = por %p470, %p471
    %p473 = scmp.ne.s32.totalorder %s464, %s465
    %p474 = scmp.eq.s32.totalorder %s34, 0
    %p475 = por %p473, %p474
    %p476 = scmp.ne.s32.totalorder %s464, %s465
    %p477 = scmp.eq.s32.totalorder %s35, 1
    %p478 = por %p476, %p477
    %p480 = scmp.ne.s32.totalorder %s465, %s479
    %p481 = scmp.eq.s32.totalorder %s35, 0
    %p482 = por %p480, %p481
    %s483 = ssub.s32 %s29, %s36
    %p484 = scmp.eq.s32.totalorder %s483, 0
    %s486 = sadd.s32 %s485, 1
    %s487 = scalar_select %p484, %s485, %s486
    %p490 = pneg %p484
    %p491 = scmp.eq.s32.totalorder %s29, 1
    %p492 = por %p490, %p491
    %p493 = scmp.ne.s32.totalorder %s485, %s488
    %p494 = scmp.eq.s32.totalorder %s29, 0
    %p495 = por %p493, %p494
    %p496 = scmp.ne.s32.totalorder %s485, %s488
    %p497 = scmp.eq.s32.totalorder %s34, 1
    %p498 = por %p496, %p497
    %p499 = scmp.ne.s32.totalorder %s488, %s489
    %p500 = scmp.eq.s32.totalorder %s34, 0
    %p501 = por %p499, %p500
    %p502 = scmp.ne.s32.totalorder %s488, %s489
    %p503 = scmp.eq.s32.totalorder %s35, 1
    %p504 = por %p502, %p503
    %p506 = scmp.ne.s32.totalorder %s489, %s505
    %p507 = scmp.eq.s32.totalorder %s35, 0
    %p508 = por %p506, %p507
    %p509 = scmp.le.s32.totalorder 1, %s29
    %p510 = scmp.lt.s32.totalorder %s29, 3
    %p511 = pnand %p509, %p510
    %p512 = pneg %p511
    // Predicated region
    $region9: #{ppo_forward.1} parent=5 // pred_check
      _
    $region10: #{ppo_forward.1} parent=5 // pred_check_branch
      %514 = sbr.rel (%p511) target = $region12
    $region11: #{ppo_forward.1} parent=5 // pred_region
      %s515 = ssub.s32 %s29, 1
      // Predicated region
      $region13: #{ppo_forward.1} parent=11 // pred_check
        %p516 = pneg %p76
      $region14: #{ppo_forward.1} parent=11 // pred_check_branch
        %518 = sbr.rel (%p516) target = $region16
      $region15: #{ppo_forward.1} parent=11 // pred_region
        _
      $region16: #{ppo_forward.1} parent=11 // pred_fallthru
        _
      // Predicated region
      $region17: #{ppo_forward.1} parent=11 // pred_check
        %p519 = pneg %p97
      $region18: #{ppo_forward.1} parent=11 // pred_check_branch
        %521 = sbr.rel (%p519) target = $region20
      $region19: #{ppo_forward.1} parent=11 // pred_region
        _
      $region20: #{ppo_forward.1} parent=11 // pred_fallthru
        _
      // Predicated region
      $region21: #{ppo_forward.1} parent=11 // pred_check
        %p522 = pneg %p118
      $region22: #{ppo_forward.1} parent=11 // pred_check_branch
        %524 = sbr.rel (%p522) target = $region24
      $region23: #{ppo_forward.1} parent=11 // pred_region
        _
      $region24: #{ppo_forward.1} parent=11 // pred_fallthru
        _
      // Predicated region
      $region25: #{ppo_forward.1} parent=11 // pred_check
        %p525 = pneg %p139
      $region26: #{ppo_forward.1} parent=11 // pred_check_branch
        %527 = sbr.rel (%p525) target = $region28
      $region27: #{ppo_forward.1} parent=11 // pred_region
        _
      $region28: #{ppo_forward.1} parent=11 // pred_fallthru
        _
      // Predicated region
      $region29: #{ppo_forward.1} parent=11 // pred_check
        %p528 = pneg %p160
      $region30: #{ppo_forward.1} parent=11 // pred_check_branch
        %530 = sbr.rel (%p528) target = $region32
      $region31: #{ppo_forward.1} parent=11 // pred_region
        _
      $region32: #{ppo_forward.1} parent=11 // pred_fallthru
        _
      // Predicated region
      $region33: #{ppo_forward.1} parent=11 // pred_check
        %p531 = pneg %p181
      $region34: #{ppo_forward.1} parent=11 // pred_check_branch
        %533 = sbr.rel (%p531) target = $region36
      $region35: #{ppo_forward.1} parent=11 // pred_region
        _
      $region36: #{ppo_forward.1} parent=11 // pred_fallthru
        _
      // Predicated region
      $region37: #{ppo_forward.1} parent=11 // pred_check
        %p534 = pneg %p202
      $region38: #{ppo_forward.1} parent=11 // pred_check_branch
        %536 = sbr.rel (%p534) target = $region40
      $region39: #{ppo_forward.1} parent=11 // pred_region
        _
      $region40: #{ppo_forward.1} parent=11 // pred_fallthru
        _
      // Predicated region
      $region41: #{ppo_forward.1} parent=11 // pred_check
        %p537 = pneg %p223
      $region42: #{ppo_forward.1} parent=11 // pred_check_branch
        %539 = sbr.rel (%p537) target = $region44
      $region43: #{ppo_forward.1} parent=11 // pred_region
        _
      $region44: #{ppo_forward.1} parent=11 // pred_fallthru
        _
      // Predicated region
      $region45: #{ppo_forward.1} parent=11 // pred_check
        %p540 = pneg %p244
      $region46: #{ppo_forward.1} parent=11 // pred_check_branch
        %542 = sbr.rel (%p540) target = $region48
      $region47: #{ppo_forward.1} parent=11 // pred_region
        _
      $region48: #{ppo_forward.1} parent=11 // pred_fallthru
        _
      // Predicated region
      $region49: #{ppo_forward.1} parent=11 // pred_check
        %p543 = pneg %p265
      $region50: #{ppo_forward.1} parent=11 // pred_check_branch
        %545 = sbr.rel (%p543) target = $region52
      $region51: #{ppo_forward.1} parent=11 // pred_region
        _
      $region52: #{ppo_forward.1} parent=11 // pred_fallthru
        _
      // Predicated region
      $region53: #{ppo_forward.1} parent=11 // pred_check
        %p546 = pneg %p286
      $region54: #{ppo_forward.1} parent=11 // pred_check_branch
        %548 = sbr.rel (%p546) target = $region56
      $region55: #{ppo_forward.1} parent=11 // pred_region
        _
      $region56: #{ppo_forward.1} parent=11 // pred_fallthru
        _
      // Predicated region
      $region57: #{ppo_forward.1} parent=11 // pred_check
        %p549 = pneg %p307
      $region58: #{ppo_forward.1} parent=11 // pred_check_branch
        %551 = sbr.rel (%p549) target = $region60
      $region59: #{ppo_forward.1} parent=11 // pred_region
        _
      $region60: #{ppo_forward.1} parent=11 // pred_fallthru
        _
      // Predicated region
      $region61: #{ppo_forward.1} parent=11 // pred_check
        %p552 = pneg %p328
      $region62: #{ppo_forward.1} parent=11 // pred_check_branch
        %554 = sbr.rel (%p552) target = $region64
      $region63: #{ppo_forward.1} parent=11 // pred_region
        _
      $region64: #{ppo_forward.1} parent=11 // pred_fallthru
        _
      // Predicated region
      $region65: #{ppo_forward.1} parent=11 // pred_check
        %p555 = pneg %p349
      $region66: #{ppo_forward.1} parent=11 // pred_check_branch
        %557 = sbr.rel (%p555) target = $region68
      $region67: #{ppo_forward.1} parent=11 // pred_region
        _
      $region68: #{ppo_forward.1} parent=11 // pred_fallthru
        _
      // Predicated region
      $region69: #{ppo_forward.1} parent=11 // pred_check
        %p558 = pneg %p370
      $region70: #{ppo_forward.1} parent=11 // pred_check_branch
        %560 = sbr.rel (%p558) target = $region72
      $region71: #{ppo_forward.1} parent=11 // pred_region
        _
      $region72: #{ppo_forward.1} parent=11 // pred_fallthru
        _
      // Predicated region
      $region73: #{ppo_forward.1} parent=11 // pred_check
        %p561 = pneg %p391
      $region74: #{ppo_forward.1} parent=11 // pred_check_branch
        %563 = sbr.rel (%p561) target = $region76
      $region75: #{ppo_forward.1} parent=11 // pred_region
        _
      $region76: #{ppo_forward.1} parent=11 // pred_fallthru
        _
      // Predicated region
      $region77: #{ppo_forward.1} parent=11 // pred_check
        %p564 = pneg %p412
      $region78: #{ppo_forward.1} parent=11 // pred_check_branch
        %566 = sbr.rel (%p564) target = $region80
      $region79: #{ppo_forward.1} parent=11 // pred_region
        _
      $region80: #{ppo_forward.1} parent=11 // pred_fallthru
        _
      // Predicated region
      $region81: #{ppo_forward.1} parent=11 // pred_check
        %p567 = pneg %p433
      $region82: #{ppo_forward.1} parent=11 // pred_check_branch
        %569 = sbr.rel (%p567) target = $region84
      $region83: #{ppo_forward.1} parent=11 // pred_region
        _
      $region84: #{ppo_forward.1} parent=11 // pred_fallthru
        _
      // Predicated region
      $region85: #{ppo_forward.1} parent=11 // pred_check
        %p570 = pneg %p454
      $region86: #{ppo_forward.1} parent=11 // pred_check_branch
        %572 = sbr.rel (%p570) target = $region88
      $region87: #{ppo_forward.1} parent=11 // pred_region
        _
      $region88: #{ppo_forward.1} parent=11 // pred_fallthru
        _
      // Predicated region
      $region89: #{ppo_forward.1} parent=11 // pred_check
        %p573 = pneg %p475
      $region90: #{ppo_forward.1} parent=11 // pred_check_branch
        %575 = sbr.rel (%p573) target = $region92
      $region91: #{ppo_forward.1} parent=11 // pred_region
        _
      $region92: #{ppo_forward.1} parent=11 // pred_fallthru
        _
    $region12: #{ppo_forward.1} parent=5 // pred_fallthru
      _
    %p576 = scmp.lt.s32.totalorder %s29, 2
    // Predicated region
    $region93: #{ppo_forward.1} parent=5 // pred_check
      %p577 = pneg %p576
    $region94: #{ppo_forward.1} parent=5 // pred_check_branch
      %579 = sbr.rel (%p577) target = $region96
    $region95: #{ppo_forward.1} parent=5 // pred_region
      // Predicated region
      $region97: #{ppo_forward.1} parent=95 // pred_check
        %p580 = pneg %p49
      $region98: #{ppo_forward.1} parent=95 // pred_check_branch
        %582 = sbr.rel (%p580) target = $region100
      $region99: #{ppo_forward.1} parent=95 // pred_region
        %p583 = scmp.lt.s32.totalorder %s29, 1
        %s584 = scalar_select %p583, %s29, 1
        %s585 = smul.addr %s584, 16
        %s586 = smul.addr %s585, 4
        %s587 = scalar_lea.vmem %s0, %s586
      $region100: #{ppo_forward.1} parent=95 // pred_fallthru
        _
    $region96: #{ppo_forward.1} parent=5 // pred_fallthru
      _
    %p588 = scmp.le.s32.totalorder 1, %s29
    %p589 = scmp.lt.s32.totalorder %s29, 3
    %p590 = pnand %p588, %p589
    %p591 = pneg %p590
    // Predicated region
    $region101: #{ppo_forward.1} parent=5 // pred_check
      _
    $region102: #{ppo_forward.1} parent=5 // pred_check_branch
      %593 = sbr.rel (%p590) target = $region104
    $region103: #{ppo_forward.1} parent=5 // pred_region
      %s594 = ssub.s32 %s29, 1
      %p595 = scmp.lt.s32.totalorder %s34, 1
      %s596 = scalar_select %p595, %s34, 1
      %s597 = smul.addr %s596, 16
      %s598 = smul.addr %s597, 4
      %s599 = scalar_lea.vmem %s0, %s598
      %p600 = pneg %p55
      %p601 = pneg %p52
      %p602 = pneg %p76
      %p603 = pneg %p73
      %p604 = pneg %p97
      %p605 = pneg %p94
      %p606 = pneg %p118
      %p607 = pneg %p115
      %p608 = pneg %p139
      %p609 = pneg %p136
      %p610 = pneg %p160
      %p611 = pneg %p157
      %p612 = pneg %p181
      %p613 = pneg %p178
      %p614 = pneg %p202
      %p615 = pneg %p199
      %p616 = pneg %p223
      %p617 = pneg %p220
      %p618 = pneg %p244
      %p619 = pneg %p241
      %p620 = pneg %p265
      %p621 = pneg %p262
      %p622 = pneg %p286
      %p623 = pneg %p283
      %p624 = pneg %p307
      %p625 = pneg %p304
      %p626 = pneg %p328
      %p627 = pneg %p325
      %p628 = pneg %p349
      %p629 = pneg %p346
      %p630 = pneg %p370
      %p631 = pneg %p367
      %p632 = pneg %p391
      %p633 = pneg %p388
      %p634 = pneg %p412
      %p635 = pneg %p409
      %p636 = pneg %p433
      %p637 = pneg %p430
      %p638 = pneg %p454
      %p639 = pneg %p451
      %p640 = pneg %p475
      %p641 = pneg %p472
      %p642 = pneg %p501
      %p643 = pneg %p498
      %p644 = scmp.lt.s32.totalorder %s34, 1
      %s645 = scalar_select %p644, %s34, 1
      %s646 = scalar_lea.vmem %s21, %s645
      %p647 = scmp.lt.s32.totalorder %s34, 1
      %s648 = scalar_select %p647, %s34, 1
      %s649 = smul.addr %s648, 16
      %s650 = smul.addr %s649, 4
      %s651 = scalar_lea.vmem %s0, %s650
      %p652 = scmp.lt.s32.totalorder %s34, 1
      %s653 = scalar_select %p652, %s34, 1
      %s654 = scalar_lea.vmem %s21, %s653
      %v656 = vld [vmem:[%s651] sm:$0xff]
      %v657 = vld [vmem:[%s651 + $0x8] sm:$0xff]
      %v658 = vld [vmem:[%s651 + $0x10] sm:$0xff]
      %v659 = vld [vmem:[%s651 + $0x18] sm:$0xff]
      %v660 = vld [vmem:[%s651 + $0x20] sm:$0xff]
      %v661 = vld [vmem:[%s651 + $0x28] sm:$0xff]
      %v662 = vld [vmem:[%s651 + $0x30] sm:$0xff]
      %v663 = vld [vmem:[%s651 + $0x38] sm:$0xff]
      %v664 = vld [vmem:[%s1] sm:$0xf]
      %v665 = vld [vmem:[%s1 + $0x4] sm:$0xf]
      %v666 = vld [vmem:[%s1 + $0x8] sm:$0xf]
      %v667 = vld [vmem:[%s1 + $0xc] sm:$0xf]
      %v668 = vld [vmem:[%s1 + $0x10] sm:$0xf]
      %v669 = vld [vmem:[%s1 + $0x14] sm:$0xf]
      %v670 = vld [vmem:[%s1 + $0x18] sm:$0xf]
      %v671 = vld [vmem:[%s1 + $0x1c] sm:$0xf]
      %v672 = vld [vmem:[%s1 + $0x20] sm:$0xf]
      %v673 = vld [vmem:[%s1 + $0x24] sm:$0xf]
      %v674 = vld [vmem:[%s1 + $0x28] sm:$0xf]
      %v675 = vld [vmem:[%s1 + $0x2c] sm:$0xf]
      %v676 = vld [vmem:[%s1 + $0x30] sm:$0xf]
      %v677 = vld [vmem:[%s1 + $0x34] sm:$0xf]
      %v678 = vld [vmem:[%s1 + $0x38] sm:$0xf]
      %v679 = vld [vmem:[%s1 + $0x3c] sm:$0xf]
      %v680 = vld [vmem:[%s1 + $0x40] sm:$0xf]
      %v681 = vld [vmem:[%s1 + $0x44] sm:$0xf]
      %v682 = vld [vmem:[%s1 + $0x48] sm:$0xf]
      %v683 = vld [vmem:[%s1 + $0x4c] sm:$0xf]
      %v684 = vld [vmem:[%s1 + $0x50] sm:$0xf]
      %v685 = vld [vmem:[%s1 + $0x54] sm:$0xf]
      %v686 = vld [vmem:[%s1 + $0x58] sm:$0xf]
      %v687 = vld [vmem:[%s1 + $0x5c] sm:$0xf]
      %v688 = vld [vmem:[%s1 + $0x60] sm:$0xf]
      %v689 = vld [vmem:[%s1 + $0x64] sm:$0xf]
      %v690 = vld [vmem:[%s1 + $0x68] sm:$0xf]
      %v691 = vld [vmem:[%s1 + $0x6c] sm:$0xf]
      %v692 = vld [vmem:[%s1 + $0x70] sm:$0xf]
      %v693 = vld [vmem:[%s1 + $0x74] sm:$0xf]
      %v694 = vld [vmem:[%s1 + $0x78] sm:$0xf]
      %v695 = vld [vmem:[%s1 + $0x7c] sm:$0xf]
      %v696 = vld [vmem:[%s2] sm:$0x1]
      %v698 = vlaneseq
      %v699 = vshrl.u32 %v698, 7
      %v700 = vsub.s32 0, %v699
      %v701 = vrot.slane %v696, %v700
      %v711 = vunpack.c.l.b16 %v656
      %v712 = vunpack.c.h.b16 %v656
      %v713 = vunpack.c.l.b16 %v657
      %v714 = vunpack.c.h.b16 %v657
      %v715 = vunpack.c.l.b16 %v658
      %v716 = vunpack.c.h.b16 %v658
      %v717 = vunpack.c.l.b16 %v659
      %v718 = vunpack.c.h.b16 %v659
      %v719 = vunpack.c.l.b16 %v660
      %v720 = vunpack.c.h.b16 %v660
      %v721 = vunpack.c.l.b16 %v661
      %v722 = vunpack.c.h.b16 %v661
      %v723 = vunpack.c.l.b16 %v662
      %v724 = vunpack.c.h.b16 %v662
      %v725 = vunpack.c.l.b16 %v663
      %v726 = vunpack.c.h.b16 %v663
      %v727 = vpack.c.b16 %v713, %v711
      %v728 = vpack.c.b16 %v714, %v712
      %v729 = vpack.c.b16 %v717, %v715
      %v730 = vpack.c.b16 %v718, %v716
      %v731 = vpack.c.b16 %v721, %v719
      %v732 = vpack.c.b16 %v722, %v720
      %v733 = vpack.c.b16 %v725, %v723
      %v734 = vpack.c.b16 %v726, %v724
      %v775 = vunpack.c.l.b16 %v664
      %v776 = vunpack.c.l.b16 %v665
      %v777 = vunpack.c.l.b16 %v666
      %v778 = vunpack.c.l.b16 %v667
      %v779 = vunpack.c.l.b16 %v668
      %v780 = vunpack.c.l.b16 %v669
      %v781 = vunpack.c.l.b16 %v670
      %v782 = vunpack.c.l.b16 %v671
      %v783 = vunpack.c.l.b16 %v672
      %v784 = vunpack.c.l.b16 %v673
      %v785 = vunpack.c.l.b16 %v674
      %v786 = vunpack.c.l.b16 %v675
      %v787 = vunpack.c.l.b16 %v676
      %v788 = vunpack.c.l.b16 %v677
      %v789 = vunpack.c.l.b16 %v678
      %v790 = vunpack.c.l.b16 %v679
      %v791 = vunpack.c.l.b16 %v680
      %v792 = vunpack.c.l.b16 %v681
      %v793 = vunpack.c.l.b16 %v682
      %v794 = vunpack.c.l.b16 %v683
      %v795 = vunpack.c.l.b16 %v684
      %v796 = vunpack.c.l.b16 %v685
      %v797 = vunpack.c.l.b16 %v686
      %v798 = vunpack.c.l.b16 %v687
      %v799 = vunpack.c.l.b16 %v688
      %v800 = vunpack.c.l.b16 %v689
      %v801 = vunpack.c.l.b16 %v690
      %v802 = vunpack.c.l.b16 %v691
      %v803 = vunpack.c.l.b16 %v692
      %v804 = vunpack.c.l.b16 %v693
      %v805 = vunpack.c.l.b16 %v694
      %v806 = vunpack.c.l.b16 %v695
      %v807 = vpack.c.b16 %v776, %v775
      %v808 = vpack.c.b16 %v778, %v777
      %v809 = vpack.c.b16 %v780, %v779
      %v810 = vpack.c.b16 %v782, %v781
      %v811 = vpack.c.b16 %v784, %v783
      %v812 = vpack.c.b16 %v786, %v785
      %v813 = vpack.c.b16 %v788, %v787
      %v814 = vpack.c.b16 %v790, %v789
      %v815 = vpack.c.b16 %v792, %v791
      %v816 = vpack.c.b16 %v794, %v793
      %v817 = vpack.c.b16 %v796, %v795
      %v818 = vpack.c.b16 %v798, %v797
      %v819 = vpack.c.b16 %v800, %v799
      %v820 = vpack.c.b16 %v802, %v801
      %v821 = vpack.c.b16 %v804, %v803
      %v822 = vpack.c.b16 %v806, %v805
      %839 = vmatprep.subr.bf16.mxu0 0
      %840 = vmatpush1.bf16.msra.mxu0 %v814
      %841 = vmatprep.subr.bf16.mxu0 0
      %842 = vmatpush1.bf16.msra.mxu0 %v813
      %843 = vmatprep.subr.bf16.mxu0 0
      %844 = vmatpush1.bf16.msra.mxu0 %v812
      %845 = vmatprep.subr.bf16.mxu0 0
      %846 = vmatpush1.bf16.msra.mxu0 %v811
      %847 = vmatprep.subr.bf16.mxu0 0
      %848 = vmatpush1.bf16.msra.mxu0 %v810
      %849 = vmatprep.subr.bf16.mxu0 0
      %850 = vmatpush1.bf16.msra.mxu0 %v809
      %851 = vmatprep.subr.bf16.mxu0 0
      %852 = vmatpush1.bf16.msra.mxu0 %v808
      %853 = vmatprep.subr.bf16.mxu0 0
      %854 = vmatpush1.bf16.msra.mxu0 %v807
      %855 = vmatprep.subr.bf16.mxu0 0
      %856 = vmatpush2.bf16.msra.mxu0 %v822
      %857 = vmatprep.subr.bf16.mxu0 0
      %858 = vmatpush2.bf16.msra.mxu0 %v821
      %859 = vmatprep.subr.bf16.mxu0 0
      %860 = vmatpush2.bf16.msra.mxu0 %v820
      %861 = vmatprep.subr.bf16.mxu0 0
      %862 = vmatpush2.bf16.msra.mxu0 %v819
      %863 = vmatprep.subr.bf16.mxu0 0
      %864 = vmatpush2.bf16.msra.mxu0 %v818
      %865 = vmatprep.subr.bf16.mxu0 0
      %866 = vmatpush2.bf16.msra.mxu0 %v817
      %867 = vmatprep.subr.bf16.mxu0 0
      %868 = vmatpush2.bf16.msra.mxu0 %v816
      %869 = vmatprep.subr.bf16.mxu0 0
      %870 = vmatpush2.bf16.msra.mxu0 %v815
      %871 = vmatprep.mubr.bf16.mxu0 %v728
      %872 = vmatmul.mubr.bf16.gmra.mxu0 %v727
      %v873 = vpop.f32.mrf.mxu0
      %v874 = vadd.f32 %v701, %v873
      %v875 = vpop.f32.mrf.mxu0
      %v876 = vpop.f32.mrf.mxu0
      %v877 = vadd.f32 %v701, %v876
      %v878 = vpop.f32.mrf.mxu0
      %879 = vmatprep.mubr.bf16.mxu0 %v730
      %880 = vmatmul.mubr.bf16.gmra.mxu0 %v729
      %v881 = vpop.f32.mrf.mxu0
      %v882 = vadd.f32 %v701, %v881
      %v883 = vpop.f32.mrf.mxu0
      %v884 = vpop.f32.mrf.mxu0
      %v885 = vadd.f32 %v701, %v884
      %v886 = vpop.f32.mrf.mxu0
      %887 = vmatprep.mubr.bf16.mxu0 %v732
      %888 = vmatmul.mubr.bf16.gmra.mxu0 %v731
      %v889 = vpop.f32.mrf.mxu0
      %v890 = vadd.f32 %v701, %v889
      %v891 = vpop.f32.mrf.mxu0
      %v892 = vpop.f32.mrf.mxu0
      %v893 = vadd.f32 %v701, %v892
      %v894 = vpop.f32.mrf.mxu0
      %895 = vmatprep.mubr.bf16.mxu0 %v734
      %896 = vmatmul.mubr.bf16.gmra.mxu0 %v733
      %v897 = vpop.f32.mrf.mxu0
      %v898 = vadd.f32 %v701, %v897
      %v899 = vpop.f32.mrf.mxu0
      %v900 = vpop.f32.mrf.mxu0
      %v901 = vadd.f32 %v701, %v900
      %v902 = vpop.f32.mrf.mxu0
      %903 = vdwg.mxu0
      %v904 = vmax.f32 %v874, 0.0
      %v905 = vmax.f32 %v877, 0.0
      %v906 = vmax.f32 %v882, 0.0
      %v907 = vmax.f32 %v885, 0.0
      %v908 = vmax.f32 %v890, 0.0
      %v909 = vmax.f32 %v893, 0.0
      %v910 = vmax.f32 %v898, 0.0
      %v911 = vmax.f32 %v901, 0.0
      %v912 = vpack.c.bf16 %v905, %v904
      %v913 = vpack.c.bf16 %v907, %v906
      %v914 = vpack.c.bf16 %v909, %v908
      %v915 = vpack.c.bf16 %v911, %v910
      %v916 = vld [vmem:[%s3] sm:$0xf]
      %v917 = vld [vmem:[%s3 + $0x4] sm:$0x1]
      %v920 = vunpack.c.l.b16 %v916
      %v921 = vunpack.c.l.b16 %v917
      %v922 = vpack.c.b16 %v921, %v920
      %vm923 = vcmask 523264
      %v925 = vsel %vm923, %v922, 0
      %927 = vmatprep.subr.bf16.mxu0 0
      %928 = vmatpush1.bf16.msra.mxu0 0
      %929 = vmatprep.subr.bf16.mxu0 0
      %930 = vmatpush1.bf16.msra.mxu0 0
      %931 = vmatprep.subr.bf16.mxu0 0
      %932 = vmatpush1.bf16.msra.mxu0 0
      %933 = vmatprep.subr.bf16.mxu0 0
      %934 = vmatpush1.bf16.msra.mxu0 0
      %935 = vmatprep.subr.bf16.mxu0 0
      %936 = vmatpush1.bf16.msra.mxu0 %v915
      %937 = vmatprep.subr.bf16.mxu0 0
      %938 = vmatpush1.bf16.msra.mxu0 %v914
      %939 = vmatprep.subr.bf16.mxu0 0
      %940 = vmatpush1.bf16.msra.mxu0 %v913
      %941 = vmatprep.subr.bf16.mxu0 0
      %942 = vmatpush1.bf16.msra.mxu0 %v912
      %943 = vmatprep.subr.bf16.mxu0 0
      %944 = vmatpush2.bf16.msra.mxu0 0
      %945 = vmatprep.subr.bf16.mxu0 0
      %946 = vmatpush2.bf16.msra.mxu0 0
      %947 = vmatprep.subr.bf16.mxu0 0
      %948 = vmatpush2.bf16.msra.mxu0 0
      %949 = vmatprep.subr.bf16.mxu0 0
      %950 = vmatpush2.bf16.msra.mxu0 0
      %951 = vmatprep.subr.bf16.mxu0 0
      %952 = vmatpush2.bf16.msra.mxu0 0
      %953 = vmatprep.subr.bf16.mxu0 0
      %954 = vmatpush2.bf16.msra.mxu0 0
      %955 = vmatprep.subr.bf16.mxu0 0
      %956 = vmatpush2.bf16.msra.mxu0 0
      %957 = vmatprep.subr.bf16.mxu0 0
      %958 = vmatpush2.bf16.msra.mxu0 0
      %959 = vmatprep.mubr.bf16.mxu0 0
      %960 = vmatmul.mubr.bf16.gmra.mxu0 %v925
      %v961 = vpop.f32.mrf.mxu0
      %v962 = vadd.f32 0.0, %v961
      %v963 = vpop.f32.mrf.mxu0
      %v964 = vpop.f32.mrf.mxu0
      %v965 = vadd.f32 0.0, %v964
      %v966 = vpop.f32.mrf.mxu0
      %967 = vdwg.mxu0
      %v968 = vpack.c.bf16 %v965, %v962
      %v969 = vld [vmem:[%s4] sm:$0xf]
      %v970 = vld [vmem:[%s4 + $0x4] sm:$0xf]
      %v971 = vld [vmem:[%s4 + $0x8] sm:$0xf]
      %v972 = vld [vmem:[%s4 + $0xc] sm:$0xf]
      %s973 = scalar_lea.vmem %s3, 8
      %v974 = vld [vmem:[%s973] sm:$0xf]
      %v975 = vld [vmem:[%s973 + $0x4] sm:$0x1]
      %v978 = vunpack.c.l.b16 %v974
      %v979 = vunpack.c.l.b16 %v975
      %v980 = vpack.c.b16 %v979, %v978
      %v982 = vsel %vm923, %v980, 0
      %984 = vmatprep.subr.bf16.mxu0 0
      %985 = vmatpush1.bf16.msra.mxu0 0
      %986 = vmatprep.subr.bf16.mxu0 0
      %987 = vmatpush1.bf16.msra.mxu0 0
      %988 = vmatprep.subr.bf16.mxu0 0
      %989 = vmatpush1.bf16.msra.mxu0 0
      %990 = vmatprep.subr.bf16.mxu0 0
      %991 = vmatpush1.bf16.msra.mxu0 0
      %992 = vmatprep.subr.bf16.mxu0 0
      %993 = vmatpush1.bf16.msra.mxu0 %v915
      %994 = vmatprep.subr.bf16.mxu0 0
      %995 = vmatpush1.bf16.msra.mxu0 %v914
      %996 = vmatprep.subr.bf16.mxu0 0
      %997 = vmatpush1.bf16.msra.mxu0 %v913
      %998 = vmatprep.subr.bf16.mxu0 0
      %999 = vmatpush1.bf16.msra.mxu0 %v912
      %1000 = vmatprep.subr.bf16.mxu0 0
      %1001 = vmatpush2.bf16.msra.mxu0 0
      %1002 = vmatprep.subr.bf16.mxu0 0
      %1003 = vmatpush2.bf16.msra.mxu0 0
      %1004 = vmatprep.subr.bf16.mxu0 0
      %1005 = vmatpush2.bf16.msra.mxu0 0
      %1006 = vmatprep.subr.bf16.mxu0 0
      %1007 = vmatpush2.bf16.msra.mxu0 0
      %1008 = vmatprep.subr.bf16.mxu0 0
      %1009 = vmatpush2.bf16.msra.mxu0 0
      %1010 = vmatprep.subr.bf16.mxu0 0
      %1011 = vmatpush2.bf16.msra.mxu0 0
      %1012 = vmatprep.subr.bf16.mxu0 0
      %1013 = vmatpush2.bf16.msra.mxu0 0
      %1014 = vmatprep.subr.bf16.mxu0 0
      %1015 = vmatpush2.bf16.msra.mxu0 0
      %1016 = vmatprep.mubr.bf16.mxu0 0
      %1017 = vmatmul.mubr.bf16.gmra.mxu0 %v982
      %v1018 = vpop.f32.mrf.mxu0
      %v1019 = vadd.f32 0.0, %v1018
      %v1020 = vpop.f32.mrf.mxu0
      %v1021 = vpop.f32.mrf.mxu0
      %v1022 = vadd.f32 0.0, %v1021
      %v1023 = vpop.f32.mrf.mxu0
      %1024 = vdwg.mxu0
      %v1025 = vpack.c.bf16 %v1022, %v1019
      %s1026 = scalar_lea.vmem %s4, 16
      %v1027 = vld [vmem:[%s1026] sm:$0xf]
      %v1028 = vld [vmem:[%s1026 + $0x4] sm:$0xf]
      %v1029 = vld [vmem:[%s1026 + $0x8] sm:$0xf]
      %v1030 = vld [vmem:[%s1026 + $0xc] sm:$0xf]
      %v1035 = vunpack.c.l.b16 %v1027
      %v1036 = vunpack.c.l.b16 %v1028
      %v1037 = vunpack.c.l.b16 %v1029
      %v1038 = vunpack.c.l.b16 %v1030
      %v1039 = vpack.c.b16 %v1036, %v1035
      %v1040 = vpack.c.b16 %v1038, %v1037
      %vm1043 = vcmask 261120
      %v1045 = vsel %vm1043, %v1025, 0
      %1047 = vmatprep.subr.bf16.mxu0 0
      %1048 = vmatpush1.bf16.msra.mxu0 0
      %1049 = vmatprep.subr.bf16.mxu0 0
      %1050 = vmatpush1.bf16.msra.mxu0 0
      %1051 = vmatprep.subr.bf16.mxu0 0
      %1052 = vmatpush1.bf16.msra.mxu0 0
      %1053 = vmatprep.subr.bf16.mxu0 0
      %1054 = vmatpush1.bf16.msra.mxu0 0
      %1055 = vmatprep.subr.bf16.mxu0 0
      %1056 = vmatpush1.bf16.msra.mxu0 0
      %1057 = vmatprep.subr.bf16.mxu0 0
      %1058 = vmatpush1.bf16.msra.mxu0 0
      %1059 = vmatprep.subr.bf16.mxu0 0
      %1060 = vmatpush1.bf16.msra.mxu0 %v1040
      %1061 = vmatprep.subr.bf16.mxu0 0
      %1062 = vmatpush1.bf16.msra.mxu0 %v1039
      %1063 = vmatprep.subr.bf16.mxu0 0
      %1064 = vmatpush2.bf16.msra.mxu0 0
      %1065 = vmatprep.subr.bf16.mxu0 0
      %1066 = vmatpush2.bf16.msra.mxu0 0
      %1067 = vmatprep.subr.bf16.mxu0 0
      %1068 = vmatpush2.bf16.msra.mxu0 0
      %1069 = vmatprep.subr.bf16.mxu0 0
      %1070 = vmatpush2.bf16.msra.mxu0 0
      %1071 = vmatprep.subr.bf16.mxu0 0
      %1072 = vmatpush2.bf16.msra.mxu0 0
      %1073 = vmatprep.subr.bf16.mxu0 0
      %1074 = vmatpush2.bf16.msra.mxu0 0
      %1075 = vmatprep.subr.bf16.mxu0 0
      %1076 = vmatpush2.bf16.msra.mxu0 0
      %1077 = vmatprep.subr.bf16.mxu0 0
      %1078 = vmatpush2.bf16.msra.mxu0 0
      %1079 = vmatprep.mubr.bf16.mxu0 0
      %1080 = vmatmul.mubr.bf16.gmra.mxu0 %v1045
      %v1081 = vpop.f32.mrf.mxu0
      %v1082 = vadd.f32 0.0, %v1081
      %v1083 = vpop.f32.mrf.mxu0
      %v1084 = vpop.f32.mrf.mxu0
      %v1085 = vadd.f32 0.0, %v1084
      %v1086 = vpop.f32.mrf.mxu0
      %1087 = vdwg.mxu0
      %v1092 = vunpack.c.l.b16 %v969
      %v1093 = vunpack.c.l.b16 %v970
      %v1094 = vunpack.c.l.b16 %v971
      %v1095 = vunpack.c.l.b16 %v972
      %v1096 = vpack.c.b16 %v1093, %v1092
      %v1097 = vpack.c.b16 %v1095, %v1094
      %v1101 = vsel %vm1043, %v968, 0
      %1103 = vmatprep.subr.bf16.mxu0 0
      %1104 = vmatpush1.bf16.msra.mxu0 0
      %1105 = vmatprep.subr.bf16.mxu0 0
      %1106 = vmatpush1.bf16.msra.mxu0 0
      %1107 = vmatprep.subr.bf16.mxu0 0
      %1108 = vmatpush1.bf16.msra.mxu0 0
      %1109 = vmatprep.subr.bf16.mxu0 0
      %1110 = vmatpush1.bf16.msra.mxu0 0
      %1111 = vmatprep.subr.bf16.mxu0 0
      %1112 = vmatpush1.bf16.msra.mxu0 0
      %1113 = vmatprep.subr.bf16.mxu0 0
      %1114 = vmatpush1.bf16.msra.mxu0 0
      %1115 = vmatprep.subr.bf16.mxu0 0
      %1116 = vmatpush1.bf16.msra.mxu0 %v1097
      %1117 = vmatprep.subr.bf16.mxu0 0
      %1118 = vmatpush1.bf16.msra.mxu0 %v1096
      %1119 = vmatprep.subr.bf16.mxu0 0
      %1120 = vmatpush2.bf16.msra.mxu0 0
      %1121 = vmatprep.subr.bf16.mxu0 0
      %1122 = vmatpush2.bf16.msra.mxu0 0
      %1123 = vmatprep.subr.bf16.mxu0 0
      %1124 = vmatpush2.bf16.msra.mxu0 0
      %1125 = vmatprep.subr.bf16.mxu0 0
      %1126 = vmatpush2.bf16.msra.mxu0 0
      %1127 = vmatprep.subr.bf16.mxu0 0
      %1128 = vmatpush2.bf16.msra.mxu0 0
      %1129 = vmatprep.subr.bf16.mxu0 0
      %1130 = vmatpush2.bf16.msra.mxu0 0
      %1131 = vmatprep.subr.bf16.mxu0 0
      %1132 = vmatpush2.bf16.msra.mxu0 0
      %1133 = vmatprep.subr.bf16.mxu0 0
      %1134 = vmatpush2.bf16.msra.mxu0 0
      %1135 = vmatprep.mubr.bf16.mxu0 0
      %1136 = vmatmul.mubr.bf16.gmra.mxu0 %v1101
      %v1137 = vpop.f32.mrf.mxu0
      %v1138 = vadd.f32 %v1082, %v1137
      %v1139 = vpop.f32.mrf.mxu0
      %v1140 = vpop.f32.mrf.mxu0
      %v1141 = vadd.f32 %v1085, %v1140
      %v1142 = vpop.f32.mrf.mxu0
      %1143 = vdwg.mxu0
      %s1144 = scalar_lea.vmem %s3, 16
      %v1145 = vld [vmem:[%s1144] sm:$0xf]
      %v1146 = vld [vmem:[%s1144 + $0x4] sm:$0x1]
      %v1149 = vunpack.c.l.b16 %v1145
      %v1150 = vunpack.c.l.b16 %v1146
      %v1151 = vpack.c.b16 %v1150, %v1149
      %v1153 = vsel %vm923, %v1151, 0
      %1155 = vmatprep.subr.bf16.mxu0 0
      %1156 = vmatpush1.bf16.msra.mxu0 0
      %1157 = vmatprep.subr.bf16.mxu0 0
      %1158 = vmatpush1.bf16.msra.mxu0 0
      %1159 = vmatprep.subr.bf16.mxu0 0
      %1160 = vmatpush1.bf16.msra.mxu0 0
      %1161 = vmatprep.subr.bf16.mxu0 0
      %1162 = vmatpush1.bf16.msra.mxu0 0
      %1163 = vmatprep.subr.bf16.mxu0 0
      %1164 = vmatpush1.bf16.msra.mxu0 %v915
      %1165 = vmatprep.subr.bf16.mxu0 0
      %1166 = vmatpush1.bf16.msra.mxu0 %v914
      %1167 = vmatprep.subr.bf16.mxu0 0
      %1168 = vmatpush1.bf16.msra.mxu0 %v913
      %1169 = vmatprep.subr.bf16.mxu0 0
      %1170 = vmatpush1.bf16.msra.mxu0 %v912
      %1171 = vmatprep.subr.bf16.mxu0 0
      %1172 = vmatpush2.bf16.msra.mxu0 0
      %1173 = vmatprep.subr.bf16.mxu0 0
      %1174 = vmatpush2.bf16.msra.mxu0 0
      %1175 = vmatprep.subr.bf16.mxu0 0
      %1176 = vmatpush2.bf16.msra.mxu0 0
      %1177 = vmatprep.subr.bf16.mxu0 0
      %1178 = vmatpush2.bf16.msra.mxu0 0
      %1179 = vmatprep.subr.bf16.mxu0 0
      %1180 = vmatpush2.bf16.msra.mxu0 0
      %1181 = vmatprep.subr.bf16.mxu0 0
      %1182 = vmatpush2.bf16.msra.mxu0 0
      %1183 = vmatprep.subr.bf16.mxu0 0
      %1184 = vmatpush2.bf16.msra.mxu0 0
      %1185 = vmatprep.subr.bf16.mxu0 0
      %1186 = vmatpush2.bf16.msra.mxu0 0
      %1187 = vmatprep.mubr.bf16.mxu0 0
      %1188 = vmatmul.mubr.bf16.gmra.mxu0 %v1153
      %v1189 = vpop.f32.mrf.mxu0
      %v1190 = vadd.f32 0.0, %v1189
      %v1191 = vpop.f32.mrf.mxu0
      %v1192 = vpop.f32.mrf.mxu0
      %v1193 = vadd.f32 0.0, %v1192
      %v1194 = vpop.f32.mrf.mxu0
      %1195 = vdwg.mxu0
      %v1196 = vpack.c.bf16 %v1193, %v1190
      %s1197 = scalar_lea.vmem %s4, 32
      %v1198 = vld [vmem:[%s1197] sm:$0xf]
      %v1199 = vld [vmem:[%s1197 + $0x4] sm:$0xf]
      %v1200 = vld [vmem:[%s1197 + $0x8] sm:$0xf]
      %v1201 = vld [vmem:[%s1197 + $0xc] sm:$0xf]
      %v1206 = vunpack.c.l.b16 %v1198
      %v1207 = vunpack.c.l.b16 %v1199
      %v1208 = vunpack.c.l.b16 %v1200
      %v1209 = vunpack.c.l.b16 %v1201
      %v1210 = vpack.c.b16 %v1207, %v1206
      %v1211 = vpack.c.b16 %v1209, %v1208
      %v1215 = vsel %vm1043, %v1196, 0
      %1217 = vmatprep.subr.bf16.mxu0 0
      %1218 = vmatpush1.bf16.msra.mxu0 0
      %1219 = vmatprep.subr.bf16.mxu0 0
      %1220 = vmatpush1.bf16.msra.mxu0 0
      %1221 = vmatprep.subr.bf16.mxu0 0
      %1222 = vmatpush1.bf16.msra.mxu0 0
      %1223 = vmatprep.subr.bf16.mxu0 0
      %1224 = vmatpush1.bf16.msra.mxu0 0
      %1225 = vmatprep.subr.bf16.mxu0 0
      %1226 = vmatpush1.bf16.msra.mxu0 0
      %1227 = vmatprep.subr.bf16.mxu0 0
      %1228 = vmatpush1.bf16.msra.mxu0 0
      %1229 = vmatprep.subr.bf16.mxu0 0
      %1230 = vmatpush1.bf16.msra.mxu0 %v1211
      %1231 = vmatprep.subr.bf16.mxu0 0
      %1232 = vmatpush1.bf16.msra.mxu0 %v1210
      %1233 = vmatprep.subr.bf16.mxu0 0
      %1234 = vmatpush2.bf16.msra.mxu0 0
      %1235 = vmatprep.subr.bf16.mxu0 0
      %1236 = vmatpush2.bf16.msra.mxu0 0
      %1237 = vmatprep.subr.bf16.mxu0 0
      %1238 = vmatpush2.bf16.msra.mxu0 0
      %1239 = vmatprep.subr.bf16.mxu0 0
      %1240 = vmatpush2.bf16.msra.mxu0 0
      %1241 = vmatprep.subr.bf16.mxu0 0
      %1242 = vmatpush2.bf16.msra.mxu0 0
      %1243 = vmatprep.subr.bf16.mxu0 0
      %1244 = vmatpush2.bf16.msra.mxu0 0
      %1245 = vmatprep.subr.bf16.mxu0 0
      %1246 = vmatpush2.bf16.msra.mxu0 0
      %1247 = vmatprep.subr.bf16.mxu0 0
      %1248 = vmatpush2.bf16.msra.mxu0 0
      %1249 = vmatprep.mubr.bf16.mxu0 0
      %1250 = vmatmul.mubr.bf16.gmra.mxu0 %v1215
      %v1251 = vpop.f32.mrf.mxu0
      %v1252 = vadd.f32 0.0, %v1251
      %v1253 = vpop.f32.mrf.mxu0
      %v1254 = vpop.f32.mrf.mxu0
      %v1255 = vadd.f32 0.0, %v1254
      %v1256 = vpop.f32.mrf.mxu0
      %1257 = vdwg.mxu0
      %v1258 = vadd.f32 %v1138, %v1252
      %v1259 = vadd.f32 %v1141, %v1255
      %s1260 = scalar_lea.vmem %s3, 24
      %v1261 = vld [vmem:[%s1260] sm:$0xf]
      %v1262 = vld [vmem:[%s1260 + $0x4] sm:$0x1]
      %v1265 = vunpack.c.l.b16 %v1261
      %v1266 = vunpack.c.l.b16 %v1262
      %v1267 = vpack.c.b16 %v1266, %v1265
      %v1269 = vsel %vm923, %v1267, 0
      %1271 = vmatprep.subr.bf16.mxu0 0
      %1272 = vmatpush1.bf16.msra.mxu0 0
      %1273 = vmatprep.subr.bf16.mxu0 0
      %1274 = vmatpush1.bf16.msra.mxu0 0
      %1275 = vmatprep.subr.bf16.mxu0 0
      %1276 = vmatpush1.bf16.msra.mxu0 0
      %1277 = vmatprep.subr.bf16.mxu0 0
      %1278 = vmatpush1.bf16.msra.mxu0 0
      %1279 = vmatprep.subr.bf16.mxu0 0
      %1280 = vmatpush1.bf16.msra.mxu0 %v915
      %1281 = vmatprep.subr.bf16.mxu0 0
      %1282 = vmatpush1.bf16.msra.mxu0 %v914
      %1283 = vmatprep.subr.bf16.mxu0 0
      %1284 = vmatpush1.bf16.msra.mxu0 %v913
      %1285 = vmatprep.subr.bf16.mxu0 0
      %1286 = vmatpush1.bf16.msra.mxu0 %v912
      %1287 = vmatprep.subr.bf16.mxu0 0
      %1288 = vmatpush2.bf16.msra.mxu0 0
      %1289 = vmatprep.subr.bf16.mxu0 0
      %1290 = vmatpush2.bf16.msra.mxu0 0
      %1291 = vmatprep.subr.bf16.mxu0 0
      %1292 = vmatpush2.bf16.msra.mxu0 0
      %1293 = vmatprep.subr.bf16.mxu0 0
      %1294 = vmatpush2.bf16.msra.mxu0 0
      %1295 = vmatprep.subr.bf16.mxu0 0
      %1296 = vmatpush2.bf16.msra.mxu0 0
      %1297 = vmatprep.subr.bf16.mxu0 0
      %1298 = vmatpush2.bf16.msra.mxu0 0
      %1299 = vmatprep.subr.bf16.mxu0 0
      %1300 = vmatpush2.bf16.msra.mxu0 0
      %1301 = vmatprep.subr.bf16.mxu0 0
      %1302 = vmatpush2.bf16.msra.mxu0 0
      %1303 = vmatprep.mubr.bf16.mxu0 0
      %1304 = vmatmul.mubr.bf16.gmra.mxu0 %v1269
      %v1305 = vpop.f32.mrf.mxu0
      %v1306 = vadd.f32 0.0, %v1305
      %v1307 = vpop.f32.mrf.mxu0
      %v1308 = vpop.f32.mrf.mxu0
      %v1309 = vadd.f32 0.0, %v1308
      %v1310 = vpop.f32.mrf.mxu0
      %1311 = vdwg.mxu0
      %v1312 = vpack.c.bf16 %v1309, %v1306
      %s1313 = scalar_lea.vmem %s4, 48
      %v1314 = vld [vmem:[%s1313] sm:$0xf]
      %v1315 = vld [vmem:[%s1313 + $0x4] sm:$0xf]
      %v1316 = vld [vmem:[%s1313 + $0x8] sm:$0xf]
      %v1317 = vld [vmem:[%s1313 + $0xc] sm:$0xf]
      %v1322 = vunpack.c.l.b16 %v1314
      %v1323 = vunpack.c.l.b16 %v1315
      %v1324 = vunpack.c.l.b16 %v1316
      %v1325 = vunpack.c.l.b16 %v1317
      %v1326 = vpack.c.b16 %v1323, %v1322
      %v1327 = vpack.c.b16 %v1325, %v1324
      %v1331 = vsel %vm1043, %v1312, 0
      %1333 = vmatprep.subr.bf16.mxu0 0
      %1334 = vmatpush1.bf16.msra.mxu0 0
      %1335 = vmatprep.subr.bf16.mxu0 0
      %1336 = vmatpush1.bf16.msra.mxu0 0
      %1337 = vmatprep.subr.bf16.mxu0 0
      %1338 = vmatpush1.bf16.msra.mxu0 0
      %1339 = vmatprep.subr.bf16.mxu0 0
      %1340 = vmatpush1.bf16.msra.mxu0 0
      %1341 = vmatprep.subr.bf16.mxu0 0
      %1342 = vmatpush1.bf16.msra.mxu0 0
      %1343 = vmatprep.subr.bf16.mxu0 0
      %1344 = vmatpush1.bf16.msra.mxu0 0
      %1345 = vmatprep.subr.bf16.mxu0 0
      %1346 = vmatpush1.bf16.msra.mxu0 %v1327
      %1347 = vmatprep.subr.bf16.mxu0 0
      %1348 = vmatpush1.bf16.msra.mxu0 %v1326
      %1349 = vmatprep.subr.bf16.mxu0 0
      %1350 = vmatpush2.bf16.msra.mxu0 0
      %1351 = vmatprep.subr.bf16.mxu0 0
      %1352 = vmatpush2.bf16.msra.mxu0 0
      %1353 = vmatprep.subr.bf16.mxu0 0
      %1354 = vmatpush2.bf16.msra.mxu0 0
      %1355 = vmatprep.subr.bf16.mxu0 0
      %1356 = vmatpush2.bf16.msra.mxu0 0
      %1357 = vmatprep.subr.bf16.mxu0 0
      %1358 = vmatpush2.bf16.msra.mxu0 0
      %1359 = vmatprep.subr.bf16.mxu0 0
      %1360 = vmatpush2.bf16.msra.mxu0 0
      %1361 = vmatprep.subr.bf16.mxu0 0
      %1362 = vmatpush2.bf16.msra.mxu0 0
      %1363 = vmatprep.subr.bf16.mxu0 0
      %1364 = vmatpush2.bf16.msra.mxu0 0
      %1365 = vmatprep.mubr.bf16.mxu0 0
      %1366 = vmatmul.mubr.bf16.gmra.mxu0 %v1331
      %v1367 = vpop.f32.mrf.mxu0
      %v1368 = vadd.f32 0.0, %v1367
      %v1369 = vpop.f32.mrf.mxu0
      %v1370 = vpop.f32.mrf.mxu0
      %v1371 = vadd.f32 0.0, %v1370
      %v1372 = vpop.f32.mrf.mxu0
      %1373 = vdwg.mxu0
      %v1374 = vadd.f32 %v1258, %v1368
      %v1375 = vadd.f32 %v1259, %v1371
      %s1376 = scalar_lea.vmem %s3, 32
      %v1377 = vld [vmem:[%s1376] sm:$0xf]
      %v1378 = vld [vmem:[%s1376 + $0x4] sm:$0x1]
      %v1381 = vunpack.c.l.b16 %v1377
      %v1382 = vunpack.c.l.b16 %v1378
      %v1383 = vpack.c.b16 %v1382, %v1381
      %v1385 = vsel %vm923, %v1383, 0
      %1387 = vmatprep.subr.bf16.mxu0 0
      %1388 = vmatpush1.bf16.msra.mxu0 0
      %1389 = vmatprep.subr.bf16.mxu0 0
      %1390 = vmatpush1.bf16.msra.mxu0 0
      %1391 = vmatprep.subr.bf16.mxu0 0
      %1392 = vmatpush1.bf16.msra.mxu0 0
      %1393 = vmatprep.subr.bf16.mxu0 0
      %1394 = vmatpush1.bf16.msra.mxu0 0
      %1395 = vmatprep.subr.bf16.mxu0 0
      %1396 = vmatpush1.bf16.msra.mxu0 %v915
      %1397 = vmatprep.subr.bf16.mxu0 0
      %1398 = vmatpush1.bf16.msra.mxu0 %v914
      %1399 = vmatprep.subr.bf16.mxu0 0
      %1400 = vmatpush1.bf16.msra.mxu0 %v913
      %1401 = vmatprep.subr.bf16.mxu0 0
      %1402 = vmatpush1.bf16.msra.mxu0 %v912
      %1403 = vmatprep.subr.bf16.mxu0 0
      %1404 = vmatpush2.bf16.msra.mxu0 0
      %1405 = vmatprep.subr.bf16.mxu0 0
      %1406 = vmatpush2.bf16.msra.mxu0 0
      %1407 = vmatprep.subr.bf16.mxu0 0
      %1408 = vmatpush2.bf16.msra.mxu0 0
      %1409 = vmatprep.subr.bf16.mxu0 0
      %1410 = vmatpush2.bf16.msra.mxu0 0
      %1411 = vmatprep.subr.bf16.mxu0 0
      %1412 = vmatpush2.bf16.msra.mxu0 0
      %1413 = vmatprep.subr.bf16.mxu0 0
      %1414 = vmatpush2.bf16.msra.mxu0 0
      %1415 = vmatprep.subr.bf16.mxu0 0
      %1416 = vmatpush2.bf16.msra.mxu0 0
      %1417 = vmatprep.subr.bf16.mxu0 0
      %1418 = vmatpush2.bf16.msra.mxu0 0
      %1419 = vmatprep.mubr.bf16.mxu0 0
      %1420 = vmatmul.mubr.bf16.gmra.mxu0 %v1385
      %v1421 = vpop.f32.mrf.mxu0
      %v1422 = vadd.f32 0.0, %v1421
      %v1423 = vpop.f32.mrf.mxu0
      %v1424 = vpop.f32.mrf.mxu0
      %v1425 = vadd.f32 0.0, %v1424
      %v1426 = vpop.f32.mrf.mxu0
      %1427 = vdwg.mxu0
      %v1428 = vpack.c.bf16 %v1425, %v1422
      %s1429 = scalar_lea.vmem %s4, 64
      %v1430 = vld [vmem:[%s1429] sm:$0xf]
      %v1431 = vld [vmem:[%s1429 + $0x4] sm:$0xf]
      %v1432 = vld [vmem:[%s1429 + $0x8] sm:$0xf]
      %v1433 = vld [vmem:[%s1429 + $0xc] sm:$0xf]
      %v1438 = vunpack.c.l.b16 %v1430
      %v1439 = vunpack.c.l.b16 %v1431
      %v1440 = vunpack.c.l.b16 %v1432
      %v1441 = vunpack.c.l.b16 %v1433
      %v1442 = vpack.c.b16 %v1439, %v1438
      %v1443 = vpack.c.b16 %v1441, %v1440
      %v1447 = vsel %vm1043, %v1428, 0
      %1449 = vmatprep.subr.bf16.mxu0 0
      %1450 = vmatpush1.bf16.msra.mxu0 0
      %1451 = vmatprep.subr.bf16.mxu0 0
      %1452 = vmatpush1.bf16.msra.mxu0 0
      %1453 = vmatprep.subr.bf16.mxu0 0
      %1454 = vmatpush1.bf16.msra.mxu0 0
      %1455 = vmatprep.subr.bf16.mxu0 0
      %1456 = vmatpush1.bf16.msra.mxu0 0
      %1457 = vmatprep.subr.bf16.mxu0 0
      %1458 = vmatpush1.bf16.msra.mxu0 0
      %1459 = vmatprep.subr.bf16.mxu0 0
      %1460 = vmatpush1.bf16.msra.mxu0 0
      %1461 = vmatprep.subr.bf16.mxu0 0
      %1462 = vmatpush1.bf16.msra.mxu0 %v1443
      %1463 = vmatprep.subr.bf16.mxu0 0
      %1464 = vmatpush1.bf16.msra.mxu0 %v1442
      %1465 = vmatprep.subr.bf16.mxu0 0
      %1466 = vmatpush2.bf16.msra.mxu0 0
      %1467 = vmatprep.subr.bf16.mxu0 0
      %1468 = vmatpush2.bf16.msra.mxu0 0
      %1469 = vmatprep.subr.bf16.mxu0 0
      %1470 = vmatpush2.bf16.msra.mxu0 0
      %1471 = vmatprep.subr.bf16.mxu0 0
      %1472 = vmatpush2.bf16.msra.mxu0 0
      %1473 = vmatprep.subr.bf16.mxu0 0
      %1474 = vmatpush2.bf16.msra.mxu0 0
      %1475 = vmatprep.subr.bf16.mxu0 0
      %1476 = vmatpush2.bf16.msra.mxu0 0
      %1477 = vmatprep.subr.bf16.mxu0 0
      %1478 = vmatpush2.bf16.msra.mxu0 0
      %1479 = vmatprep.subr.bf16.mxu0 0
      %1480 = vmatpush2.bf16.msra.mxu0 0
      %1481 = vmatprep.mubr.bf16.mxu0 0
      %1482 = vmatmul.mubr.bf16.gmra.mxu0 %v1447
      %v1483 = vpop.f32.mrf.mxu0
      %v1484 = vadd.f32 0.0, %v1483
      %v1485 = vpop.f32.mrf.mxu0
      %v1486 = vpop.f32.mrf.mxu0
      %v1487 = vadd.f32 0.0, %v1486
      %v1488 = vpop.f32.mrf.mxu0
      %1489 = vdwg.mxu0
      %v1490 = vadd.f32 %v1374, %v1484
      %v1491 = vadd.f32 %v1375, %v1487
      %s1492 = scalar_lea.vmem %s3, 40
      %v1493 = vld [vmem:[%s1492] sm:$0xf]
      %v1494 = vld [vmem:[%s1492 + $0x4] sm:$0x1]
      %v1497 = vunpack.c.l.b16 %v1493
      %v1498 = vunpack.c.l.b16 %v1494
      %v1499 = vpack.c.b16 %v1498, %v1497
      %v1501 = vsel %vm923, %v1499, 0
      %1503 = vmatprep.subr.bf16.mxu0 0
      %1504 = vmatpush1.bf16.msra.mxu0 0
      %1505 = vmatprep.subr.bf16.mxu0 0
      %1506 = vmatpush1.bf16.msra.mxu0 0
      %1507 = vmatprep.subr.bf16.mxu0 0
      %1508 = vmatpush1.bf16.msra.mxu0 0
      %1509 = vmatprep.subr.bf16.mxu0 0
      %1510 = vmatpush1.bf16.msra.mxu0 0
      %1511 = vmatprep.subr.bf16.mxu0 0
      %1512 = vmatpush1.bf16.msra.mxu0 %v915
      %1513 = vmatprep.subr.bf16.mxu0 0
      %1514 = vmatpush1.bf16.msra.mxu0 %v914
      %1515 = vmatprep.subr.bf16.mxu0 0
      %1516 = vmatpush1.bf16.msra.mxu0 %v913
      %1517 = vmatprep.subr.bf16.mxu0 0
      %1518 = vmatpush1.bf16.msra.mxu0 %v912
      %1519 = vmatprep.subr.bf16.mxu0 0
      %1520 = vmatpush2.bf16.msra.mxu0 0
      %1521 = vmatprep.subr.bf16.mxu0 0
      %1522 = vmatpush2.bf16.msra.mxu0 0
      %1523 = vmatprep.subr.bf16.mxu0 0
      %1524 = vmatpush2.bf16.msra.mxu0 0
      %1525 = vmatprep.subr.bf16.mxu0 0
      %1526 = vmatpush2.bf16.msra.mxu0 0
      %1527 = vmatprep.subr.bf16.mxu0 0
      %1528 = vmatpush2.bf16.msra.mxu0 0
      %1529 = vmatprep.subr.bf16.mxu0 0
      %1530 = vmatpush2.bf16.msra.mxu0 0
      %1531 = vmatprep.subr.bf16.mxu0 0
      %1532 = vmatpush2.bf16.msra.mxu0 0
      %1533 = vmatprep.subr.bf16.mxu0 0
      %1534 = vmatpush2.bf16.msra.mxu0 0
      %1535 = vmatprep.mubr.bf16.mxu0 0
      %1536 = vmatmul.mubr.bf16.gmra.mxu0 %v1501
      %v1537 = vpop.f32.mrf.mxu0
      %v1538 = vadd.f32 0.0, %v1537
      %v1539 = vpop.f32.mrf.mxu0
      %v1540 = vpop.f32.mrf.mxu0
      %v1541 = vadd.f32 0.0, %v1540
      %v1542 = vpop.f32.mrf.mxu0
      %1543 = vdwg.mxu0
      %v1544 = vpack.c.bf16 %v1541, %v1538
      %s1545 = scalar_lea.vmem %s4, 80
      %v1546 = vld [vmem:[%s1545] sm:$0xf]
      %v1547 = vld [vmem:[%s1545 + $0x4] sm:$0xf]
      %v1548 = vld [vmem:[%s1545 + $0x8] sm:$0xf]
      %v1549 = vld [vmem:[%s1545 + $0xc] sm:$0xf]
      %v1554 = vunpack.c.l.b16 %v1546
      %v1555 = vunpack.c.l.b16 %v1547
      %v1556 = vunpack.c.l.b16 %v1548
      %v1557 = vunpack.c.l.b16 %v1549
      %v1558 = vpack.c.b16 %v1555, %v1554
      %v1559 = vpack.c.b16 %v1557, %v1556
      %v1563 = vsel %vm1043, %v1544, 0
      %1565 = vmatprep.subr.bf16.mxu0 0
      %1566 = vmatpush1.bf16.msra.mxu0 0
      %1567 = vmatprep.subr.bf16.mxu0 0
      %1568 = vmatpush1.bf16.msra.mxu0 0
      %1569 = vmatprep.subr.bf16.mxu0 0
      %1570 = vmatpush1.bf16.msra.mxu0 0
      %1571 = vmatprep.subr.bf16.mxu0 0
      %1572 = vmatpush1.bf16.msra.mxu0 0
      %1573 = vmatprep.subr.bf16.mxu0 0
      %1574 = vmatpush1.bf16.msra.mxu0 0
      %1575 = vmatprep.subr.bf16.mxu0 0
      %1576 = vmatpush1.bf16.msra.mxu0 0
      %1577 = vmatprep.subr.bf16.mxu0 0
      %1578 = vmatpush1.bf16.msra.mxu0 %v1559
      %1579 = vmatprep.subr.bf16.mxu0 0
      %1580 = vmatpush1.bf16.msra.mxu0 %v1558
      %1581 = vmatprep.subr.bf16.mxu0 0
      %1582 = vmatpush2.bf16.msra.mxu0 0
      %1583 = vmatprep.subr.bf16.mxu0 0
      %1584 = vmatpush2.bf16.msra.mxu0 0
      %1585 = vmatprep.subr.bf16.mxu0 0
      %1586 = vmatpush2.bf16.msra.mxu0 0
      %1587 = vmatprep.subr.bf16.mxu0 0
      %1588 = vmatpush2.bf16.msra.mxu0 0
      %1589 = vmatprep.subr.bf16.mxu0 0
      %1590 = vmatpush2.bf16.msra.mxu0 0
      %1591 = vmatprep.subr.bf16.mxu0 0
      %1592 = vmatpush2.bf16.msra.mxu0 0
      %1593 = vmatprep.subr.bf16.mxu0 0
      %1594 = vmatpush2.bf16.msra.mxu0 0
      %1595 = vmatprep.subr.bf16.mxu0 0
      %1596 = vmatpush2.bf16.msra.mxu0 0
      %1597 = vmatprep.mubr.bf16.mxu0 0
      %1598 = vmatmul.mubr.bf16.gmra.mxu0 %v1563
      %v1599 = vpop.f32.mrf.mxu0
      %v1600 = vadd.f32 0.0, %v1599
      %v1601 = vpop.f32.mrf.mxu0
      %v1602 = vpop.f32.mrf.mxu0
      %v1603 = vadd.f32 0.0, %v1602
      %v1604 = vpop.f32.mrf.mxu0
      %1605 = vdwg.mxu0
      %v1606 = vadd.f32 %v1490, %v1600
      %v1607 = vadd.f32 %v1491, %v1603
      %s1608 = scalar_lea.vmem %s3, 48
      %v1609 = vld [vmem:[%s1608] sm:$0xf]
      %v1610 = vld [vmem:[%s1608 + $0x4] sm:$0x1]
      %v1613 = vunpack.c.l.b16 %v1609
      %v1614 = vunpack.c.l.b16 %v1610
      %v1615 = vpack.c.b16 %v1614, %v1613
      %v1617 = vsel %vm923, %v1615, 0
      %1619 = vmatprep.subr.bf16.mxu0 0
      %1620 = vmatpush1.bf16.msra.mxu0 0
      %1621 = vmatprep.subr.bf16.mxu0 0
      %1622 = vmatpush1.bf16.msra.mxu0 0
      %1623 = vmatprep.subr.bf16.mxu0 0
      %1624 = vmatpush1.bf16.msra.mxu0 0
      %1625 = vmatprep.subr.bf16.mxu0 0
      %1626 = vmatpush1.bf16.msra.mxu0 0
      %1627 = vmatprep.subr.bf16.mxu0 0
      %1628 = vmatpush1.bf16.msra.mxu0 %v915
      %1629 = vmatprep.subr.bf16.mxu0 0
      %1630 = vmatpush1.bf16.msra.mxu0 %v914
      %1631 = vmatprep.subr.bf16.mxu0 0
      %1632 = vmatpush1.bf16.msra.mxu0 %v913
      %1633 = vmatprep.subr.bf16.mxu0 0
      %1634 = vmatpush1.bf16.msra.mxu0 %v912
      %1635 = vmatprep.subr.bf16.mxu0 0
      %1636 = vmatpush2.bf16.msra.mxu0 0
      %1637 = vmatprep.subr.bf16.mxu0 0
      %1638 = vmatpush2.bf16.msra.mxu0 0
      %1639 = vmatprep.subr.bf16.mxu0 0
      %1640 = vmatpush2.bf16.msra.mxu0 0
      %1641 = vmatprep.subr.bf16.mxu0 0
      %1642 = vmatpush2.bf16.msra.mxu0 0
      %1643 = vmatprep.subr.bf16.mxu0 0
      %1644 = vmatpush2.bf16.msra.mxu0 0
      %1645 = vmatprep.subr.bf16.mxu0 0
      %1646 = vmatpush2.bf16.msra.mxu0 0
      %1647 = vmatprep.subr.bf16.mxu0 0
      %1648 = vmatpush2.bf16.msra.mxu0 0
      %1649 = vmatprep.subr.bf16.mxu0 0
      %1650 = vmatpush2.bf16.msra.mxu0 0
      %1651 = vmatprep.mubr.bf16.mxu0 0
      %1652 = vmatmul.mubr.bf16.gmra.mxu0 %v1617
      %v1653 = vpop.f32.mrf.mxu0
      %v1654 = vadd.f32 0.0, %v1653
      %v1655 = vpop.f32.mrf.mxu0
      %v1656 = vpop.f32.mrf.mxu0
      %v1657 = vadd.f32 0.0, %v1656
      %v1658 = vpop.f32.mrf.mxu0
      %1659 = vdwg.mxu0
      %v1660 = vpack.c.bf16 %v1657, %v1654
      %s1661 = scalar_lea.vmem %s4, 96
      %v1662 = vld [vmem:[%s1661] sm:$0xf]
      %v1663 = vld [vmem:[%s1661 + $0x4] sm:$0xf]
      %v1664 = vld [vmem:[%s1661 + $0x8] sm:$0xf]
      %v1665 = vld [vmem:[%s1661 + $0xc] sm:$0xf]
      %v1670 = vunpack.c.l.b16 %v1662
      %v1671 = vunpack.c.l.b16 %v1663
      %v1672 = vunpack.c.l.b16 %v1664
      %v1673 = vunpack.c.l.b16 %v1665
      %v1674 = vpack.c.b16 %v1671, %v1670
      %v1675 = vpack.c.b16 %v1673, %v1672
      %v1679 = vsel %vm1043, %v1660, 0
      %1681 = vmatprep.subr.bf16.mxu0 0
      %1682 = vmatpush1.bf16.msra.mxu0 0
      %1683 = vmatprep.subr.bf16.mxu0 0
      %1684 = vmatpush1.bf16.msra.mxu0 0
      %1685 = vmatprep.subr.bf16.mxu0 0
      %1686 = vmatpush1.bf16.msra.mxu0 0
      %1687 = vmatprep.subr.bf16.mxu0 0
      %1688 = vmatpush1.bf16.msra.mxu0 0
      %1689 = vmatprep.subr.bf16.mxu0 0
      %1690 = vmatpush1.bf16.msra.mxu0 0
      %1691 = vmatprep.subr.bf16.mxu0 0
      %1692 = vmatpush1.bf16.msra.mxu0 0
      %1693 = vmatprep.subr.bf16.mxu0 0
      %1694 = vmatpush1.bf16.msra.mxu0 %v1675
      %1695 = vmatprep.subr.bf16.mxu0 0
      %1696 = vmatpush1.bf16.msra.mxu0 %v1674
      %1697 = vmatprep.subr.bf16.mxu0 0
      %1698 = vmatpush2.bf16.msra.mxu0 0
      %1699 = vmatprep.subr.bf16.mxu0 0
      %1700 = vmatpush2.bf16.msra.mxu0 0
      %1701 = vmatprep.subr.bf16.mxu0 0
      %1702 = vmatpush2.bf16.msra.mxu0 0
      %1703 = vmatprep.subr.bf16.mxu0 0
      %1704 = vmatpush2.bf16.msra.mxu0 0
      %1705 = vmatprep.subr.bf16.mxu0 0
      %1706 = vmatpush2.bf16.msra.mxu0 0
      %1707 = vmatprep.subr.bf16.mxu0 0
      %1708 = vmatpush2.bf16.msra.mxu0 0
      %1709 = vmatprep.subr.bf16.mxu0 0
      %1710 = vmatpush2.bf16.msra.mxu0 0
      %1711 = vmatprep.subr.bf16.mxu0 0
      %1712 = vmatpush2.bf16.msra.mxu0 0
      %1713 = vmatprep.mubr.bf16.mxu0 0
      %1714 = vmatmul.mubr.bf16.gmra.mxu0 %v1679
      %v1715 = vpop.f32.mrf.mxu0
      %v1716 = vadd.f32 0.0, %v1715
      %v1717 = vpop.f32.mrf.mxu0
      %v1718 = vpop.f32.mrf.mxu0
      %v1719 = vadd.f32 0.0, %v1718
      %v1720 = vpop.f32.mrf.mxu0
      %1721 = vdwg.mxu0
      %v1722 = vadd.f32 %v1606, %v1716
      %v1723 = vadd.f32 %v1607, %v1719
      %s1724 = scalar_lea.vmem %s3, 56
      %v1725 = vld [vmem:[%s1724] sm:$0xf]
      %v1726 = vld [vmem:[%s1724 + $0x4] sm:$0x1]
      %v1729 = vunpack.c.l.b16 %v1725
      %v1730 = vunpack.c.l.b16 %v1726
      %v1731 = vpack.c.b16 %v1730, %v1729
      %v1733 = vsel %vm923, %v1731, 0
      %1735 = vmatprep.subr.bf16.mxu0 0
      %1736 = vmatpush1.bf16.msra.mxu0 0
      %1737 = vmatprep.subr.bf16.mxu0 0
      %1738 = vmatpush1.bf16.msra.mxu0 0
      %1739 = vmatprep.subr.bf16.mxu0 0
      %1740 = vmatpush1.bf16.msra.mxu0 0
      %1741 = vmatprep.subr.bf16.mxu0 0
      %1742 = vmatpush1.bf16.msra.mxu0 0
      %1743 = vmatprep.subr.bf16.mxu0 0
      %1744 = vmatpush1.bf16.msra.mxu0 %v915
      %1745 = vmatprep.subr.bf16.mxu0 0
      %1746 = vmatpush1.bf16.msra.mxu0 %v914
      %1747 = vmatprep.subr.bf16.mxu0 0
      %1748 = vmatpush1.bf16.msra.mxu0 %v913
      %1749 = vmatprep.subr.bf16.mxu0 0
      %1750 = vmatpush1.bf16.msra.mxu0 %v912
      %1751 = vmatprep.subr.bf16.mxu0 0
      %1752 = vmatpush2.bf16.msra.mxu0 0
      %1753 = vmatprep.subr.bf16.mxu0 0
      %1754 = vmatpush2.bf16.msra.mxu0 0
      %1755 = vmatprep.subr.bf16.mxu0 0
      %1756 = vmatpush2.bf16.msra.mxu0 0
      %1757 = vmatprep.subr.bf16.mxu0 0
      %1758 = vmatpush2.bf16.msra.mxu0 0
      %1759 = vmatprep.subr.bf16.mxu0 0
      %1760 = vmatpush2.bf16.msra.mxu0 0
      %1761 = vmatprep.subr.bf16.mxu0 0
      %1762 = vmatpush2.bf16.msra.mxu0 0
      %1763 = vmatprep.subr.bf16.mxu0 0
      %1764 = vmatpush2.bf16.msra.mxu0 0
      %1765 = vmatprep.subr.bf16.mxu0 0
      %1766 = vmatpush2.bf16.msra.mxu0 0
      %1767 = vmatprep.mubr.bf16.mxu0 0
      %1768 = vmatmul.mubr.bf16.gmra.mxu0 %v1733
      %v1769 = vpop.f32.mrf.mxu0
      %v1770 = vadd.f32 0.0, %v1769
      %v1771 = vpop.f32.mrf.mxu0
      %v1772 = vpop.f32.mrf.mxu0
      %v1773 = vadd.f32 0.0, %v1772
      %v1774 = vpop.f32.mrf.mxu0
      %1775 = vdwg.mxu0
      %v1776 = vpack.c.bf16 %v1773, %v1770
      %s1777 = scalar_lea.vmem %s4, 112
      %v1778 = vld [vmem:[%s1777] sm:$0xf]
      %v1779 = vld [vmem:[%s1777 + $0x4] sm:$0xf]
      %v1780 = vld [vmem:[%s1777 + $0x8] sm:$0xf]
      %v1781 = vld [vmem:[%s1777 + $0xc] sm:$0xf]
      %v1786 = vunpack.c.l.b16 %v1778
      %v1787 = vunpack.c.l.b16 %v1779
      %v1788 = vunpack.c.l.b16 %v1780
      %v1789 = vunpack.c.l.b16 %v1781
      %v1790 = vpack.c.b16 %v1787, %v1786
      %v1791 = vpack.c.b16 %v1789, %v1788
      %v1795 = vsel %vm1043, %v1776, 0
      %1797 = vmatprep.subr.bf16.mxu0 0
      %1798 = vmatpush1.bf16.msra.mxu0 0
      %1799 = vmatprep.subr.bf16.mxu0 0
      %1800 = vmatpush1.bf16.msra.mxu0 0
      %1801 = vmatprep.subr.bf16.mxu0 0
      %1802 = vmatpush1.bf16.msra.mxu0 0
      %1803 = vmatprep.subr.bf16.mxu0 0
      %1804 = vmatpush1.bf16.msra.mxu0 0
      %1805 = vmatprep.subr.bf16.mxu0 0
      %1806 = vmatpush1.bf16.msra.mxu0 0
      %1807 = vmatprep.subr.bf16.mxu0 0
      %1808 = vmatpush1.bf16.msra.mxu0 0
      %1809 = vmatprep.subr.bf16.mxu0 0
      %1810 = vmatpush1.bf16.msra.mxu0 %v1791
      %1811 = vmatprep.subr.bf16.mxu0 0
      %1812 = vmatpush1.bf16.msra.mxu0 %v1790
      %1813 = vmatprep.subr.bf16.mxu0 0
      %1814 = vmatpush2.bf16.msra.mxu0 0
      %1815 = vmatprep.subr.bf16.mxu0 0
      %1816 = vmatpush2.bf16.msra.mxu0 0
      %1817 = vmatprep.subr.bf16.mxu0 0
      %1818 = vmatpush2.bf16.msra.mxu0 0
      %1819 = vmatprep.subr.bf16.mxu0 0
      %1820 = vmatpush2.bf16.msra.mxu0 0
      %1821 = vmatprep.subr.bf16.mxu0 0
      %1822 = vmatpush2.bf16.msra.mxu0 0
      %1823 = vmatprep.subr.bf16.mxu0 0
      %1824 = vmatpush2.bf16.msra.mxu0 0
      %1825 = vmatprep.subr.bf16.mxu0 0
      %1826 = vmatpush2.bf16.msra.mxu0 0
      %1827 = vmatprep.subr.bf16.mxu0 0
      %1828 = vmatpush2.bf16.msra.mxu0 0
      %1829 = vmatprep.mubr.bf16.mxu0 0
      %1830 = vmatmul.mubr.bf16.gmra.mxu0 %v1795
      %v1831 = vpop.f32.mrf.mxu0
      %v1832 = vadd.f32 0.0, %v1831
      %v1833 = vpop.f32.mrf.mxu0
      %v1834 = vpop.f32.mrf.mxu0
      %v1835 = vadd.f32 0.0, %v1834
      %v1836 = vpop.f32.mrf.mxu0
      %1837 = vdwg.mxu0
      %v1838 = vadd.f32 %v1722, %v1832
      %v1839 = vadd.f32 %v1723, %v1835
      %s1840 = scalar_lea.vmem %s3, 64
      %v1841 = vld [vmem:[%s1840] sm:$0xf]
      %v1842 = vld [vmem:[%s1840 + $0x4] sm:$0x1]
      %v1845 = vunpack.c.l.b16 %v1841
      %v1846 = vunpack.c.l.b16 %v1842
      %v1847 = vpack.c.b16 %v1846, %v1845
      %v1849 = vsel %vm923, %v1847, 0
      %1851 = vmatprep.subr.bf16.mxu0 0
      %1852 = vmatpush1.bf16.msra.mxu0 0
      %1853 = vmatprep.subr.bf16.mxu0 0
      %1854 = vmatpush1.bf16.msra.mxu0 0
      %1855 = vmatprep.subr.bf16.mxu0 0
      %1856 = vmatpush1.bf16.msra.mxu0 0
      %1857 = vmatprep.subr.bf16.mxu0 0
      %1858 = vmatpush1.bf16.msra.mxu0 0
      %1859 = vmatprep.subr.bf16.mxu0 0
      %1860 = vmatpush1.bf16.msra.mxu0 %v915
      %1861 = vmatprep.subr.bf16.mxu0 0
      %1862 = vmatpush1.bf16.msra.mxu0 %v914
      %1863 = vmatprep.subr.bf16.mxu0 0
      %1864 = vmatpush1.bf16.msra.mxu0 %v913
      %1865 = vmatprep.subr.bf16.mxu0 0
      %1866 = vmatpush1.bf16.msra.mxu0 %v912
      %1867 = vmatprep.subr.bf16.mxu0 0
      %1868 = vmatpush2.bf16.msra.mxu0 0
      %1869 = vmatprep.subr.bf16.mxu0 0
      %1870 = vmatpush2.bf16.msra.mxu0 0
      %1871 = vmatprep.subr.bf16.mxu0 0
      %1872 = vmatpush2.bf16.msra.mxu0 0
      %1873 = vmatprep.subr.bf16.mxu0 0
      %1874 = vmatpush2.bf16.msra.mxu0 0
      %1875 = vmatprep.subr.bf16.mxu0 0
      %1876 = vmatpush2.bf16.msra.mxu0 0
      %1877 = vmatprep.subr.bf16.mxu0 0
      %1878 = vmatpush2.bf16.msra.mxu0 0
      %1879 = vmatprep.subr.bf16.mxu0 0
      %1880 = vmatpush2.bf16.msra.mxu0 0
      %1881 = vmatprep.subr.bf16.mxu0 0
      %1882 = vmatpush2.bf16.msra.mxu0 0
      %1883 = vmatprep.mubr.bf16.mxu0 0
      %1884 = vmatmul.mubr.bf16.gmra.mxu0 %v1849
      %v1885 = vpop.f32.mrf.mxu0
      %v1886 = vadd.f32 0.0, %v1885
      %v1887 = vpop.f32.mrf.mxu0
      %v1888 = vpop.f32.mrf.mxu0
      %v1889 = vadd.f32 0.0, %v1888
      %v1890 = vpop.f32.mrf.mxu0
      %1891 = vdwg.mxu0
      %v1892 = vpack.c.bf16 %v1889, %v1886
      %s1893 = scalar_lea.vmem %s4, 128
      %v1894 = vld [vmem:[%s1893] sm:$0xf]
      %v1895 = vld [vmem:[%s1893 + $0x4] sm:$0xf]
      %v1896 = vld [vmem:[%s1893 + $0x8] sm:$0xf]
      %v1897 = vld [vmem:[%s1893 + $0xc] sm:$0xf]
      %v1902 = vunpack.c.l.b16 %v1894
      %v1903 = vunpack.c.l.b16 %v1895
      %v1904 = vunpack.c.l.b16 %v1896
      %v1905 = vunpack.c.l.b16 %v1897
      %v1906 = vpack.c.b16 %v1903, %v1902
      %v1907 = vpack.c.b16 %v1905, %v1904
      %v1911 = vsel %vm1043, %v1892, 0
      %1913 = vmatprep.subr.bf16.mxu0 0
      %1914 = vmatpush1.bf16.msra.mxu0 0
      %1915 = vmatprep.subr.bf16.mxu0 0
      %1916 = vmatpush1.bf16.msra.mxu0 0
      %1917 = vmatprep.subr.bf16.mxu0 0
      %1918 = vmatpush1.bf16.msra.mxu0 0
      %1919 = vmatprep.subr.bf16.mxu0 0
      %1920 = vmatpush1.bf16.msra.mxu0 0
      %1921 = vmatprep.subr.bf16.mxu0 0
      %1922 = vmatpush1.bf16.msra.mxu0 0
      %1923 = vmatprep.subr.bf16.mxu0 0
      %1924 = vmatpush1.bf16.msra.mxu0 0
      %1925 = vmatprep.subr.bf16.mxu0 0
      %1926 = vmatpush1.bf16.msra.mxu0 %v1907
      %1927 = vmatprep.subr.bf16.mxu0 0
      %1928 = vmatpush1.bf16.msra.mxu0 %v1906
      %1929 = vmatprep.subr.bf16.mxu0 0
      %1930 = vmatpush2.bf16.msra.mxu0 0
      %1931 = vmatprep.subr.bf16.mxu0 0
      %1932 = vmatpush2.bf16.msra.mxu0 0
      %1933 = vmatprep.subr.bf16.mxu0 0
      %1934 = vmatpush2.bf16.msra.mxu0 0
      %1935 = vmatprep.subr.bf16.mxu0 0
      %1936 = vmatpush2.bf16.msra.mxu0 0
      %1937 = vmatprep.subr.bf16.mxu0 0
      %1938 = vmatpush2.bf16.msra.mxu0 0
      %1939 = vmatprep.subr.bf16.mxu0 0
      %1940 = vmatpush2.bf16.msra.mxu0 0
      %1941 = vmatprep.subr.bf16.mxu0 0
      %1942 = vmatpush2.bf16.msra.mxu0 0
      %1943 = vmatprep.subr.bf16.mxu0 0
      %1944 = vmatpush2.bf16.msra.mxu0 0
      %1945 = vmatprep.mubr.bf16.mxu0 0
      %1946 = vmatmul.mubr.bf16.gmra.mxu0 %v1911
      %v1947 = vpop.f32.mrf.mxu0
      %v1948 = vadd.f32 0.0, %v1947
      %v1949 = vpop.f32.mrf.mxu0
      %v1950 = vpop.f32.mrf.mxu0
      %v1951 = vadd.f32 0.0, %v1950
      %v1952 = vpop.f32.mrf.mxu0
      %1953 = vdwg.mxu0
      %v1954 = vadd.f32 %v1838, %v1948
      %v1955 = vadd.f32 %v1839, %v1951
      %s1956 = scalar_lea.vmem %s3, 72
      %v1957 = vld [vmem:[%s1956] sm:$0xf]
      %v1958 = vld [vmem:[%s1956 + $0x4] sm:$0x1]
      %v1961 = vunpack.c.l.b16 %v1957
      %v1962 = vunpack.c.l.b16 %v1958
      %v1963 = vpack.c.b16 %v1962, %v1961
      %v1965 = vsel %vm923, %v1963, 0
      %1967 = vmatprep.subr.bf16.mxu0 0
      %1968 = vmatpush1.bf16.msra.mxu0 0
      %1969 = vmatprep.subr.bf16.mxu0 0
      %1970 = vmatpush1.bf16.msra.mxu0 0
      %1971 = vmatprep.subr.bf16.mxu0 0
      %1972 = vmatpush1.bf16.msra.mxu0 0
      %1973 = vmatprep.subr.bf16.mxu0 0
      %1974 = vmatpush1.bf16.msra.mxu0 0
      %1975 = vmatprep.subr.bf16.mxu0 0
      %1976 = vmatpush1.bf16.msra.mxu0 %v915
      %1977 = vmatprep.subr.bf16.mxu0 0
      %1978 = vmatpush1.bf16.msra.mxu0 %v914
      %1979 = vmatprep.subr.bf16.mxu0 0
      %1980 = vmatpush1.bf16.msra.mxu0 %v913
      %1981 = vmatprep.subr.bf16.mxu0 0
      %1982 = vmatpush1.bf16.msra.mxu0 %v912
      %1983 = vmatprep.subr.bf16.mxu0 0
      %1984 = vmatpush2.bf16.msra.mxu0 0
      %1985 = vmatprep.subr.bf16.mxu0 0
      %1986 = vmatpush2.bf16.msra.mxu0 0
      %1987 = vmatprep.subr.bf16.mxu0 0
      %1988 = vmatpush2.bf16.msra.mxu0 0
      %1989 = vmatprep.subr.bf16.mxu0 0
      %1990 = vmatpush2.bf16.msra.mxu0 0
      %1991 = vmatprep.subr.bf16.mxu0 0
      %1992 = vmatpush2.bf16.msra.mxu0 0
      %1993 = vmatprep.subr.bf16.mxu0 0
      %1994 = vmatpush2.bf16.msra.mxu0 0
      %1995 = vmatprep.subr.bf16.mxu0 0
      %1996 = vmatpush2.bf16.msra.mxu0 0
      %1997 = vmatprep.subr.bf16.mxu0 0
      %1998 = vmatpush2.bf16.msra.mxu0 0
      %1999 = vmatprep.mubr.bf16.mxu0 0
      %2000 = vmatmul.mubr.bf16.gmra.mxu0 %v1965
      %v2001 = vpop.f32.mrf.mxu0
      %v2002 = vadd.f32 0.0, %v2001
      %v2003 = vpop.f32.mrf.mxu0
      %v2004 = vpop.f32.mrf.mxu0
      %v2005 = vadd.f32 0.0, %v2004
      %v2006 = vpop.f32.mrf.mxu0
      %2007 = vdwg.mxu0
      %v2008 = vpack.c.bf16 %v2005, %v2002
      %s2009 = scalar_lea.vmem %s4, 144
      %v2010 = vld [vmem:[%s2009] sm:$0xf]
      %v2011 = vld [vmem:[%s2009 + $0x4] sm:$0xf]
      %v2012 = vld [vmem:[%s2009 + $0x8] sm:$0xf]
      %v2013 = vld [vmem:[%s2009 + $0xc] sm:$0xf]
      %v2018 = vunpack.c.l.b16 %v2010
      %v2019 = vunpack.c.l.b16 %v2011
      %v2020 = vunpack.c.l.b16 %v2012
      %v2021 = vunpack.c.l.b16 %v2013
      %v2022 = vpack.c.b16 %v2019, %v2018
      %v2023 = vpack.c.b16 %v2021, %v2020
      %v2027 = vsel %vm1043, %v2008, 0
      %2029 = vmatprep.subr.bf16.mxu0 0
      %2030 = vmatpush1.bf16.msra.mxu0 0
      %2031 = vmatprep.subr.bf16.mxu0 0
      %2032 = vmatpush1.bf16.msra.mxu0 0
      %2033 = vmatprep.subr.bf16.mxu0 0
      %2034 = vmatpush1.bf16.msra.mxu0 0
      %2035 = vmatprep.subr.bf16.mxu0 0
      %2036 = vmatpush1.bf16.msra.mxu0 0
      %2037 = vmatprep.subr.bf16.mxu0 0
      %2038 = vmatpush1.bf16.msra.mxu0 0
      %2039 = vmatprep.subr.bf16.mxu0 0
      %2040 = vmatpush1.bf16.msra.mxu0 0
      %2041 = vmatprep.subr.bf16.mxu0 0
      %2042 = vmatpush1.bf16.msra.mxu0 %v2023
      %2043 = vmatprep.subr.bf16.mxu0 0
      %2044 = vmatpush1.bf16.msra.mxu0 %v2022
      %2045 = vmatprep.subr.bf16.mxu0 0
      %2046 = vmatpush2.bf16.msra.mxu0 0
      %2047 = vmatprep.subr.bf16.mxu0 0
      %2048 = vmatpush2.bf16.msra.mxu0 0
      %2049 = vmatprep.subr.bf16.mxu0 0
      %2050 = vmatpush2.bf16.msra.mxu0 0
      %2051 = vmatprep.subr.bf16.mxu0 0
      %2052 = vmatpush2.bf16.msra.mxu0 0
      %2053 = vmatprep.subr.bf16.mxu0 0
      %2054 = vmatpush2.bf16.msra.mxu0 0
      %2055 = vmatprep.subr.bf16.mxu0 0
      %2056 = vmatpush2.bf16.msra.mxu0 0
      %2057 = vmatprep.subr.bf16.mxu0 0
      %2058 = vmatpush2.bf16.msra.mxu0 0
      %2059 = vmatprep.subr.bf16.mxu0 0
      %2060 = vmatpush2.bf16.msra.mxu0 0
      %2061 = vmatprep.mubr.bf16.mxu0 0
      %2062 = vmatmul.mubr.bf16.gmra.mxu0 %v2027
      %v2063 = vpop.f32.mrf.mxu0
      %v2064 = vadd.f32 0.0, %v2063
      %v2065 = vpop.f32.mrf.mxu0
      %v2066 = vpop.f32.mrf.mxu0
      %v2067 = vadd.f32 0.0, %v2066
      %v2068 = vpop.f32.mrf.mxu0
      %2069 = vdwg.mxu0
      %v2070 = vadd.f32 %v1954, %v2064
      %v2071 = vadd.f32 %v1955, %v2067
      %s2072 = scalar_lea.vmem %s3, 80
      %v2073 = vld [vmem:[%s2072] sm:$0xf]
      %v2074 = vld [vmem:[%s2072 + $0x4] sm:$0x1]
      %v2077 = vunpack.c.l.b16 %v2073
      %v2078 = vunpack.c.l.b16 %v2074
      %v2079 = vpack.c.b16 %v2078, %v2077
      %v2081 = vsel %vm923, %v2079, 0
      %2083 = vmatprep.subr.bf16.mxu0 0
      %2084 = vmatpush1.bf16.msra.mxu0 0
      %2085 = vmatprep.subr.bf16.mxu0 0
      %2086 = vmatpush1.bf16.msra.mxu0 0
      %2087 = vmatprep.subr.bf16.mxu0 0
      %2088 = vmatpush1.bf16.msra.mxu0 0
      %2089 = vmatprep.subr.bf16.mxu0 0
      %2090 = vmatpush1.bf16.msra.mxu0 0
      %2091 = vmatprep.subr.bf16.mxu0 0
      %2092 = vmatpush1.bf16.msra.mxu0 %v915
      %2093 = vmatprep.subr.bf16.mxu0 0
      %2094 = vmatpush1.bf16.msra.mxu0 %v914
      %2095 = vmatprep.subr.bf16.mxu0 0
      %2096 = vmatpush1.bf16.msra.mxu0 %v913
      %2097 = vmatprep.subr.bf16.mxu0 0
      %2098 = vmatpush1.bf16.msra.mxu0 %v912
      %2099 = vmatprep.subr.bf16.mxu0 0
      %2100 = vmatpush2.bf16.msra.mxu0 0
      %2101 = vmatprep.subr.bf16.mxu0 0
      %2102 = vmatpush2.bf16.msra.mxu0 0
      %2103 = vmatprep.subr.bf16.mxu0 0
      %2104 = vmatpush2.bf16.msra.mxu0 0
      %2105 = vmatprep.subr.bf16.mxu0 0
      %2106 = vmatpush2.bf16.msra.mxu0 0
      %2107 = vmatprep.subr.bf16.mxu0 0
      %2108 = vmatpush2.bf16.msra.mxu0 0
      %2109 = vmatprep.subr.bf16.mxu0 0
      %2110 = vmatpush2.bf16.msra.mxu0 0
      %2111 = vmatprep.subr.bf16.mxu0 0
      %2112 = vmatpush2.bf16.msra.mxu0 0
      %2113 = vmatprep.subr.bf16.mxu0 0
      %2114 = vmatpush2.bf16.msra.mxu0 0
      %2115 = vmatprep.mubr.bf16.mxu0 0
      %2116 = vmatmul.mubr.bf16.gmra.mxu0 %v2081
      %v2117 = vpop.f32.mrf.mxu0
      %v2118 = vadd.f32 0.0, %v2117
      %v2119 = vpop.f32.mrf.mxu0
      %v2120 = vpop.f32.mrf.mxu0
      %v2121 = vadd.f32 0.0, %v2120
      %v2122 = vpop.f32.mrf.mxu0
      %2123 = vdwg.mxu0
      %v2124 = vpack.c.bf16 %v2121, %v2118
      %s2125 = scalar_lea.vmem %s4, 160
      %v2126 = vld [vmem:[%s2125] sm:$0xf]
      %v2127 = vld [vmem:[%s2125 + $0x4] sm:$0xf]
      %v2128 = vld [vmem:[%s2125 + $0x8] sm:$0xf]
      %v2129 = vld [vmem:[%s2125 + $0xc] sm:$0xf]
      %v2134 = vunpack.c.l.b16 %v2126
      %v2135 = vunpack.c.l.b16 %v2127
      %v2136 = vunpack.c.l.b16 %v2128
      %v2137 = vunpack.c.l.b16 %v2129
      %v2138 = vpack.c.b16 %v2135, %v2134
      %v2139 = vpack.c.b16 %v2137, %v2136
      %v2143 = vsel %vm1043, %v2124, 0
      %2145 = vmatprep.subr.bf16.mxu0 0
      %2146 = vmatpush1.bf16.msra.mxu0 0
      %2147 = vmatprep.subr.bf16.mxu0 0
      %2148 = vmatpush1.bf16.msra.mxu0 0
      %2149 = vmatprep.subr.bf16.mxu0 0
      %2150 = vmatpush1.bf16.msra.mxu0 0
      %2151 = vmatprep.subr.bf16.mxu0 0
      %2152 = vmatpush1.bf16.msra.mxu0 0
      %2153 = vmatprep.subr.bf16.mxu0 0
      %2154 = vmatpush1.bf16.msra.mxu0 0
      %2155 = vmatprep.subr.bf16.mxu0 0
      %2156 = vmatpush1.bf16.msra.mxu0 0
      %2157 = vmatprep.subr.bf16.mxu0 0
      %2158 = vmatpush1.bf16.msra.mxu0 %v2139
      %2159 = vmatprep.subr.bf16.mxu0 0
      %2160 = vmatpush1.bf16.msra.mxu0 %v2138
      %2161 = vmatprep.subr.bf16.mxu0 0
      %2162 = vmatpush2.bf16.msra.mxu0 0
      %2163 = vmatprep.subr.bf16.mxu0 0
      %2164 = vmatpush2.bf16.msra.mxu0 0
      %2165 = vmatprep.subr.bf16.mxu0 0
      %2166 = vmatpush2.bf16.msra.mxu0 0
      %2167 = vmatprep.subr.bf16.mxu0 0
      %2168 = vmatpush2.bf16.msra.mxu0 0
      %2169 = vmatprep.subr.bf16.mxu0 0
      %2170 = vmatpush2.bf16.msra.mxu0 0
      %2171 = vmatprep.subr.bf16.mxu0 0
      %2172 = vmatpush2.bf16.msra.mxu0 0
      %2173 = vmatprep.subr.bf16.mxu0 0
      %2174 = vmatpush2.bf16.msra.mxu0 0
      %2175 = vmatprep.subr.bf16.mxu0 0
      %2176 = vmatpush2.bf16.msra.mxu0 0
      %2177 = vmatprep.mubr.bf16.mxu0 0
      %2178 = vmatmul.mubr.bf16.gmra.mxu0 %v2143
      %v2179 = vpop.f32.mrf.mxu0
      %v2180 = vadd.f32 0.0, %v2179
      %v2181 = vpop.f32.mrf.mxu0
      %v2182 = vpop.f32.mrf.mxu0
      %v2183 = vadd.f32 0.0, %v2182
      %v2184 = vpop.f32.mrf.mxu0
      %2185 = vdwg.mxu0
      %v2186 = vadd.f32 %v2070, %v2180
      %v2187 = vadd.f32 %v2071, %v2183
      %s2188 = scalar_lea.vmem %s3, 88
      %v2189 = vld [vmem:[%s2188] sm:$0xf]
      %v2190 = vld [vmem:[%s2188 + $0x4] sm:$0x1]
      %v2193 = vunpack.c.l.b16 %v2189
      %v2194 = vunpack.c.l.b16 %v2190
      %v2195 = vpack.c.b16 %v2194, %v2193
      %v2197 = vsel %vm923, %v2195, 0
      %2199 = vmatprep.subr.bf16.mxu0 0
      %2200 = vmatpush1.bf16.msra.mxu0 0
      %2201 = vmatprep.subr.bf16.mxu0 0
      %2202 = vmatpush1.bf16.msra.mxu0 0
      %2203 = vmatprep.subr.bf16.mxu0 0
      %2204 = vmatpush1.bf16.msra.mxu0 0
      %2205 = vmatprep.subr.bf16.mxu0 0
      %2206 = vmatpush1.bf16.msra.mxu0 0
      %2207 = vmatprep.subr.bf16.mxu0 0
      %2208 = vmatpush1.bf16.msra.mxu0 %v915
      %2209 = vmatprep.subr.bf16.mxu0 0
      %2210 = vmatpush1.bf16.msra.mxu0 %v914
      %2211 = vmatprep.subr.bf16.mxu0 0
      %2212 = vmatpush1.bf16.msra.mxu0 %v913
      %2213 = vmatprep.subr.bf16.mxu0 0
      %2214 = vmatpush1.bf16.msra.mxu0 %v912
      %2215 = vmatprep.subr.bf16.mxu0 0
      %2216 = vmatpush2.bf16.msra.mxu0 0
      %2217 = vmatprep.subr.bf16.mxu0 0
      %2218 = vmatpush2.bf16.msra.mxu0 0
      %2219 = vmatprep.subr.bf16.mxu0 0
      %2220 = vmatpush2.bf16.msra.mxu0 0
      %2221 = vmatprep.subr.bf16.mxu0 0
      %2222 = vmatpush2.bf16.msra.mxu0 0
      %2223 = vmatprep.subr.bf16.mxu0 0
      %2224 = vmatpush2.bf16.msra.mxu0 0
      %2225 = vmatprep.subr.bf16.mxu0 0
      %2226 = vmatpush2.bf16.msra.mxu0 0
      %2227 = vmatprep.subr.bf16.mxu0 0
      %2228 = vmatpush2.bf16.msra.mxu0 0
      %2229 = vmatprep.subr.bf16.mxu0 0
      %2230 = vmatpush2.bf16.msra.mxu0 0
      %2231 = vmatprep.mubr.bf16.mxu0 0
      %2232 = vmatmul.mubr.bf16.gmra.mxu0 %v2197
      %v2233 = vpop.f32.mrf.mxu0
      %v2234 = vadd.f32 0.0, %v2233
      %v2235 = vpop.f32.mrf.mxu0
      %v2236 = vpop.f32.mrf.mxu0
      %v2237 = vadd.f32 0.0, %v2236
      %v2238 = vpop.f32.mrf.mxu0
      %2239 = vdwg.mxu0
      %v2240 = vpack.c.bf16 %v2237, %v2234
      %s2241 = scalar_lea.vmem %s4, 176
      %v2242 = vld [vmem:[%s2241] sm:$0xf]
      %v2243 = vld [vmem:[%s2241 + $0x4] sm:$0xf]
      %v2244 = vld [vmem:[%s2241 + $0x8] sm:$0xf]
      %v2245 = vld [vmem:[%s2241 + $0xc] sm:$0xf]
      %v2250 = vunpack.c.l.b16 %v2242
      %v2251 = vunpack.c.l.b16 %v2243
      %v2252 = vunpack.c.l.b16 %v2244
      %v2253 = vunpack.c.l.b16 %v2245
      %v2254 = vpack.c.b16 %v2251, %v2250
      %v2255 = vpack.c.b16 %v2253, %v2252
      %v2259 = vsel %vm1043, %v2240, 0
      %2261 = vmatprep.subr.bf16.mxu0 0
      %2262 = vmatpush1.bf16.msra.mxu0 0
      %2263 = vmatprep.subr.bf16.mxu0 0
      %2264 = vmatpush1.bf16.msra.mxu0 0
      %2265 = vmatprep.subr.bf16.mxu0 0
      %2266 = vmatpush1.bf16.msra.mxu0 0
      %2267 = vmatprep.subr.bf16.mxu0 0
      %2268 = vmatpush1.bf16.msra.mxu0 0
      %2269 = vmatprep.subr.bf16.mxu0 0
      %2270 = vmatpush1.bf16.msra.mxu0 0
      %2271 = vmatprep.subr.bf16.mxu0 0
      %2272 = vmatpush1.bf16.msra.mxu0 0
      %2273 = vmatprep.subr.bf16.mxu0 0
      %2274 = vmatpush1.bf16.msra.mxu0 %v2255
      %2275 = vmatprep.subr.bf16.mxu0 0
      %2276 = vmatpush1.bf16.msra.mxu0 %v2254
      %2277 = vmatprep.subr.bf16.mxu0 0
      %2278 = vmatpush2.bf16.msra.mxu0 0
      %2279 = vmatprep.subr.bf16.mxu0 0
      %2280 = vmatpush2.bf16.msra.mxu0 0
      %2281 = vmatprep.subr.bf16.mxu0 0
      %2282 = vmatpush2.bf16.msra.mxu0 0
      %2283 = vmatprep.subr.bf16.mxu0 0
      %2284 = vmatpush2.bf16.msra.mxu0 0
      %2285 = vmatprep.subr.bf16.mxu0 0
      %2286 = vmatpush2.bf16.msra.mxu0 0
      %2287 = vmatprep.subr.bf16.mxu0 0
      %2288 = vmatpush2.bf16.msra.mxu0 0
      %2289 = vmatprep.subr.bf16.mxu0 0
      %2290 = vmatpush2.bf16.msra.mxu0 0
      %2291 = vmatprep.subr.bf16.mxu0 0
      %2292 = vmatpush2.bf16.msra.mxu0 0
      %2293 = vmatprep.mubr.bf16.mxu0 0
      %2294 = vmatmul.mubr.bf16.gmra.mxu0 %v2259
      %v2295 = vpop.f32.mrf.mxu0
      %v2296 = vadd.f32 0.0, %v2295
      %v2297 = vpop.f32.mrf.mxu0
      %v2298 = vpop.f32.mrf.mxu0
      %v2299 = vadd.f32 0.0, %v2298
      %v2300 = vpop.f32.mrf.mxu0
      %2301 = vdwg.mxu0
      %v2302 = vadd.f32 %v2186, %v2296
      %v2303 = vadd.f32 %v2187, %v2299
      %s2304 = scalar_lea.vmem %s3, 96
      %v2305 = vld [vmem:[%s2304] sm:$0xf]
      %v2306 = vld [vmem:[%s2304 + $0x4] sm:$0x1]
      %v2309 = vunpack.c.l.b16 %v2305
      %v2310 = vunpack.c.l.b16 %v2306
      %v2311 = vpack.c.b16 %v2310, %v2309
      %v2313 = vsel %vm923, %v2311, 0
      %2315 = vmatprep.subr.bf16.mxu0 0
      %2316 = vmatpush1.bf16.msra.mxu0 0
      %2317 = vmatprep.subr.bf16.mxu0 0
      %2318 = vmatpush1.bf16.msra.mxu0 0
      %2319 = vmatprep.subr.bf16.mxu0 0
      %2320 = vmatpush1.bf16.msra.mxu0 0
      %2321 = vmatprep.subr.bf16.mxu0 0
      %2322 = vmatpush1.bf16.msra.mxu0 0
      %2323 = vmatprep.subr.bf16.mxu0 0
      %2324 = vmatpush1.bf16.msra.mxu0 %v915
      %2325 = vmatprep.subr.bf16.mxu0 0
      %2326 = vmatpush1.bf16.msra.mxu0 %v914
      %2327 = vmatprep.subr.bf16.mxu0 0
      %2328 = vmatpush1.bf16.msra.mxu0 %v913
      %2329 = vmatprep.subr.bf16.mxu0 0
      %2330 = vmatpush1.bf16.msra.mxu0 %v912
      %2331 = vmatprep.subr.bf16.mxu0 0
      %2332 = vmatpush2.bf16.msra.mxu0 0
      %2333 = vmatprep.subr.bf16.mxu0 0
      %2334 = vmatpush2.bf16.msra.mxu0 0
      %2335 = vmatprep.subr.bf16.mxu0 0
      %2336 = vmatpush2.bf16.msra.mxu0 0
      %2337 = vmatprep.subr.bf16.mxu0 0
      %2338 = vmatpush2.bf16.msra.mxu0 0
      %2339 = vmatprep.subr.bf16.mxu0 0
      %2340 = vmatpush2.bf16.msra.mxu0 0
      %2341 = vmatprep.subr.bf16.mxu0 0
      %2342 = vmatpush2.bf16.msra.mxu0 0
      %2343 = vmatprep.subr.bf16.mxu0 0
      %2344 = vmatpush2.bf16.msra.mxu0 0
      %2345 = vmatprep.subr.bf16.mxu0 0
      %2346 = vmatpush2.bf16.msra.mxu0 0
      %2347 = vmatprep.mubr.bf16.mxu0 0
      %2348 = vmatmul.mubr.bf16.gmra.mxu0 %v2313
      %v2349 = vpop.f32.mrf.mxu0
      %v2350 = vadd.f32 0.0, %v2349
      %v2351 = vpop.f32.mrf.mxu0
      %v2352 = vpop.f32.mrf.mxu0
      %v2353 = vadd.f32 0.0, %v2352
      %v2354 = vpop.f32.mrf.mxu0
      %2355 = vdwg.mxu0
      %v2356 = vpack.c.bf16 %v2353, %v2350
      %s2357 = scalar_lea.vmem %s4, 192
      %v2358 = vld [vmem:[%s2357] sm:$0xf]
      %v2359 = vld [vmem:[%s2357 + $0x4] sm:$0xf]
      %v2360 = vld [vmem:[%s2357 + $0x8] sm:$0xf]
      %v2361 = vld [vmem:[%s2357 + $0xc] sm:$0xf]
      %v2366 = vunpack.c.l.b16 %v2358
      %v2367 = vunpack.c.l.b16 %v2359
      %v2368 = vunpack.c.l.b16 %v2360
      %v2369 = vunpack.c.l.b16 %v2361
      %v2370 = vpack.c.b16 %v2367, %v2366
      %v2371 = vpack.c.b16 %v2369, %v2368
      %v2375 = vsel %vm1043, %v2356, 0
      %2377 = vmatprep.subr.bf16.mxu0 0
      %2378 = vmatpush1.bf16.msra.mxu0 0
      %2379 = vmatprep.subr.bf16.mxu0 0
      %2380 = vmatpush1.bf16.msra.mxu0 0
      %2381 = vmatprep.subr.bf16.mxu0 0
      %2382 = vmatpush1.bf16.msra.mxu0 0
      %2383 = vmatprep.subr.bf16.mxu0 0
      %2384 = vmatpush1.bf16.msra.mxu0 0
      %2385 = vmatprep.subr.bf16.mxu0 0
      %2386 = vmatpush1.bf16.msra.mxu0 0
      %2387 = vmatprep.subr.bf16.mxu0 0
      %2388 = vmatpush1.bf16.msra.mxu0 0
      %2389 = vmatprep.subr.bf16.mxu0 0
      %2390 = vmatpush1.bf16.msra.mxu0 %v2371
      %2391 = vmatprep.subr.bf16.mxu0 0
      %2392 = vmatpush1.bf16.msra.mxu0 %v2370
      %2393 = vmatprep.subr.bf16.mxu0 0
      %2394 = vmatpush2.bf16.msra.mxu0 0
      %2395 = vmatprep.subr.bf16.mxu0 0
      %2396 = vmatpush2.bf16.msra.mxu0 0
      %2397 = vmatprep.subr.bf16.mxu0 0
      %2398 = vmatpush2.bf16.msra.mxu0 0
      %2399 = vmatprep.subr.bf16.mxu0 0
      %2400 = vmatpush2.bf16.msra.mxu0 0
      %2401 = vmatprep.subr.bf16.mxu0 0
      %2402 = vmatpush2.bf16.msra.mxu0 0
      %2403 = vmatprep.subr.bf16.mxu0 0
      %2404 = vmatpush2.bf16.msra.mxu0 0
      %2405 = vmatprep.subr.bf16.mxu0 0
      %2406 = vmatpush2.bf16.msra.mxu0 0
      %2407 = vmatprep.subr.bf16.mxu0 0
      %2408 = vmatpush2.bf16.msra.mxu0 0
      %2409 = vmatprep.mubr.bf16.mxu0 0
      %2410 = vmatmul.mubr.bf16.gmra.mxu0 %v2375
      %v2411 = vpop.f32.mrf.mxu0
      %v2412 = vadd.f32 0.0, %v2411
      %v2413 = vpop.f32.mrf.mxu0
      %v2414 = vpop.f32.mrf.mxu0
      %v2415 = vadd.f32 0.0, %v2414
      %v2416 = vpop.f32.mrf.mxu0
      %2417 = vdwg.mxu0
      %v2418 = vadd.f32 %v2302, %v2412
      %v2419 = vadd.f32 %v2303, %v2415
      %s2420 = scalar_lea.vmem %s3, 104
      %v2421 = vld [vmem:[%s2420] sm:$0xf]
      %v2422 = vld [vmem:[%s2420 + $0x4] sm:$0x1]
      %v2425 = vunpack.c.l.b16 %v2421
      %v2426 = vunpack.c.l.b16 %v2422
      %v2427 = vpack.c.b16 %v2426, %v2425
      %v2429 = vsel %vm923, %v2427, 0
      %2431 = vmatprep.subr.bf16.mxu0 0
      %2432 = vmatpush1.bf16.msra.mxu0 0
      %2433 = vmatprep.subr.bf16.mxu0 0
      %2434 = vmatpush1.bf16.msra.mxu0 0
      %2435 = vmatprep.subr.bf16.mxu0 0
      %2436 = vmatpush1.bf16.msra.mxu0 0
      %2437 = vmatprep.subr.bf16.mxu0 0
      %2438 = vmatpush1.bf16.msra.mxu0 0
      %2439 = vmatprep.subr.bf16.mxu0 0
      %2440 = vmatpush1.bf16.msra.mxu0 %v915
      %2441 = vmatprep.subr.bf16.mxu0 0
      %2442 = vmatpush1.bf16.msra.mxu0 %v914
      %2443 = vmatprep.subr.bf16.mxu0 0
      %2444 = vmatpush1.bf16.msra.mxu0 %v913
      %2445 = vmatprep.subr.bf16.mxu0 0
      %2446 = vmatpush1.bf16.msra.mxu0 %v912
      %2447 = vmatprep.subr.bf16.mxu0 0
      %2448 = vmatpush2.bf16.msra.mxu0 0
      %2449 = vmatprep.subr.bf16.mxu0 0
      %2450 = vmatpush2.bf16.msra.mxu0 0
      %2451 = vmatprep.subr.bf16.mxu0 0
      %2452 = vmatpush2.bf16.msra.mxu0 0
      %2453 = vmatprep.subr.bf16.mxu0 0
      %2454 = vmatpush2.bf16.msra.mxu0 0
      %2455 = vmatprep.subr.bf16.mxu0 0
      %2456 = vmatpush2.bf16.msra.mxu0 0
      %2457 = vmatprep.subr.bf16.mxu0 0
      %2458 = vmatpush2.bf16.msra.mxu0 0
      %2459 = vmatprep.subr.bf16.mxu0 0
      %2460 = vmatpush2.bf16.msra.mxu0 0
      %2461 = vmatprep.subr.bf16.mxu0 0
      %2462 = vmatpush2.bf16.msra.mxu0 0
      %2463 = vmatprep.mubr.bf16.mxu0 0
      %2464 = vmatmul.mubr.bf16.gmra.mxu0 %v2429
      %v2465 = vpop.f32.mrf.mxu0
      %v2466 = vadd.f32 0.0, %v2465
      %v2467 = vpop.f32.mrf.mxu0
      %v2468 = vpop.f32.mrf.mxu0
      %v2469 = vadd.f32 0.0, %v2468
      %v2470 = vpop.f32.mrf.mxu0
      %2471 = vdwg.mxu0
      %v2472 = vpack.c.bf16 %v2469, %v2466
      %s2473 = scalar_lea.vmem %s4, 208
      %v2474 = vld [vmem:[%s2473] sm:$0xf]
      %v2475 = vld [vmem:[%s2473 + $0x4] sm:$0xf]
      %v2476 = vld [vmem:[%s2473 + $0x8] sm:$0xf]
      %v2477 = vld [vmem:[%s2473 + $0xc] sm:$0xf]
      %v2482 = vunpack.c.l.b16 %v2474
      %v2483 = vunpack.c.l.b16 %v2475
      %v2484 = vunpack.c.l.b16 %v2476
      %v2485 = vunpack.c.l.b16 %v2477
      %v2486 = vpack.c.b16 %v2483, %v2482
      %v2487 = vpack.c.b16 %v2485, %v2484
      %v2491 = vsel %vm1043, %v2472, 0
      %2493 = vmatprep.subr.bf16.mxu0 0
      %2494 = vmatpush1.bf16.msra.mxu0 0
      %2495 = vmatprep.subr.bf16.mxu0 0
      %2496 = vmatpush1.bf16.msra.mxu0 0
      %2497 = vmatprep.subr.bf16.mxu0 0
      %2498 = vmatpush1.bf16.msra.mxu0 0
      %2499 = vmatprep.subr.bf16.mxu0 0
      %2500 = vmatpush1.bf16.msra.mxu0 0
      %2501 = vmatprep.subr.bf16.mxu0 0
      %2502 = vmatpush1.bf16.msra.mxu0 0
      %2503 = vmatprep.subr.bf16.mxu0 0
      %2504 = vmatpush1.bf16.msra.mxu0 0
      %2505 = vmatprep.subr.bf16.mxu0 0
      %2506 = vmatpush1.bf16.msra.mxu0 %v2487
      %2507 = vmatprep.subr.bf16.mxu0 0
      %2508 = vmatpush1.bf16.msra.mxu0 %v2486
      %2509 = vmatprep.subr.bf16.mxu0 0
      %2510 = vmatpush2.bf16.msra.mxu0 0
      %2511 = vmatprep.subr.bf16.mxu0 0
      %2512 = vmatpush2.bf16.msra.mxu0 0
      %2513 = vmatprep.subr.bf16.mxu0 0
      %2514 = vmatpush2.bf16.msra.mxu0 0
      %2515 = vmatprep.subr.bf16.mxu0 0
      %2516 = vmatpush2.bf16.msra.mxu0 0
      %2517 = vmatprep.subr.bf16.mxu0 0
      %2518 = vmatpush2.bf16.msra.mxu0 0
      %2519 = vmatprep.subr.bf16.mxu0 0
      %2520 = vmatpush2.bf16.msra.mxu0 0
      %2521 = vmatprep.subr.bf16.mxu0 0
      %2522 = vmatpush2.bf16.msra.mxu0 0
      %2523 = vmatprep.subr.bf16.mxu0 0
      %2524 = vmatpush2.bf16.msra.mxu0 0
      %2525 = vmatprep.mubr.bf16.mxu0 0
      %2526 = vmatmul.mubr.bf16.gmra.mxu0 %v2491
      %v2527 = vpop.f32.mrf.mxu0
      %v2528 = vadd.f32 0.0, %v2527
      %v2529 = vpop.f32.mrf.mxu0
      %v2530 = vpop.f32.mrf.mxu0
      %v2531 = vadd.f32 0.0, %v2530
      %v2532 = vpop.f32.mrf.mxu0
      %2533 = vdwg.mxu0
      %v2534 = vadd.f32 %v2418, %v2528
      %v2535 = vadd.f32 %v2419, %v2531
      %s2536 = scalar_lea.vmem %s3, 112
      %v2537 = vld [vmem:[%s2536] sm:$0xf]
      %v2538 = vld [vmem:[%s2536 + $0x4] sm:$0x1]
      %v2541 = vunpack.c.l.b16 %v2537
      %v2542 = vunpack.c.l.b16 %v2538
      %v2543 = vpack.c.b16 %v2542, %v2541
      %v2545 = vsel %vm923, %v2543, 0
      %2547 = vmatprep.subr.bf16.mxu0 0
      %2548 = vmatpush1.bf16.msra.mxu0 0
      %2549 = vmatprep.subr.bf16.mxu0 0
      %2550 = vmatpush1.bf16.msra.mxu0 0
      %2551 = vmatprep.subr.bf16.mxu0 0
      %2552 = vmatpush1.bf16.msra.mxu0 0
      %2553 = vmatprep.subr.bf16.mxu0 0
      %2554 = vmatpush1.bf16.msra.mxu0 0
      %2555 = vmatprep.subr.bf16.mxu0 0
      %2556 = vmatpush1.bf16.msra.mxu0 %v915
      %2557 = vmatprep.subr.bf16.mxu0 0
      %2558 = vmatpush1.bf16.msra.mxu0 %v914
      %2559 = vmatprep.subr.bf16.mxu0 0
      %2560 = vmatpush1.bf16.msra.mxu0 %v913
      %2561 = vmatprep.subr.bf16.mxu0 0
      %2562 = vmatpush1.bf16.msra.mxu0 %v912
      %2563 = vmatprep.subr.bf16.mxu0 0
      %2564 = vmatpush2.bf16.msra.mxu0 0
      %2565 = vmatprep.subr.bf16.mxu0 0
      %2566 = vmatpush2.bf16.msra.mxu0 0
      %2567 = vmatprep.subr.bf16.mxu0 0
      %2568 = vmatpush2.bf16.msra.mxu0 0
      %2569 = vmatprep.subr.bf16.mxu0 0
      %2570 = vmatpush2.bf16.msra.mxu0 0
      %2571 = vmatprep.subr.bf16.mxu0 0
      %2572 = vmatpush2.bf16.msra.mxu0 0
      %2573 = vmatprep.subr.bf16.mxu0 0
      %2574 = vmatpush2.bf16.msra.mxu0 0
      %2575 = vmatprep.subr.bf16.mxu0 0
      %2576 = vmatpush2.bf16.msra.mxu0 0
      %2577 = vmatprep.subr.bf16.mxu0 0
      %2578 = vmatpush2.bf16.msra.mxu0 0
      %2579 = vmatprep.mubr.bf16.mxu0 0
      %2580 = vmatmul.mubr.bf16.gmra.mxu0 %v2545
      %v2581 = vpop.f32.mrf.mxu0
      %v2582 = vadd.f32 0.0, %v2581
      %v2583 = vpop.f32.mrf.mxu0
      %v2584 = vpop.f32.mrf.mxu0
      %v2585 = vadd.f32 0.0, %v2584
      %v2586 = vpop.f32.mrf.mxu0
      %2587 = vdwg.mxu0
      %v2588 = vpack.c.bf16 %v2585, %v2582
      %s2589 = scalar_lea.vmem %s4, 224
      %v2590 = vld [vmem:[%s2589] sm:$0xf]
      %v2591 = vld [vmem:[%s2589 + $0x4] sm:$0xf]
      %v2592 = vld [vmem:[%s2589 + $0x8] sm:$0xf]
      %v2593 = vld [vmem:[%s2589 + $0xc] sm:$0xf]
      %v2598 = vunpack.c.l.b16 %v2590
      %v2599 = vunpack.c.l.b16 %v2591
      %v2600 = vunpack.c.l.b16 %v2592
      %v2601 = vunpack.c.l.b16 %v2593
      %v2602 = vpack.c.b16 %v2599, %v2598
      %v2603 = vpack.c.b16 %v2601, %v2600
      %v2607 = vsel %vm1043, %v2588, 0
      %2609 = vmatprep.subr.bf16.mxu0 0
      %2610 = vmatpush1.bf16.msra.mxu0 0
      %2611 = vmatprep.subr.bf16.mxu0 0
      %2612 = vmatpush1.bf16.msra.mxu0 0
      %2613 = vmatprep.subr.bf16.mxu0 0
      %2614 = vmatpush1.bf16.msra.mxu0 0
      %2615 = vmatprep.subr.bf16.mxu0 0
      %2616 = vmatpush1.bf16.msra.mxu0 0
      %2617 = vmatprep.subr.bf16.mxu0 0
      %2618 = vmatpush1.bf16.msra.mxu0 0
      %2619 = vmatprep.subr.bf16.mxu0 0
      %2620 = vmatpush1.bf16.msra.mxu0 0
      %2621 = vmatprep.subr.bf16.mxu0 0
      %2622 = vmatpush1.bf16.msra.mxu0 %v2603
      %2623 = vmatprep.subr.bf16.mxu0 0
      %2624 = vmatpush1.bf16.msra.mxu0 %v2602
      %2625 = vmatprep.subr.bf16.mxu0 0
      %2626 = vmatpush2.bf16.msra.mxu0 0
      %2627 = vmatprep.subr.bf16.mxu0 0
      %2628 = vmatpush2.bf16.msra.mxu0 0
      %2629 = vmatprep.subr.bf16.mxu0 0
      %2630 = vmatpush2.bf16.msra.mxu0 0
      %2631 = vmatprep.subr.bf16.mxu0 0
      %2632 = vmatpush2.bf16.msra.mxu0 0
      %2633 = vmatprep.subr.bf16.mxu0 0
      %2634 = vmatpush2.bf16.msra.mxu0 0
      %2635 = vmatprep.subr.bf16.mxu0 0
      %2636 = vmatpush2.bf16.msra.mxu0 0
      %2637 = vmatprep.subr.bf16.mxu0 0
      %2638 = vmatpush2.bf16.msra.mxu0 0
      %2639 = vmatprep.subr.bf16.mxu0 0
      %2640 = vmatpush2.bf16.msra.mxu0 0
      %2641 = vmatprep.mubr.bf16.mxu0 0
      %2642 = vmatmul.mubr.bf16.gmra.mxu0 %v2607
      %v2643 = vpop.f32.mrf.mxu0
      %v2644 = vadd.f32 0.0, %v2643
      %v2645 = vpop.f32.mrf.mxu0
      %v2646 = vpop.f32.mrf.mxu0
      %v2647 = vadd.f32 0.0, %v2646
      %v2648 = vpop.f32.mrf.mxu0
      %2649 = vdwg.mxu0
      %v2650 = vadd.f32 %v2534, %v2644
      %v2651 = vadd.f32 %v2535, %v2647
      %s2652 = scalar_lea.vmem %s3, 120
      %v2653 = vld [vmem:[%s2652] sm:$0xf]
      %v2654 = vld [vmem:[%s2652 + $0x4] sm:$0x1]
      %v2657 = vunpack.c.l.b16 %v2653
      %v2658 = vunpack.c.l.b16 %v2654
      %v2659 = vpack.c.b16 %v2658, %v2657
      %v2661 = vsel %vm923, %v2659, 0
      %2663 = vmatprep.subr.bf16.mxu0 0
      %2664 = vmatpush1.bf16.msra.mxu0 0
      %2665 = vmatprep.subr.bf16.mxu0 0
      %2666 = vmatpush1.bf16.msra.mxu0 0
      %2667 = vmatprep.subr.bf16.mxu0 0
      %2668 = vmatpush1.bf16.msra.mxu0 0
      %2669 = vmatprep.subr.bf16.mxu0 0
      %2670 = vmatpush1.bf16.msra.mxu0 0
      %2671 = vmatprep.subr.bf16.mxu0 0
      %2672 = vmatpush1.bf16.msra.mxu0 %v915
      %2673 = vmatprep.subr.bf16.mxu0 0
      %2674 = vmatpush1.bf16.msra.mxu0 %v914
      %2675 = vmatprep.subr.bf16.mxu0 0
      %2676 = vmatpush1.bf16.msra.mxu0 %v913
      %2677 = vmatprep.subr.bf16.mxu0 0
      %2678 = vmatpush1.bf16.msra.mxu0 %v912
      %2679 = vmatprep.subr.bf16.mxu0 0
      %2680 = vmatpush2.bf16.msra.mxu0 0
      %2681 = vmatprep.subr.bf16.mxu0 0
      %2682 = vmatpush2.bf16.msra.mxu0 0
      %2683 = vmatprep.subr.bf16.mxu0 0
      %2684 = vmatpush2.bf16.msra.mxu0 0
      %2685 = vmatprep.subr.bf16.mxu0 0
      %2686 = vmatpush2.bf16.msra.mxu0 0
      %2687 = vmatprep.subr.bf16.mxu0 0
      %2688 = vmatpush2.bf16.msra.mxu0 0
      %2689 = vmatprep.subr.bf16.mxu0 0
      %2690 = vmatpush2.bf16.msra.mxu0 0
      %2691 = vmatprep.subr.bf16.mxu0 0
      %2692 = vmatpush2.bf16.msra.mxu0 0
      %2693 = vmatprep.subr.bf16.mxu0 0
      %2694 = vmatpush2.bf16.msra.mxu0 0
      %2695 = vmatprep.mubr.bf16.mxu0 0
      %2696 = vmatmul.mubr.bf16.gmra.mxu0 %v2661
      %v2697 = vpop.f32.mrf.mxu0
      %v2698 = vadd.f32 0.0, %v2697
      %v2699 = vpop.f32.mrf.mxu0
      %v2700 = vpop.f32.mrf.mxu0
      %v2701 = vadd.f32 0.0, %v2700
      %v2702 = vpop.f32.mrf.mxu0
      %2703 = vdwg.mxu0
      %v2704 = vpack.c.bf16 %v2701, %v2698
      %s2705 = scalar_lea.vmem %s4, 240
      %v2706 = vld [vmem:[%s2705] sm:$0xf]
      %v2707 = vld [vmem:[%s2705 + $0x4] sm:$0xf]
      %v2708 = vld [vmem:[%s2705 + $0x8] sm:$0xf]
      %v2709 = vld [vmem:[%s2705 + $0xc] sm:$0xf]
      %v2714 = vunpack.c.l.b16 %v2706
      %v2715 = vunpack.c.l.b16 %v2707
      %v2716 = vunpack.c.l.b16 %v2708
      %v2717 = vunpack.c.l.b16 %v2709
      %v2718 = vpack.c.b16 %v2715, %v2714
      %v2719 = vpack.c.b16 %v2717, %v2716
      %v2723 = vsel %vm1043, %v2704, 0
      %2725 = vmatprep.subr.bf16.mxu0 0
      %2726 = vmatpush1.bf16.msra.mxu0 0
      %2727 = vmatprep.subr.bf16.mxu0 0
      %2728 = vmatpush1.bf16.msra.mxu0 0
      %2729 = vmatprep.subr.bf16.mxu0 0
      %2730 = vmatpush1.bf16.msra.mxu0 0
      %2731 = vmatprep.subr.bf16.mxu0 0
      %2732 = vmatpush1.bf16.msra.mxu0 0
      %2733 = vmatprep.subr.bf16.mxu0 0
      %2734 = vmatpush1.bf16.msra.mxu0 0
      %2735 = vmatprep.subr.bf16.mxu0 0
      %2736 = vmatpush1.bf16.msra.mxu0 0
      %2737 = vmatprep.subr.bf16.mxu0 0
      %2738 = vmatpush1.bf16.msra.mxu0 %v2719
      %2739 = vmatprep.subr.bf16.mxu0 0
      %2740 = vmatpush1.bf16.msra.mxu0 %v2718
      %2741 = vmatprep.subr.bf16.mxu0 0
      %2742 = vmatpush2.bf16.msra.mxu0 0
      %2743 = vmatprep.subr.bf16.mxu0 0
      %2744 = vmatpush2.bf16.msra.mxu0 0
      %2745 = vmatprep.subr.bf16.mxu0 0
      %2746 = vmatpush2.bf16.msra.mxu0 0
      %2747 = vmatprep.subr.bf16.mxu0 0
      %2748 = vmatpush2.bf16.msra.mxu0 0
      %2749 = vmatprep.subr.bf16.mxu0 0
      %2750 = vmatpush2.bf16.msra.mxu0 0
      %2751 = vmatprep.subr.bf16.mxu0 0
      %2752 = vmatpush2.bf16.msra.mxu0 0
      %2753 = vmatprep.subr.bf16.mxu0 0
      %2754 = vmatpush2.bf16.msra.mxu0 0
      %2755 = vmatprep.subr.bf16.mxu0 0
      %2756 = vmatpush2.bf16.msra.mxu0 0
      %2757 = vmatprep.mubr.bf16.mxu0 0
      %2758 = vmatmul.mubr.bf16.gmra.mxu0 %v2723
      %v2759 = vpop.f32.mrf.mxu0
      %v2760 = vadd.f32 0.0, %v2759
      %v2761 = vpop.f32.mrf.mxu0
      %v2762 = vpop.f32.mrf.mxu0
      %v2763 = vadd.f32 0.0, %v2762
      %v2764 = vpop.f32.mrf.mxu0
      %2765 = vdwg.mxu0
      %v2766 = vadd.f32 %v2650, %v2760
      %v2767 = vadd.f32 %v2651, %v2763
      %v2768 = vld [vmem:[%s5] sm:$0x1]
      %v2770 = vlaneseq
      %v2771 = vshrl.u32 %v2770, 7
      %v2772 = vsub.s32 0, %v2771
      %v2773 = vrot.slane %v2768, %v2772
      %v2775 = vadd.f32 %v2766, %v2773
      %v2776 = vadd.f32 %v2767, %v2773
      %v2777 = vmax.f32 %v2775, 0.0
      %v2778 = vmax.f32 %v2776, 0.0
      %v2779 = vpack.c.bf16 %v2778, %v2777
      %v2780 = vld [vmem:[%s6] sm:$0x1]
      %vm2781 = vcmask 72704
      %v2783 = vsel %vm2781, %v2780, 0
      %vm2785 = vcmask 1043456
      %vm2786 = vcmask 1044480
      %v2787 = vsel %vm2785, 4294967295, 65535
      %v2788 = vsel %vm2786, %v2787, 0
      %v2790 = vand.u32 %v2779, %v2788
      %2792 = vmatprep.subr.bf16.mxu0 0
      %2793 = vmatpush1.bf16.msra.mxu0 0
      %2794 = vmatprep.subr.bf16.mxu0 0
      %2795 = vmatpush1.bf16.msra.mxu0 0
      %2796 = vmatprep.subr.bf16.mxu0 0
      %2797 = vmatpush1.bf16.msra.mxu0 0
      %2798 = vmatprep.subr.bf16.mxu0 0
      %2799 = vmatpush1.bf16.msra.mxu0 0
      %2800 = vmatprep.subr.bf16.mxu0 0
      %2801 = vmatpush1.bf16.msra.mxu0 0
      %2802 = vmatprep.subr.bf16.mxu0 0
      %2803 = vmatpush1.bf16.msra.mxu0 0
      %2804 = vmatprep.subr.bf16.mxu0 0
      %2805 = vmatpush1.bf16.msra.mxu0 0
      %2806 = vmatprep.subr.bf16.mxu0 0
      %2807 = vmatpush1.bf16.msra.mxu0 %v2790
      %2808 = vmatprep.subr.bf16.mxu0 0
      %2809 = vmatpush2.bf16.msra.mxu0 0
      %2810 = vmatprep.subr.bf16.mxu0 0
      %2811 = vmatpush2.bf16.msra.mxu0 0
      %2812 = vmatprep.subr.bf16.mxu0 0
      %2813 = vmatpush2.bf16.msra.mxu0 0
      %2814 = vmatprep.subr.bf16.mxu0 0
      %2815 = vmatpush2.bf16.msra.mxu0 0
      %2816 = vmatprep.subr.bf16.mxu0 0
      %2817 = vmatpush2.bf16.msra.mxu0 0
      %2818 = vmatprep.subr.bf16.mxu0 0
      %2819 = vmatpush2.bf16.msra.mxu0 0
      %2820 = vmatprep.subr.bf16.mxu0 0
      %2821 = vmatpush2.bf16.msra.mxu0 0
      %2822 = vmatprep.subr.bf16.mxu0 0
      %2823 = vmatpush2.bf16.msra.mxu0 0
      %2824 = vmatprep.mubr.bf16.mxu0 0
      %2825 = vmatmul.mubr.bf16.gmra.mxu0 %v2783
      %v2826 = vpop.f32.mrf.mxu0
      %v2827 = vadd.f32 0.0, %v2826
      %v2828 = vpop.f32.mrf.mxu0
      %v2829 = vpop.f32.mrf.mxu0
      %v2830 = vpop.f32.mrf.mxu0
      %2831 = vdwg.mxu0
      %v2832 = vpack.c.bf16 %v2827, %v2827
      %v2833 = vld [vmem:[%s7] sm:$0xf]
      %v2834 = vld [vmem:[%s7 + $0x4] sm:$0xf]
      %v2835 = vld [vmem:[%s7 + $0x8] sm:$0xf]
      %v2836 = vld [vmem:[%s7 + $0xc] sm:$0xf]
      %v2837 = vld [vmem:[%s7 + $0x10] sm:$0xf]
      %v2838 = vld [vmem:[%s7 + $0x14] sm:$0xf]
      %v2839 = vld [vmem:[%s7 + $0x18] sm:$0xf]
      %v2840 = vld [vmem:[%s7 + $0x1c] sm:$0xf]
      %s2841 = scalar_lea.vmem %s6, 1
      %v2842 = vld [vmem:[%s2841] sm:$0x1]
      %v2844 = vsel %vm2781, %v2842, 0
      %2846 = vmatprep.subr.bf16.mxu0 0
      %2847 = vmatpush1.bf16.msra.mxu0 0
      %2848 = vmatprep.subr.bf16.mxu0 0
      %2849 = vmatpush1.bf16.msra.mxu0 0
      %2850 = vmatprep.subr.bf16.mxu0 0
      %2851 = vmatpush1.bf16.msra.mxu0 0
      %2852 = vmatprep.subr.bf16.mxu0 0
      %2853 = vmatpush1.bf16.msra.mxu0 0
      %2854 = vmatprep.subr.bf16.mxu0 0
      %2855 = vmatpush1.bf16.msra.mxu0 0
      %2856 = vmatprep.subr.bf16.mxu0 0
      %2857 = vmatpush1.bf16.msra.mxu0 0
      %2858 = vmatprep.subr.bf16.mxu0 0
      %2859 = vmatpush1.bf16.msra.mxu0 0
      %2860 = vmatprep.subr.bf16.mxu0 0
      %2861 = vmatpush1.bf16.msra.mxu0 %v2790
      %2862 = vmatprep.subr.bf16.mxu0 0
      %2863 = vmatpush2.bf16.msra.mxu0 0
      %2864 = vmatprep.subr.bf16.mxu0 0
      %2865 = vmatpush2.bf16.msra.mxu0 0
      %2866 = vmatprep.subr.bf16.mxu0 0
      %2867 = vmatpush2.bf16.msra.mxu0 0
      %2868 = vmatprep.subr.bf16.mxu0 0
      %2869 = vmatpush2.bf16.msra.mxu0 0
      %2870 = vmatprep.subr.bf16.mxu0 0
      %2871 = vmatpush2.bf16.msra.mxu0 0
      %2872 = vmatprep.subr.bf16.mxu0 0
      %2873 = vmatpush2.bf16.msra.mxu0 0
      %2874 = vmatprep.subr.bf16.mxu0 0
      %2875 = vmatpush2.bf16.msra.mxu0 0
      %2876 = vmatprep.subr.bf16.mxu0 0
      %2877 = vmatpush2.bf16.msra.mxu0 0
      %2878 = vmatprep.mubr.bf16.mxu0 0
      %2879 = vmatmul.mubr.bf16.gmra.mxu0 %v2844
      %v2880 = vpop.f32.mrf.mxu0
      %v2881 = vadd.f32 0.0, %v2880
      %v2882 = vpop.f32.mrf.mxu0
      %v2883 = vpop.f32.mrf.mxu0
      %v2884 = vpop.f32.mrf.mxu0
      %2885 = vdwg.mxu0
      %v2886 = vpack.c.bf16 %v2881, %v2881
      %s2887 = scalar_lea.vmem %s7, 32
      %v2888 = vld [vmem:[%s2887] sm:$0xf]
      %v2889 = vld [vmem:[%s2887 + $0x4] sm:$0xf]
      %v2890 = vld [vmem:[%s2887 + $0x8] sm:$0xf]
      %v2891 = vld [vmem:[%s2887 + $0xc] sm:$0xf]
      %v2892 = vld [vmem:[%s2887 + $0x10] sm:$0xf]
      %v2893 = vld [vmem:[%s2887 + $0x14] sm:$0xf]
      %v2894 = vld [vmem:[%s2887 + $0x18] sm:$0xf]
      %v2895 = vld [vmem:[%s2887 + $0x1c] sm:$0xf]
      %v2904 = vunpack.c.l.b16 %v2888
      %v2905 = vunpack.c.l.b16 %v2889
      %v2906 = vunpack.c.l.b16 %v2890
      %v2907 = vunpack.c.l.b16 %v2891
      %v2908 = vunpack.c.l.b16 %v2892
      %v2909 = vunpack.c.l.b16 %v2893
      %v2910 = vunpack.c.l.b16 %v2894
      %v2911 = vunpack.c.l.b16 %v2895
      %v2912 = vpack.c.b16 %v2905, %v2904
      %v2913 = vpack.c.b16 %v2907, %v2906
      %v2914 = vpack.c.b16 %v2909, %v2908
      %v2915 = vpack.c.b16 %v2911, %v2910
      %v2921 = vsel %vm923, %v2886, 0
      %2923 = vmatprep.subr.bf16.mxu0 0
      %2924 = vmatpush1.bf16.msra.mxu0 0
      %2925 = vmatprep.subr.bf16.mxu0 0
      %2926 = vmatpush1.bf16.msra.mxu0 0
      %2927 = vmatprep.subr.bf16.mxu0 0
      %2928 = vmatpush1.bf16.msra.mxu0 0
      %2929 = vmatprep.subr.bf16.mxu0 0
      %2930 = vmatpush1.bf16.msra.mxu0 0
      %2931 = vmatprep.subr.bf16.mxu0 0
      %2932 = vmatpush1.bf16.msra.mxu0 %v2915
      %2933 = vmatprep.subr.bf16.mxu0 0
      %2934 = vmatpush1.bf16.msra.mxu0 %v2914
      %2935 = vmatprep.subr.bf16.mxu0 0
      %2936 = vmatpush1.bf16.msra.mxu0 %v2913
      %2937 = vmatprep.subr.bf16.mxu0 0
      %2938 = vmatpush1.bf16.msra.mxu0 %v2912
      %2939 = vmatprep.subr.bf16.mxu0 0
      %2940 = vmatpush2.bf16.msra.mxu0 0
      %2941 = vmatprep.subr.bf16.mxu0 0
      %2942 = vmatpush2.bf16.msra.mxu0 0
      %2943 = vmatprep.subr.bf16.mxu0 0
      %2944 = vmatpush2.bf16.msra.mxu0 0
      %2945 = vmatprep.subr.bf16.mxu0 0
      %2946 = vmatpush2.bf16.msra.mxu0 0
      %2947 = vmatprep.subr.bf16.mxu0 0
      %2948 = vmatpush2.bf16.msra.mxu0 0
      %2949 = vmatprep.subr.bf16.mxu0 0
      %2950 = vmatpush2.bf16.msra.mxu0 0
      %2951 = vmatprep.subr.bf16.mxu0 0
      %2952 = vmatpush2.bf16.msra.mxu0 0
      %2953 = vmatprep.subr.bf16.mxu0 0
      %2954 = vmatpush2.bf16.msra.mxu0 0
      %2955 = vmatprep.mubr.bf16.mxu0 0
      %2956 = vmatmul.mubr.bf16.gmra.mxu0 %v2921
      %v2957 = vpop.f32.mrf.mxu0
      %v2958 = vadd.f32 0.0, %v2957
      %v2959 = vpop.f32.mrf.mxu0
      %v2960 = vpop.f32.mrf.mxu0
      %v2961 = vpop.f32.mrf.mxu0
      %2962 = vdwg.mxu0
      %v2971 = vunpack.c.l.b16 %v2833
      %v2972 = vunpack.c.l.b16 %v2834
      %v2973 = vunpack.c.l.b16 %v2835
      %v2974 = vunpack.c.l.b16 %v2836
      %v2975 = vunpack.c.l.b16 %v2837
      %v2976 = vunpack.c.l.b16 %v2838
      %v2977 = vunpack.c.l.b16 %v2839
      %v2978 = vunpack.c.l.b16 %v2840
      %v2979 = vpack.c.b16 %v2972, %v2971
      %v2980 = vpack.c.b16 %v2974, %v2973
      %v2981 = vpack.c.b16 %v2976, %v2975
      %v2982 = vpack.c.b16 %v2978, %v2977
      %v2988 = vsel %vm923, %v2832, 0
      %2990 = vmatprep.subr.bf16.mxu0 0
      %2991 = vmatpush1.bf16.msra.mxu0 0
      %2992 = vmatprep.subr.bf16.mxu0 0
      %2993 = vmatpush1.bf16.msra.mxu0 0
      %2994 = vmatprep.subr.bf16.mxu0 0
      %2995 = vmatpush1.bf16.msra.mxu0 0
      %2996 = vmatprep.subr.bf16.mxu0 0
      %2997 = vmatpush1.bf16.msra.mxu0 0
      %2998 = vmatprep.subr.bf16.mxu0 0
      %2999 = vmatpush1.bf16.msra.mxu0 %v2982
      %3000 = vmatprep.subr.bf16.mxu0 0
      %3001 = vmatpush1.bf16.msra.mxu0 %v2981
      %3002 = vmatprep.subr.bf16.mxu0 0
      %3003 = vmatpush1.bf16.msra.mxu0 %v2980
      %3004 = vmatprep.subr.bf16.mxu0 0
      %3005 = vmatpush1.bf16.msra.mxu0 %v2979
      %3006 = vmatprep.subr.bf16.mxu0 0
      %3007 = vmatpush2.bf16.msra.mxu0 0
      %3008 = vmatprep.subr.bf16.mxu0 0
      %3009 = vmatpush2.bf16.msra.mxu0 0
      %3010 = vmatprep.subr.bf16.mxu0 0
      %3011 = vmatpush2.bf16.msra.mxu0 0
      %3012 = vmatprep.subr.bf16.mxu0 0
      %3013 = vmatpush2.bf16.msra.mxu0 0
      %3014 = vmatprep.subr.bf16.mxu0 0
      %3015 = vmatpush2.bf16.msra.mxu0 0
      %3016 = vmatprep.subr.bf16.mxu0 0
      %3017 = vmatpush2.bf16.msra.mxu0 0
      %3018 = vmatprep.subr.bf16.mxu0 0
      %3019 = vmatpush2.bf16.msra.mxu0 0
      %3020 = vmatprep.subr.bf16.mxu0 0
      %3021 = vmatpush2.bf16.msra.mxu0 0
      %3022 = vmatprep.mubr.bf16.mxu0 0
      %3023 = vmatmul.mubr.bf16.gmra.mxu0 %v2988
      %v3024 = vpop.f32.mrf.mxu0
      %v3025 = vadd.f32 %v2958, %v3024
      %v3026 = vpop.f32.mrf.mxu0
      %v3027 = vpop.f32.mrf.mxu0
      %v3028 = vpop.f32.mrf.mxu0
      %3029 = vdwg.mxu0
      %s3030 = scalar_lea.vmem %s6, 2
      %v3031 = vld [vmem:[%s3030] sm:$0x1]
      %v3033 = vsel %vm2781, %v3031, 0
      %3035 = vmatprep.subr.bf16.mxu0 0
      %3036 = vmatpush1.bf16.msra.mxu0 0
      %3037 = vmatprep.subr.bf16.mxu0 0
      %3038 = vmatpush1.bf16.msra.mxu0 0
      %3039 = vmatprep.subr.bf16.mxu0 0
      %3040 = vmatpush1.bf16.msra.mxu0 0
      %3041 = vmatprep.subr.bf16.mxu0 0
      %3042 = vmatpush1.bf16.msra.mxu0 0
      %3043 = vmatprep.subr.bf16.mxu0 0
      %3044 = vmatpush1.bf16.msra.mxu0 0
      %3045 = vmatprep.subr.bf16.mxu0 0
      %3046 = vmatpush1.bf16.msra.mxu0 0
      %3047 = vmatprep.subr.bf16.mxu0 0
      %3048 = vmatpush1.bf16.msra.mxu0 0
      %3049 = vmatprep.subr.bf16.mxu0 0
      %3050 = vmatpush1.bf16.msra.mxu0 %v2790
      %3051 = vmatprep.subr.bf16.mxu0 0
      %3052 = vmatpush2.bf16.msra.mxu0 0
      %3053 = vmatprep.subr.bf16.mxu0 0
      %3054 = vmatpush2.bf16.msra.mxu0 0
      %3055 = vmatprep.subr.bf16.mxu0 0
      %3056 = vmatpush2.bf16.msra.mxu0 0
      %3057 = vmatprep.subr.bf16.mxu0 0
      %3058 = vmatpush2.bf16.msra.mxu0 0
      %3059 = vmatprep.subr.bf16.mxu0 0
      %3060 = vmatpush2.bf16.msra.mxu0 0
      %3061 = vmatprep.subr.bf16.mxu0 0
      %3062 = vmatpush2.bf16.msra.mxu0 0
      %3063 = vmatprep.subr.bf16.mxu0 0
      %3064 = vmatpush2.bf16.msra.mxu0 0
      %3065 = vmatprep.subr.bf16.mxu0 0
      %3066 = vmatpush2.bf16.msra.mxu0 0
      %3067 = vmatprep.mubr.bf16.mxu0 0
      %3068 = vmatmul.mubr.bf16.gmra.mxu0 %v3033
      %v3069 = vpop.f32.mrf.mxu0
      %v3070 = vadd.f32 0.0, %v3069
      %v3071 = vpop.f32.mrf.mxu0
      %v3072 = vpop.f32.mrf.mxu0
      %v3073 = vpop.f32.mrf.mxu0
      %3074 = vdwg.mxu0
      %v3075 = vpack.c.bf16 %v3070, %v3070
      %s3076 = scalar_lea.vmem %s7, 64
      %v3077 = vld [vmem:[%s3076] sm:$0xf]
      %v3078 = vld [vmem:[%s3076 + $0x4] sm:$0xf]
      %v3079 = vld [vmem:[%s3076 + $0x8] sm:$0xf]
      %v3080 = vld [vmem:[%s3076 + $0xc] sm:$0xf]
      %v3081 = vld [vmem:[%s3076 + $0x10] sm:$0xf]
      %v3082 = vld [vmem:[%s3076 + $0x14] sm:$0xf]
      %v3083 = vld [vmem:[%s3076 + $0x18] sm:$0xf]
      %v3084 = vld [vmem:[%s3076 + $0x1c] sm:$0xf]
      %v3093 = vunpack.c.l.b16 %v3077
      %v3094 = vunpack.c.l.b16 %v3078
      %v3095 = vunpack.c.l.b16 %v3079
      %v3096 = vunpack.c.l.b16 %v3080
      %v3097 = vunpack.c.l.b16 %v3081
      %v3098 = vunpack.c.l.b16 %v3082
      %v3099 = vunpack.c.l.b16 %v3083
      %v3100 = vunpack.c.l.b16 %v3084
      %v3101 = vpack.c.b16 %v3094, %v3093
      %v3102 = vpack.c.b16 %v3096, %v3095
      %v3103 = vpack.c.b16 %v3098, %v3097
      %v3104 = vpack.c.b16 %v3100, %v3099
      %v3110 = vsel %vm923, %v3075, 0
      %3112 = vmatprep.subr.bf16.mxu0 0
      %3113 = vmatpush1.bf16.msra.mxu0 0
      %3114 = vmatprep.subr.bf16.mxu0 0
      %3115 = vmatpush1.bf16.msra.mxu0 0
      %3116 = vmatprep.subr.bf16.mxu0 0
      %3117 = vmatpush1.bf16.msra.mxu0 0
      %3118 = vmatprep.subr.bf16.mxu0 0
      %3119 = vmatpush1.bf16.msra.mxu0 0
      %3120 = vmatprep.subr.bf16.mxu0 0
      %3121 = vmatpush1.bf16.msra.mxu0 %v3104
      %3122 = vmatprep.subr.bf16.mxu0 0
      %3123 = vmatpush1.bf16.msra.mxu0 %v3103
      %3124 = vmatprep.subr.bf16.mxu0 0
      %3125 = vmatpush1.bf16.msra.mxu0 %v3102
      %3126 = vmatprep.subr.bf16.mxu0 0
      %3127 = vmatpush1.bf16.msra.mxu0 %v3101
      %3128 = vmatprep.subr.bf16.mxu0 0
      %3129 = vmatpush2.bf16.msra.mxu0 0
      %3130 = vmatprep.subr.bf16.mxu0 0
      %3131 = vmatpush2.bf16.msra.mxu0 0
      %3132 = vmatprep.subr.bf16.mxu0 0
      %3133 = vmatpush2.bf16.msra.mxu0 0
      %3134 = vmatprep.subr.bf16.mxu0 0
      %3135 = vmatpush2.bf16.msra.mxu0 0
      %3136 = vmatprep.subr.bf16.mxu0 0
      %3137 = vmatpush2.bf16.msra.mxu0 0
      %3138 = vmatprep.subr.bf16.mxu0 0
      %3139 = vmatpush2.bf16.msra.mxu0 0
      %3140 = vmatprep.subr.bf16.mxu0 0
      %3141 = vmatpush2.bf16.msra.mxu0 0
      %3142 = vmatprep.subr.bf16.mxu0 0
      %3143 = vmatpush2.bf16.msra.mxu0 0
      %3144 = vmatprep.mubr.bf16.mxu0 0
      %3145 = vmatmul.mubr.bf16.gmra.mxu0 %v3110
      %v3146 = vpop.f32.mrf.mxu0
      %v3147 = vadd.f32 0.0, %v3146
      %v3148 = vpop.f32.mrf.mxu0
      %v3149 = vpop.f32.mrf.mxu0
      %v3150 = vpop.f32.mrf.mxu0
      %3151 = vdwg.mxu0
      %v3152 = vadd.f32 %v3025, %v3147
      %s3153 = scalar_lea.vmem %s6, 3
      %v3154 = vld [vmem:[%s3153] sm:$0x1]
      %v3156 = vsel %vm2781, %v3154, 0
      %3158 = vmatprep.subr.bf16.mxu0 0
      %3159 = vmatpush1.bf16.msra.mxu0 0
      %3160 = vmatprep.subr.bf16.mxu0 0
      %3161 = vmatpush1.bf16.msra.mxu0 0
      %3162 = vmatprep.subr.bf16.mxu0 0
      %3163 = vmatpush1.bf16.msra.mxu0 0
      %3164 = vmatprep.subr.bf16.mxu0 0
      %3165 = vmatpush1.bf16.msra.mxu0 0
      %3166 = vmatprep.subr.bf16.mxu0 0
      %3167 = vmatpush1.bf16.msra.mxu0 0
      %3168 = vmatprep.subr.bf16.mxu0 0
      %3169 = vmatpush1.bf16.msra.mxu0 0
      %3170 = vmatprep.subr.bf16.mxu0 0
      %3171 = vmatpush1.bf16.msra.mxu0 0
      %3172 = vmatprep.subr.bf16.mxu0 0
      %3173 = vmatpush1.bf16.msra.mxu0 %v2790
      %3174 = vmatprep.subr.bf16.mxu0 0
      %3175 = vmatpush2.bf16.msra.mxu0 0
      %3176 = vmatprep.subr.bf16.mxu0 0
      %3177 = vmatpush2.bf16.msra.mxu0 0
      %3178 = vmatprep.subr.bf16.mxu0 0
      %3179 = vmatpush2.bf16.msra.mxu0 0
      %3180 = vmatprep.subr.bf16.mxu0 0
      %3181 = vmatpush2.bf16.msra.mxu0 0
      %3182 = vmatprep.subr.bf16.mxu0 0
      %3183 = vmatpush2.bf16.msra.mxu0 0
      %3184 = vmatprep.subr.bf16.mxu0 0
      %3185 = vmatpush2.bf16.msra.mxu0 0
      %3186 = vmatprep.subr.bf16.mxu0 0
      %3187 = vmatpush2.bf16.msra.mxu0 0
      %3188 = vmatprep.subr.bf16.mxu0 0
      %3189 = vmatpush2.bf16.msra.mxu0 0
      %3190 = vmatprep.mubr.bf16.mxu0 0
      %3191 = vmatmul.mubr.bf16.gmra.mxu0 %v3156
      %v3192 = vpop.f32.mrf.mxu0
      %v3193 = vadd.f32 0.0, %v3192
      %v3194 = vpop.f32.mrf.mxu0
      %v3195 = vpop.f32.mrf.mxu0
      %v3196 = vpop.f32.mrf.mxu0
      %3197 = vdwg.mxu0
      %v3198 = vpack.c.bf16 %v3193, %v3193
      %s3199 = scalar_lea.vmem %s7, 96
      %v3200 = vld [vmem:[%s3199] sm:$0xf]
      %v3201 = vld [vmem:[%s3199 + $0x4] sm:$0xf]
      %v3202 = vld [vmem:[%s3199 + $0x8] sm:$0xf]
      %v3203 = vld [vmem:[%s3199 + $0xc] sm:$0xf]
      %v3204 = vld [vmem:[%s3199 + $0x10] sm:$0xf]
      %v3205 = vld [vmem:[%s3199 + $0x14] sm:$0xf]
      %v3206 = vld [vmem:[%s3199 + $0x18] sm:$0xf]
      %v3207 = vld [vmem:[%s3199 + $0x1c] sm:$0xf]
      %v3216 = vunpack.c.l.b16 %v3200
      %v3217 = vunpack.c.l.b16 %v3201
      %v3218 = vunpack.c.l.b16 %v3202
      %v3219 = vunpack.c.l.b16 %v3203
      %v3220 = vunpack.c.l.b16 %v3204
      %v3221 = vunpack.c.l.b16 %v3205
      %v3222 = vunpack.c.l.b16 %v3206
      %v3223 = vunpack.c.l.b16 %v3207
      %v3224 = vpack.c.b16 %v3217, %v3216
      %v3225 = vpack.c.b16 %v3219, %v3218
      %v3226 = vpack.c.b16 %v3221, %v3220
      %v3227 = vpack.c.b16 %v3223, %v3222
      %v3233 = vsel %vm923, %v3198, 0
      %3235 = vmatprep.subr.bf16.mxu0 0
      %3236 = vmatpush1.bf16.msra.mxu0 0
      %3237 = vmatprep.subr.bf16.mxu0 0
      %3238 = vmatpush1.bf16.msra.mxu0 0
      %3239 = vmatprep.subr.bf16.mxu0 0
      %3240 = vmatpush1.bf16.msra.mxu0 0
      %3241 = vmatprep.subr.bf16.mxu0 0
      %3242 = vmatpush1.bf16.msra.mxu0 0
      %3243 = vmatprep.subr.bf16.mxu0 0
      %3244 = vmatpush1.bf16.msra.mxu0 %v3227
      %3245 = vmatprep.subr.bf16.mxu0 0
      %3246 = vmatpush1.bf16.msra.mxu0 %v3226
      %3247 = vmatprep.subr.bf16.mxu0 0
      %3248 = vmatpush1.bf16.msra.mxu0 %v3225
      %3249 = vmatprep.subr.bf16.mxu0 0
      %3250 = vmatpush1.bf16.msra.mxu0 %v3224
      %3251 = vmatprep.subr.bf16.mxu0 0
      %3252 = vmatpush2.bf16.msra.mxu0 0
      %3253 = vmatprep.subr.bf16.mxu0 0
      %3254 = vmatpush2.bf16.msra.mxu0 0
      %3255 = vmatprep.subr.bf16.mxu0 0
      %3256 = vmatpush2.bf16.msra.mxu0 0
      %3257 = vmatprep.subr.bf16.mxu0 0
      %3258 = vmatpush2.bf16.msra.mxu0 0
      %3259 = vmatprep.subr.bf16.mxu0 0
      %3260 = vmatpush2.bf16.msra.mxu0 0
      %3261 = vmatprep.subr.bf16.mxu0 0
      %3262 = vmatpush2.bf16.msra.mxu0 0
      %3263 = vmatprep.subr.bf16.mxu0 0
      %3264 = vmatpush2.bf16.msra.mxu0 0
      %3265 = vmatprep.subr.bf16.mxu0 0
      %3266 = vmatpush2.bf16.msra.mxu0 0
      %3267 = vmatprep.mubr.bf16.mxu0 0
      %3268 = vmatmul.mubr.bf16.gmra.mxu0 %v3233
      %v3269 = vpop.f32.mrf.mxu0
      %v3270 = vadd.f32 0.0, %v3269
      %v3271 = vpop.f32.mrf.mxu0
      %v3272 = vpop.f32.mrf.mxu0
      %v3273 = vpop.f32.mrf.mxu0
      %3274 = vdwg.mxu0
      %v3275 = vadd.f32 %v3152, %v3270
      %s3276 = scalar_lea.vmem %s6, 4
      %v3277 = vld [vmem:[%s3276] sm:$0x1]
      %v3279 = vsel %vm2781, %v3277, 0
      %3281 = vmatprep.subr.bf16.mxu0 0
      %3282 = vmatpush1.bf16.msra.mxu0 0
      %3283 = vmatprep.subr.bf16.mxu0 0
      %3284 = vmatpush1.bf16.msra.mxu0 0
      %3285 = vmatprep.subr.bf16.mxu0 0
      %3286 = vmatpush1.bf16.msra.mxu0 0
      %3287 = vmatprep.subr.bf16.mxu0 0
      %3288 = vmatpush1.bf16.msra.mxu0 0
      %3289 = vmatprep.subr.bf16.mxu0 0
      %3290 = vmatpush1.bf16.msra.mxu0 0
      %3291 = vmatprep.subr.bf16.mxu0 0
      %3292 = vmatpush1.bf16.msra.mxu0 0
      %3293 = vmatprep.subr.bf16.mxu0 0
      %3294 = vmatpush1.bf16.msra.mxu0 0
      %3295 = vmatprep.subr.bf16.mxu0 0
      %3296 = vmatpush1.bf16.msra.mxu0 %v2790
      %3297 = vmatprep.subr.bf16.mxu0 0
      %3298 = vmatpush2.bf16.msra.mxu0 0
      %3299 = vmatprep.subr.bf16.mxu0 0
      %3300 = vmatpush2.bf16.msra.mxu0 0
      %3301 = vmatprep.subr.bf16.mxu0 0
      %3302 = vmatpush2.bf16.msra.mxu0 0
      %3303 = vmatprep.subr.bf16.mxu0 0
      %3304 = vmatpush2.bf16.msra.mxu0 0
      %3305 = vmatprep.subr.bf16.mxu0 0
      %3306 = vmatpush2.bf16.msra.mxu0 0
      %3307 = vmatprep.subr.bf16.mxu0 0
      %3308 = vmatpush2.bf16.msra.mxu0 0
      %3309 = vmatprep.subr.bf16.mxu0 0
      %3310 = vmatpush2.bf16.msra.mxu0 0
      %3311 = vmatprep.subr.bf16.mxu0 0
      %3312 = vmatpush2.bf16.msra.mxu0 0
      %3313 = vmatprep.mubr.bf16.mxu0 0
      %3314 = vmatmul.mubr.bf16.gmra.mxu0 %v3279
      %v3315 = vpop.f32.mrf.mxu0
      %v3316 = vadd.f32 0.0, %v3315
      %v3317 = vpop.f32.mrf.mxu0
      %v3318 = vpop.f32.mrf.mxu0
      %v3319 = vpop.f32.mrf.mxu0
      %3320 = vdwg.mxu0
      %v3321 = vpack.c.bf16 %v3316, %v3316
      %s3322 = scalar_lea.vmem %s7, 128
      %v3323 = vld [vmem:[%s3322] sm:$0xf]
      %v3324 = vld [vmem:[%s3322 + $0x4] sm:$0xf]
      %v3325 = vld [vmem:[%s3322 + $0x8] sm:$0xf]
      %v3326 = vld [vmem:[%s3322 + $0xc] sm:$0xf]
      %v3327 = vld [vmem:[%s3322 + $0x10] sm:$0xf]
      %v3328 = vld [vmem:[%s3322 + $0x14] sm:$0xf]
      %v3329 = vld [vmem:[%s3322 + $0x18] sm:$0xf]
      %v3330 = vld [vmem:[%s3322 + $0x1c] sm:$0xf]
      %v3339 = vunpack.c.l.b16 %v3323
      %v3340 = vunpack.c.l.b16 %v3324
      %v3341 = vunpack.c.l.b16 %v3325
      %v3342 = vunpack.c.l.b16 %v3326
      %v3343 = vunpack.c.l.b16 %v3327
      %v3344 = vunpack.c.l.b16 %v3328
      %v3345 = vunpack.c.l.b16 %v3329
      %v3346 = vunpack.c.l.b16 %v3330
      %v3347 = vpack.c.b16 %v3340, %v3339
      %v3348 = vpack.c.b16 %v3342, %v3341
      %v3349 = vpack.c.b16 %v3344, %v3343
      %v3350 = vpack.c.b16 %v3346, %v3345
      %v3356 = vsel %vm923, %v3321, 0
      %3358 = vmatprep.subr.bf16.mxu0 0
      %3359 = vmatpush1.bf16.msra.mxu0 0
      %3360 = vmatprep.subr.bf16.mxu0 0
      %3361 = vmatpush1.bf16.msra.mxu0 0
      %3362 = vmatprep.subr.bf16.mxu0 0
      %3363 = vmatpush1.bf16.msra.mxu0 0
      %3364 = vmatprep.subr.bf16.mxu0 0
      %3365 = vmatpush1.bf16.msra.mxu0 0
      %3366 = vmatprep.subr.bf16.mxu0 0
      %3367 = vmatpush1.bf16.msra.mxu0 %v3350
      %3368 = vmatprep.subr.bf16.mxu0 0
      %3369 = vmatpush1.bf16.msra.mxu0 %v3349
      %3370 = vmatprep.subr.bf16.mxu0 0
      %3371 = vmatpush1.bf16.msra.mxu0 %v3348
      %3372 = vmatprep.subr.bf16.mxu0 0
      %3373 = vmatpush1.bf16.msra.mxu0 %v3347
      %3374 = vmatprep.subr.bf16.mxu0 0
      %3375 = vmatpush2.bf16.msra.mxu0 0
      %3376 = vmatprep.subr.bf16.mxu0 0
      %3377 = vmatpush2.bf16.msra.mxu0 0
      %3378 = vmatprep.subr.bf16.mxu0 0
      %3379 = vmatpush2.bf16.msra.mxu0 0
      %3380 = vmatprep.subr.bf16.mxu0 0
      %3381 = vmatpush2.bf16.msra.mxu0 0
      %3382 = vmatprep.subr.bf16.mxu0 0
      %3383 = vmatpush2.bf16.msra.mxu0 0
      %3384 = vmatprep.subr.bf16.mxu0 0
      %3385 = vmatpush2.bf16.msra.mxu0 0
      %3386 = vmatprep.subr.bf16.mxu0 0
      %3387 = vmatpush2.bf16.msra.mxu0 0
      %3388 = vmatprep.subr.bf16.mxu0 0
      %3389 = vmatpush2.bf16.msra.mxu0 0
      %3390 = vmatprep.mubr.bf16.mxu0 0
      %3391 = vmatmul.mubr.bf16.gmra.mxu0 %v3356
      %v3392 = vpop.f32.mrf.mxu0
      %v3393 = vadd.f32 0.0, %v3392
      %v3394 = vpop.f32.mrf.mxu0
      %v3395 = vpop.f32.mrf.mxu0
      %v3396 = vpop.f32.mrf.mxu0
      %3397 = vdwg.mxu0
      %v3398 = vadd.f32 %v3275, %v3393
      %s3399 = scalar_lea.vmem %s6, 5
      %v3400 = vld [vmem:[%s3399] sm:$0x1]
      %v3402 = vsel %vm2781, %v3400, 0
      %3404 = vmatprep.subr.bf16.mxu0 0
      %3405 = vmatpush1.bf16.msra.mxu0 0
      %3406 = vmatprep.subr.bf16.mxu0 0
      %3407 = vmatpush1.bf16.msra.mxu0 0
      %3408 = vmatprep.subr.bf16.mxu0 0
      %3409 = vmatpush1.bf16.msra.mxu0 0
      %3410 = vmatprep.subr.bf16.mxu0 0
      %3411 = vmatpush1.bf16.msra.mxu0 0
      %3412 = vmatprep.subr.bf16.mxu0 0
      %3413 = vmatpush1.bf16.msra.mxu0 0
      %3414 = vmatprep.subr.bf16.mxu0 0
      %3415 = vmatpush1.bf16.msra.mxu0 0
      %3416 = vmatprep.subr.bf16.mxu0 0
      %3417 = vmatpush1.bf16.msra.mxu0 0
      %3418 = vmatprep.subr.bf16.mxu0 0
      %3419 = vmatpush1.bf16.msra.mxu0 %v2790
      %3420 = vmatprep.subr.bf16.mxu0 0
      %3421 = vmatpush2.bf16.msra.mxu0 0
      %3422 = vmatprep.subr.bf16.mxu0 0
      %3423 = vmatpush2.bf16.msra.mxu0 0
      %3424 = vmatprep.subr.bf16.mxu0 0
      %3425 = vmatpush2.bf16.msra.mxu0 0
      %3426 = vmatprep.subr.bf16.mxu0 0
      %3427 = vmatpush2.bf16.msra.mxu0 0
      %3428 = vmatprep.subr.bf16.mxu0 0
      %3429 = vmatpush2.bf16.msra.mxu0 0
      %3430 = vmatprep.subr.bf16.mxu0 0
      %3431 = vmatpush2.bf16.msra.mxu0 0
      %3432 = vmatprep.subr.bf16.mxu0 0
      %3433 = vmatpush2.bf16.msra.mxu0 0
      %3434 = vmatprep.subr.bf16.mxu0 0
      %3435 = vmatpush2.bf16.msra.mxu0 0
      %3436 = vmatprep.mubr.bf16.mxu0 0
      %3437 = vmatmul.mubr.bf16.gmra.mxu0 %v3402
      %v3438 = vpop.f32.mrf.mxu0
      %v3439 = vadd.f32 0.0, %v3438
      %v3440 = vpop.f32.mrf.mxu0
      %v3441 = vpop.f32.mrf.mxu0
      %v3442 = vpop.f32.mrf.mxu0
      %3443 = vdwg.mxu0
      %v3444 = vpack.c.bf16 %v3439, %v3439
      %s3445 = scalar_lea.vmem %s7, 160
      %v3446 = vld [vmem:[%s3445] sm:$0xf]
      %v3447 = vld [vmem:[%s3445 + $0x4] sm:$0xf]
      %v3448 = vld [vmem:[%s3445 + $0x8] sm:$0xf]
      %v3449 = vld [vmem:[%s3445 + $0xc] sm:$0xf]
      %v3450 = vld [vmem:[%s3445 + $0x10] sm:$0xf]
      %v3451 = vld [vmem:[%s3445 + $0x14] sm:$0xf]
      %v3452 = vld [vmem:[%s3445 + $0x18] sm:$0xf]
      %v3453 = vld [vmem:[%s3445 + $0x1c] sm:$0xf]
      %v3462 = vunpack.c.l.b16 %v3446
      %v3463 = vunpack.c.l.b16 %v3447
      %v3464 = vunpack.c.l.b16 %v3448
      %v3465 = vunpack.c.l.b16 %v3449
      %v3466 = vunpack.c.l.b16 %v3450
      %v3467 = vunpack.c.l.b16 %v3451
      %v3468 = vunpack.c.l.b16 %v3452
      %v3469 = vunpack.c.l.b16 %v3453
      %v3470 = vpack.c.b16 %v3463, %v3462
      %v3471 = vpack.c.b16 %v3465, %v3464
      %v3472 = vpack.c.b16 %v3467, %v3466
      %v3473 = vpack.c.b16 %v3469, %v3468
      %v3479 = vsel %vm923, %v3444, 0
      %3481 = vmatprep.subr.bf16.mxu0 0
      %3482 = vmatpush1.bf16.msra.mxu0 0
      %3483 = vmatprep.subr.bf16.mxu0 0
      %3484 = vmatpush1.bf16.msra.mxu0 0
      %3485 = vmatprep.subr.bf16.mxu0 0
      %3486 = vmatpush1.bf16.msra.mxu0 0
      %3487 = vmatprep.subr.bf16.mxu0 0
      %3488 = vmatpush1.bf16.msra.mxu0 0
      %3489 = vmatprep.subr.bf16.mxu0 0
      %3490 = vmatpush1.bf16.msra.mxu0 %v3473
      %3491 = vmatprep.subr.bf16.mxu0 0
      %3492 = vmatpush1.bf16.msra.mxu0 %v3472
      %3493 = vmatprep.subr.bf16.mxu0 0
      %3494 = vmatpush1.bf16.msra.mxu0 %v3471
      %3495 = vmatprep.subr.bf16.mxu0 0
      %3496 = vmatpush1.bf16.msra.mxu0 %v3470
      %3497 = vmatprep.subr.bf16.mxu0 0
      %3498 = vmatpush2.bf16.msra.mxu0 0
      %3499 = vmatprep.subr.bf16.mxu0 0
      %3500 = vmatpush2.bf16.msra.mxu0 0
      %3501 = vmatprep.subr.bf16.mxu0 0
      %3502 = vmatpush2.bf16.msra.mxu0 0
      %3503 = vmatprep.subr.bf16.mxu0 0
      %3504 = vmatpush2.bf16.msra.mxu0 0
      %3505 = vmatprep.subr.bf16.mxu0 0
      %3506 = vmatpush2.bf16.msra.mxu0 0
      %3507 = vmatprep.subr.bf16.mxu0 0
      %3508 = vmatpush2.bf16.msra.mxu0 0
      %3509 = vmatprep.subr.bf16.mxu0 0
      %3510 = vmatpush2.bf16.msra.mxu0 0
      %3511 = vmatprep.subr.bf16.mxu0 0
      %3512 = vmatpush2.bf16.msra.mxu0 0
      %3513 = vmatprep.mubr.bf16.mxu0 0
      %3514 = vmatmul.mubr.bf16.gmra.mxu0 %v3479
      %v3515 = vpop.f32.mrf.mxu0
      %v3516 = vadd.f32 0.0, %v3515
      %v3517 = vpop.f32.mrf.mxu0
      %v3518 = vpop.f32.mrf.mxu0
      %v3519 = vpop.f32.mrf.mxu0
      %3520 = vdwg.mxu0
      %v3521 = vadd.f32 %v3398, %v3516
      %s3522 = scalar_lea.vmem %s6, 6
      %v3523 = vld [vmem:[%s3522] sm:$0x1]
      %v3525 = vsel %vm2781, %v3523, 0
      %3527 = vmatprep.subr.bf16.mxu0 0
      %3528 = vmatpush1.bf16.msra.mxu0 0
      %3529 = vmatprep.subr.bf16.mxu0 0
      %3530 = vmatpush1.bf16.msra.mxu0 0
      %3531 = vmatprep.subr.bf16.mxu0 0
      %3532 = vmatpush1.bf16.msra.mxu0 0
      %3533 = vmatprep.subr.bf16.mxu0 0
      %3534 = vmatpush1.bf16.msra.mxu0 0
      %3535 = vmatprep.subr.bf16.mxu0 0
      %3536 = vmatpush1.bf16.msra.mxu0 0
      %3537 = vmatprep.subr.bf16.mxu0 0
      %3538 = vmatpush1.bf16.msra.mxu0 0
      %3539 = vmatprep.subr.bf16.mxu0 0
      %3540 = vmatpush1.bf16.msra.mxu0 0
      %3541 = vmatprep.subr.bf16.mxu0 0
      %3542 = vmatpush1.bf16.msra.mxu0 %v2790
      %3543 = vmatprep.subr.bf16.mxu0 0
      %3544 = vmatpush2.bf16.msra.mxu0 0
      %3545 = vmatprep.subr.bf16.mxu0 0
      %3546 = vmatpush2.bf16.msra.mxu0 0
      %3547 = vmatprep.subr.bf16.mxu0 0
      %3548 = vmatpush2.bf16.msra.mxu0 0
      %3549 = vmatprep.subr.bf16.mxu0 0
      %3550 = vmatpush2.bf16.msra.mxu0 0
      %3551 = vmatprep.subr.bf16.mxu0 0
      %3552 = vmatpush2.bf16.msra.mxu0 0
      %3553 = vmatprep.subr.bf16.mxu0 0
      %3554 = vmatpush2.bf16.msra.mxu0 0
      %3555 = vmatprep.subr.bf16.mxu0 0
      %3556 = vmatpush2.bf16.msra.mxu0 0
      %3557 = vmatprep.subr.bf16.mxu0 0
      %3558 = vmatpush2.bf16.msra.mxu0 0
      %3559 = vmatprep.mubr.bf16.mxu0 0
      %3560 = vmatmul.mubr.bf16.gmra.mxu0 %v3525
      %v3561 = vpop.f32.mrf.mxu0
      %v3562 = vadd.f32 0.0, %v3561
      %v3563 = vpop.f32.mrf.mxu0
      %v3564 = vpop.f32.mrf.mxu0
      %v3565 = vpop.f32.mrf.mxu0
      %3566 = vdwg.mxu0
      %v3567 = vpack.c.bf16 %v3562, %v3562
      %s3568 = scalar_lea.vmem %s7, 192
      %v3569 = vld [vmem:[%s3568] sm:$0xf]
      %v3570 = vld [vmem:[%s3568 + $0x4] sm:$0xf]
      %v3571 = vld [vmem:[%s3568 + $0x8] sm:$0xf]
      %v3572 = vld [vmem:[%s3568 + $0xc] sm:$0xf]
      %v3573 = vld [vmem:[%s3568 + $0x10] sm:$0xf]
      %v3574 = vld [vmem:[%s3568 + $0x14] sm:$0xf]
      %v3575 = vld [vmem:[%s3568 + $0x18] sm:$0xf]
      %v3576 = vld [vmem:[%s3568 + $0x1c] sm:$0xf]
      %v3585 = vunpack.c.l.b16 %v3569
      %v3586 = vunpack.c.l.b16 %v3570
      %v3587 = vunpack.c.l.b16 %v3571
      %v3588 = vunpack.c.l.b16 %v3572
      %v3589 = vunpack.c.l.b16 %v3573
      %v3590 = vunpack.c.l.b16 %v3574
      %v3591 = vunpack.c.l.b16 %v3575
      %v3592 = vunpack.c.l.b16 %v3576
      %v3593 = vpack.c.b16 %v3586, %v3585
      %v3594 = vpack.c.b16 %v3588, %v3587
      %v3595 = vpack.c.b16 %v3590, %v3589
      %v3596 = vpack.c.b16 %v3592, %v3591
      %v3602 = vsel %vm923, %v3567, 0
      %3604 = vmatprep.subr.bf16.mxu0 0
      %3605 = vmatpush1.bf16.msra.mxu0 0
      %3606 = vmatprep.subr.bf16.mxu0 0
      %3607 = vmatpush1.bf16.msra.mxu0 0
      %3608 = vmatprep.subr.bf16.mxu0 0
      %3609 = vmatpush1.bf16.msra.mxu0 0
      %3610 = vmatprep.subr.bf16.mxu0 0
      %3611 = vmatpush1.bf16.msra.mxu0 0
      %3612 = vmatprep.subr.bf16.mxu0 0
      %3613 = vmatpush1.bf16.msra.mxu0 %v3596
      %3614 = vmatprep.subr.bf16.mxu0 0
      %3615 = vmatpush1.bf16.msra.mxu0 %v3595
      %3616 = vmatprep.subr.bf16.mxu0 0
      %3617 = vmatpush1.bf16.msra.mxu0 %v3594
      %3618 = vmatprep.subr.bf16.mxu0 0
      %3619 = vmatpush1.bf16.msra.mxu0 %v3593
      %3620 = vmatprep.subr.bf16.mxu0 0
      %3621 = vmatpush2.bf16.msra.mxu0 0
      %3622 = vmatprep.subr.bf16.mxu0 0
      %3623 = vmatpush2.bf16.msra.mxu0 0
      %3624 = vmatprep.subr.bf16.mxu0 0
      %3625 = vmatpush2.bf16.msra.mxu0 0
      %3626 = vmatprep.subr.bf16.mxu0 0
      %3627 = vmatpush2.bf16.msra.mxu0 0
      %3628 = vmatprep.subr.bf16.mxu0 0
      %3629 = vmatpush2.bf16.msra.mxu0 0
      %3630 = vmatprep.subr.bf16.mxu0 0
      %3631 = vmatpush2.bf16.msra.mxu0 0
      %3632 = vmatprep.subr.bf16.mxu0 0
      %3633 = vmatpush2.bf16.msra.mxu0 0
      %3634 = vmatprep.subr.bf16.mxu0 0
      %3635 = vmatpush2.bf16.msra.mxu0 0
      %3636 = vmatprep.mubr.bf16.mxu0 0
      %3637 = vmatmul.mubr.bf16.gmra.mxu0 %v3602
      %v3638 = vpop.f32.mrf.mxu0
      %v3639 = vadd.f32 0.0, %v3638
      %v3640 = vpop.f32.mrf.mxu0
      %v3641 = vpop.f32.mrf.mxu0
      %v3642 = vpop.f32.mrf.mxu0
      %3643 = vdwg.mxu0
      %v3644 = vadd.f32 %v3521, %v3639
      %s3645 = scalar_lea.vmem %s6, 7
      %v3646 = vld [vmem:[%s3645] sm:$0x1]
      %v3648 = vsel %vm2781, %v3646, 0
      %3650 = vmatprep.subr.bf16.mxu0 0
      %3651 = vmatpush1.bf16.msra.mxu0 0
      %3652 = vmatprep.subr.bf16.mxu0 0
      %3653 = vmatpush1.bf16.msra.mxu0 0
      %3654 = vmatprep.subr.bf16.mxu0 0
      %3655 = vmatpush1.bf16.msra.mxu0 0
      %3656 = vmatprep.subr.bf16.mxu0 0
      %3657 = vmatpush1.bf16.msra.mxu0 0
      %3658 = vmatprep.subr.bf16.mxu0 0
      %3659 = vmatpush1.bf16.msra.mxu0 0
      %3660 = vmatprep.subr.bf16.mxu0 0
      %3661 = vmatpush1.bf16.msra.mxu0 0
      %3662 = vmatprep.subr.bf16.mxu0 0
      %3663 = vmatpush1.bf16.msra.mxu0 0
      %3664 = vmatprep.subr.bf16.mxu0 0
      %3665 = vmatpush1.bf16.msra.mxu0 %v2790
      %3666 = vmatprep.subr.bf16.mxu0 0
      %3667 = vmatpush2.bf16.msra.mxu0 0
      %3668 = vmatprep.subr.bf16.mxu0 0
      %3669 = vmatpush2.bf16.msra.mxu0 0
      %3670 = vmatprep.subr.bf16.mxu0 0
      %3671 = vmatpush2.bf16.msra.mxu0 0
      %3672 = vmatprep.subr.bf16.mxu0 0
      %3673 = vmatpush2.bf16.msra.mxu0 0
      %3674 = vmatprep.subr.bf16.mxu0 0
      %3675 = vmatpush2.bf16.msra.mxu0 0
      %3676 = vmatprep.subr.bf16.mxu0 0
      %3677 = vmatpush2.bf16.msra.mxu0 0
      %3678 = vmatprep.subr.bf16.mxu0 0
      %3679 = vmatpush2.bf16.msra.mxu0 0
      %3680 = vmatprep.subr.bf16.mxu0 0
      %3681 = vmatpush2.bf16.msra.mxu0 0
      %3682 = vmatprep.mubr.bf16.mxu0 0
      %3683 = vmatmul.mubr.bf16.gmra.mxu0 %v3648
      %v3684 = vpop.f32.mrf.mxu0
      %v3685 = vadd.f32 0.0, %v3684
      %v3686 = vpop.f32.mrf.mxu0
      %v3687 = vpop.f32.mrf.mxu0
      %v3688 = vpop.f32.mrf.mxu0
      %3689 = vdwg.mxu0
      %v3690 = vpack.c.bf16 %v3685, %v3685
      %s3691 = scalar_lea.vmem %s7, 224
      %v3692 = vld [vmem:[%s3691] sm:$0xf]
      %v3693 = vld [vmem:[%s3691 + $0x4] sm:$0xf]
      %v3694 = vld [vmem:[%s3691 + $0x8] sm:$0xf]
      %v3695 = vld [vmem:[%s3691 + $0xc] sm:$0xf]
      %v3696 = vld [vmem:[%s3691 + $0x10] sm:$0xf]
      %v3697 = vld [vmem:[%s3691 + $0x14] sm:$0xf]
      %v3698 = vld [vmem:[%s3691 + $0x18] sm:$0xf]
      %v3699 = vld [vmem:[%s3691 + $0x1c] sm:$0xf]
      %v3708 = vunpack.c.l.b16 %v3692
      %v3709 = vunpack.c.l.b16 %v3693
      %v3710 = vunpack.c.l.b16 %v3694
      %v3711 = vunpack.c.l.b16 %v3695
      %v3712 = vunpack.c.l.b16 %v3696
      %v3713 = vunpack.c.l.b16 %v3697
      %v3714 = vunpack.c.l.b16 %v3698
      %v3715 = vunpack.c.l.b16 %v3699
      %v3716 = vpack.c.b16 %v3709, %v3708
      %v3717 = vpack.c.b16 %v3711, %v3710
      %v3718 = vpack.c.b16 %v3713, %v3712
      %v3719 = vpack.c.b16 %v3715, %v3714
      %v3725 = vsel %vm923, %v3690, 0
      %3727 = vmatprep.subr.bf16.mxu0 0
      %3728 = vmatpush1.bf16.msra.mxu0 0
      %3729 = vmatprep.subr.bf16.mxu0 0
      %3730 = vmatpush1.bf16.msra.mxu0 0
      %3731 = vmatprep.subr.bf16.mxu0 0
      %3732 = vmatpush1.bf16.msra.mxu0 0
      %3733 = vmatprep.subr.bf16.mxu0 0
      %3734 = vmatpush1.bf16.msra.mxu0 0
      %3735 = vmatprep.subr.bf16.mxu0 0
      %3736 = vmatpush1.bf16.msra.mxu0 %v3719
      %3737 = vmatprep.subr.bf16.mxu0 0
      %3738 = vmatpush1.bf16.msra.mxu0 %v3718
      %3739 = vmatprep.subr.bf16.mxu0 0
      %3740 = vmatpush1.bf16.msra.mxu0 %v3717
      %3741 = vmatprep.subr.bf16.mxu0 0
      %3742 = vmatpush1.bf16.msra.mxu0 %v3716
      %3743 = vmatprep.subr.bf16.mxu0 0
      %3744 = vmatpush2.bf16.msra.mxu0 0
      %3745 = vmatprep.subr.bf16.mxu0 0
      %3746 = vmatpush2.bf16.msra.mxu0 0
      %3747 = vmatprep.subr.bf16.mxu0 0
      %3748 = vmatpush2.bf16.msra.mxu0 0
      %3749 = vmatprep.subr.bf16.mxu0 0
      %3750 = vmatpush2.bf16.msra.mxu0 0
      %3751 = vmatprep.subr.bf16.mxu0 0
      %3752 = vmatpush2.bf16.msra.mxu0 0
      %3753 = vmatprep.subr.bf16.mxu0 0
      %3754 = vmatpush2.bf16.msra.mxu0 0
      %3755 = vmatprep.subr.bf16.mxu0 0
      %3756 = vmatpush2.bf16.msra.mxu0 0
      %3757 = vmatprep.subr.bf16.mxu0 0
      %3758 = vmatpush2.bf16.msra.mxu0 0
      %3759 = vmatprep.mubr.bf16.mxu0 0
      %3760 = vmatmul.mubr.bf16.gmra.mxu0 %v3725
      %v3761 = vpop.f32.mrf.mxu0
      %v3762 = vadd.f32 0.0, %v3761
      %v3763 = vpop.f32.mrf.mxu0
      %v3764 = vpop.f32.mrf.mxu0
      %v3765 = vpop.f32.mrf.mxu0
      %3766 = vdwg.mxu0
      %v3767 = vadd.f32 %v3644, %v3762
      %s3768 = scalar_lea.vmem %s6, 8
      %v3769 = vld [vmem:[%s3768] sm:$0x1]
      %v3771 = vsel %vm2781, %v3769, 0
      %3773 = vmatprep.subr.bf16.mxu0 0
      %3774 = vmatpush1.bf16.msra.mxu0 0
      %3775 = vmatprep.subr.bf16.mxu0 0
      %3776 = vmatpush1.bf16.msra.mxu0 0
      %3777 = vmatprep.subr.bf16.mxu0 0
      %3778 = vmatpush1.bf16.msra.mxu0 0
      %3779 = vmatprep.subr.bf16.mxu0 0
      %3780 = vmatpush1.bf16.msra.mxu0 0
      %3781 = vmatprep.subr.bf16.mxu0 0
      %3782 = vmatpush1.bf16.msra.mxu0 0
      %3783 = vmatprep.subr.bf16.mxu0 0
      %3784 = vmatpush1.bf16.msra.mxu0 0
      %3785 = vmatprep.subr.bf16.mxu0 0
      %3786 = vmatpush1.bf16.msra.mxu0 0
      %3787 = vmatprep.subr.bf16.mxu0 0
      %3788 = vmatpush1.bf16.msra.mxu0 %v2790
      %3789 = vmatprep.subr.bf16.mxu0 0
      %3790 = vmatpush2.bf16.msra.mxu0 0
      %3791 = vmatprep.subr.bf16.mxu0 0
      %3792 = vmatpush2.bf16.msra.mxu0 0
      %3793 = vmatprep.subr.bf16.mxu0 0
      %3794 = vmatpush2.bf16.msra.mxu0 0
      %3795 = vmatprep.subr.bf16.mxu0 0
      %3796 = vmatpush2.bf16.msra.mxu0 0
      %3797 = vmatprep.subr.bf16.mxu0 0
      %3798 = vmatpush2.bf16.msra.mxu0 0
      %3799 = vmatprep.subr.bf16.mxu0 0
      %3800 = vmatpush2.bf16.msra.mxu0 0
      %3801 = vmatprep.subr.bf16.mxu0 0
      %3802 = vmatpush2.bf16.msra.mxu0 0
      %3803 = vmatprep.subr.bf16.mxu0 0
      %3804 = vmatpush2.bf16.msra.mxu0 0
      %3805 = vmatprep.mubr.bf16.mxu0 0
      %3806 = vmatmul.mubr.bf16.gmra.mxu0 %v3771
      %v3807 = vpop.f32.mrf.mxu0
      %v3808 = vadd.f32 0.0, %v3807
      %v3809 = vpop.f32.mrf.mxu0
      %v3810 = vpop.f32.mrf.mxu0
      %v3811 = vpop.f32.mrf.mxu0
      %3812 = vdwg.mxu0
      %v3813 = vpack.c.bf16 %v3808, %v3808
      %s3814 = scalar_lea.vmem %s7, 256
      %v3815 = vld [vmem:[%s3814] sm:$0xf]
      %v3816 = vld [vmem:[%s3814 + $0x4] sm:$0xf]
      %v3817 = vld [vmem:[%s3814 + $0x8] sm:$0xf]
      %v3818 = vld [vmem:[%s3814 + $0xc] sm:$0xf]
      %v3819 = vld [vmem:[%s3814 + $0x10] sm:$0xf]
      %v3820 = vld [vmem:[%s3814 + $0x14] sm:$0xf]
      %v3821 = vld [vmem:[%s3814 + $0x18] sm:$0xf]
      %v3822 = vld [vmem:[%s3814 + $0x1c] sm:$0xf]
      %v3831 = vunpack.c.l.b16 %v3815
      %v3832 = vunpack.c.l.b16 %v3816
      %v3833 = vunpack.c.l.b16 %v3817
      %v3834 = vunpack.c.l.b16 %v3818
      %v3835 = vunpack.c.l.b16 %v3819
      %v3836 = vunpack.c.l.b16 %v3820
      %v3837 = vunpack.c.l.b16 %v3821
      %v3838 = vunpack.c.l.b16 %v3822
      %v3839 = vpack.c.b16 %v3832, %v3831
      %v3840 = vpack.c.b16 %v3834, %v3833
      %v3841 = vpack.c.b16 %v3836, %v3835
      %v3842 = vpack.c.b16 %v3838, %v3837
      %v3848 = vsel %vm923, %v3813, 0
      %3850 = vmatprep.subr.bf16.mxu0 0
      %3851 = vmatpush1.bf16.msra.mxu0 0
      %3852 = vmatprep.subr.bf16.mxu0 0
      %3853 = vmatpush1.bf16.msra.mxu0 0
      %3854 = vmatprep.subr.bf16.mxu0 0
      %3855 = vmatpush1.bf16.msra.mxu0 0
      %3856 = vmatprep.subr.bf16.mxu0 0
      %3857 = vmatpush1.bf16.msra.mxu0 0
      %3858 = vmatprep.subr.bf16.mxu0 0
      %3859 = vmatpush1.bf16.msra.mxu0 %v3842
      %3860 = vmatprep.subr.bf16.mxu0 0
      %3861 = vmatpush1.bf16.msra.mxu0 %v3841
      %3862 = vmatprep.subr.bf16.mxu0 0
      %3863 = vmatpush1.bf16.msra.mxu0 %v3840
      %3864 = vmatprep.subr.bf16.mxu0 0
      %3865 = vmatpush1.bf16.msra.mxu0 %v3839
      %3866 = vmatprep.subr.bf16.mxu0 0
      %3867 = vmatpush2.bf16.msra.mxu0 0
      %3868 = vmatprep.subr.bf16.mxu0 0
      %3869 = vmatpush2.bf16.msra.mxu0 0
      %3870 = vmatprep.subr.bf16.mxu0 0
      %3871 = vmatpush2.bf16.msra.mxu0 0
      %3872 = vmatprep.subr.bf16.mxu0 0
      %3873 = vmatpush2.bf16.msra.mxu0 0
      %3874 = vmatprep.subr.bf16.mxu0 0
      %3875 = vmatpush2.bf16.msra.mxu0 0
      %3876 = vmatprep.subr.bf16.mxu0 0
      %3877 = vmatpush2.bf16.msra.mxu0 0
      %3878 = vmatprep.subr.bf16.mxu0 0
      %3879 = vmatpush2.bf16.msra.mxu0 0
      %3880 = vmatprep.subr.bf16.mxu0 0
      %3881 = vmatpush2.bf16.msra.mxu0 0
      %3882 = vmatprep.mubr.bf16.mxu0 0
      %3883 = vmatmul.mubr.bf16.gmra.mxu0 %v3848
      %v3884 = vpop.f32.mrf.mxu0
      %v3885 = vadd.f32 0.0, %v3884
      %v3886 = vpop.f32.mrf.mxu0
      %v3887 = vpop.f32.mrf.mxu0
      %v3888 = vpop.f32.mrf.mxu0
      %3889 = vdwg.mxu0
      %v3890 = vadd.f32 %v3767, %v3885
      %v3891 = vld [vmem:[%s8] sm:$0x1]
      %v3892 = vadd.f32 %v3890, %v3891
      %v3893 = vmax.f32 %v3892, 0.0
      %v3894 = vpack.c.bf16 %v3893, %v3893
      %v3895 = vld [vmem:[%s10] sm:$0x3]
      %v3896 = vld [vmem:[%s16] sm:$0x3]
      %v3897 = vld [vmem:[%s9] sm:$0xff]
      %v3898 = vld [vmem:[%s9 + $0x8] sm:$0xff]
      %v3899 = vld [vmem:[%s9 + $0x10] sm:$0xff]
      %v3900 = vld [vmem:[%s9 + $0x18] sm:$0xff]
      %v3901 = vld [vmem:[%s9 + $0x20] sm:$0xff]
      %v3902 = vld [vmem:[%s9 + $0x28] sm:$0xff]
      %v3903 = vld [vmem:[%s9 + $0x30] sm:$0xff]
      %v3904 = vld [vmem:[%s9 + $0x38] sm:$0xff]
      %v3913 = vunpack.c.l.b16 %v3897
      %v3914 = vunpack.c.h.b16 %v3897
      %v3915 = vunpack.c.l.b16 %v3898
      %v3916 = vunpack.c.h.b16 %v3898
      %v3917 = vunpack.c.l.b16 %v3899
      %v3918 = vunpack.c.h.b16 %v3899
      %v3919 = vunpack.c.l.b16 %v3900
      %v3920 = vunpack.c.h.b16 %v3900
      %v3921 = vunpack.c.l.b16 %v3901
      %v3922 = vunpack.c.h.b16 %v3901
      %v3923 = vunpack.c.l.b16 %v3902
      %v3924 = vunpack.c.h.b16 %v3902
      %v3925 = vunpack.c.l.b16 %v3903
      %v3926 = vunpack.c.h.b16 %v3903
      %v3927 = vunpack.c.l.b16 %v3904
      %v3928 = vunpack.c.h.b16 %v3904
      %v3929 = vpack.c.b16 %v3915, %v3913
      %v3930 = vpack.c.b16 %v3916, %v3914
      %v3931 = vpack.c.b16 %v3919, %v3917
      %v3932 = vpack.c.b16 %v3920, %v3918
      %v3933 = vpack.c.b16 %v3923, %v3921
      %v3934 = vpack.c.b16 %v3924, %v3922
      %v3935 = vpack.c.b16 %v3927, %v3925
      %v3936 = vpack.c.b16 %v3928, %v3926
      %v3946 = vsel %vm923, %v3894, 0
      %3948 = vmatprep.subr.bf16.mxu0 0
      %3949 = vmatpush1.bf16.msra.mxu0 0
      %3950 = vmatprep.subr.bf16.mxu0 0
      %3951 = vmatpush1.bf16.msra.mxu0 0
      %3952 = vmatprep.subr.bf16.mxu0 0
      %3953 = vmatpush1.bf16.msra.mxu0 0
      %3954 = vmatprep.subr.bf16.mxu0 0
      %3955 = vmatpush1.bf16.msra.mxu0 0
      %3956 = vmatprep.subr.bf16.mxu0 %v3936
      %3957 = vmatpush1.bf16.msra.mxu0 %v3935
      %3958 = vmatprep.subr.bf16.mxu0 %v3934
      %3959 = vmatpush1.bf16.msra.mxu0 %v3933
      %3960 = vmatprep.subr.bf16.mxu0 %v3932
      %3961 = vmatpush1.bf16.msra.mxu0 %v3931
      %3962 = vmatprep.subr.bf16.mxu0 %v3930
      %3963 = vmatpush1.bf16.msra.mxu0 %v3929
      %3964 = vmatprep.subr.bf16.mxu0 0
      %3965 = vmatpush2.bf16.msra.mxu0 0
      %3966 = vmatprep.subr.bf16.mxu0 0
      %3967 = vmatpush2.bf16.msra.mxu0 0
      %3968 = vmatprep.subr.bf16.mxu0 0
      %3969 = vmatpush2.bf16.msra.mxu0 0
      %3970 = vmatprep.subr.bf16.mxu0 0
      %3971 = vmatpush2.bf16.msra.mxu0 0
      %3972 = vmatprep.subr.bf16.mxu0 0
      %3973 = vmatpush2.bf16.msra.mxu0 0
      %3974 = vmatprep.subr.bf16.mxu0 0
      %3975 = vmatpush2.bf16.msra.mxu0 0
      %3976 = vmatprep.subr.bf16.mxu0 0
      %3977 = vmatpush2.bf16.msra.mxu0 0
      %3978 = vmatprep.subr.bf16.mxu0 0
      %3979 = vmatpush2.bf16.msra.mxu0 0
      %3980 = vmatprep.mubr.bf16.mxu0 0
      %3981 = vmatmul.mubr.bf16.gmra.mxu0 %v3946
      %v3982 = vpop.f32.mrf.mxu0
      %v3983 = vadd.f32 0.0, %v3982
      %v3984 = vpop.f32.mrf.mxu0
      %v3985 = vadd.f32 0.0, %v3984
      %v3986 = vpop.f32.mrf.mxu0
      %v3987 = vpop.f32.mrf.mxu0
      %3988 = vdwg.mxu0
      %v3991 = vcombine.low %v3983, %v3985
      %v3993 = vunpack.c.l.s4 1966171168
      %v3994 = vunpack.c.0.s8 %v3993
      %v3995 = vlaneseq
      %v3996 = vshrl.u32 %v3995, 7
      %v3997 = vsub.s32 %v3994, %v3996
      %v3998 = vrot.slane %v3991, %v3997
      %v4000 = vunpack.c.l.s4 1966171168
      %v4001 = vunpack.c.0.s8 %v4000
      %v4002 = vlaneseq
      %v4003 = vshrl.u32 %v4002, 7
      %v4004 = vsub.s32 %v4001, %v4003
      %v4005 = vrot.slane %v3998, %v4004
      %v4007 = vadd.f32 %v3895, %v4005
      %v4008 = vld [vmem:[%s15] sm:$0xff]
      %v4009 = vld [vmem:[%s15 + $0x8] sm:$0xff]
      %v4010 = vld [vmem:[%s15 + $0x10] sm:$0xff]
      %v4011 = vld [vmem:[%s15 + $0x18] sm:$0xff]
      %v4012 = vld [vmem:[%s15 + $0x20] sm:$0xff]
      %v4013 = vld [vmem:[%s15 + $0x28] sm:$0xff]
      %v4014 = vld [vmem:[%s15 + $0x30] sm:$0xff]
      %v4015 = vld [vmem:[%s15 + $0x38] sm:$0xff]
      %v4024 = vunpack.c.l.b16 %v4008
      %v4025 = vunpack.c.h.b16 %v4008
      %v4026 = vunpack.c.l.b16 %v4009
      %v4027 = vunpack.c.h.b16 %v4009
      %v4028 = vunpack.c.l.b16 %v4010
      %v4029 = vunpack.c.h.b16 %v4010
      %v4030 = vunpack.c.l.b16 %v4011
      %v4031 = vunpack.c.h.b16 %v4011
      %v4032 = vunpack.c.l.b16 %v4012
      %v4033 = vunpack.c.h.b16 %v4012
      %v4034 = vunpack.c.l.b16 %v4013
      %v4035 = vunpack.c.h.b16 %v4013
      %v4036 = vunpack.c.l.b16 %v4014
      %v4037 = vunpack.c.h.b16 %v4014
      %v4038 = vunpack.c.l.b16 %v4015
      %v4039 = vunpack.c.h.b16 %v4015
      %v4040 = vpack.c.b16 %v4026, %v4024
      %v4041 = vpack.c.b16 %v4027, %v4025
      %v4042 = vpack.c.b16 %v4030, %v4028
      %v4043 = vpack.c.b16 %v4031, %v4029
      %v4044 = vpack.c.b16 %v4034, %v4032
      %v4045 = vpack.c.b16 %v4035, %v4033
      %v4046 = vpack.c.b16 %v4038, %v4036
      %v4047 = vpack.c.b16 %v4039, %v4037
      %4056 = vmatprep.subr.bf16.mxu0 0
      %4057 = vmatpush1.bf16.msra.mxu0 0
      %4058 = vmatprep.subr.bf16.mxu0 0
      %4059 = vmatpush1.bf16.msra.mxu0 0
      %4060 = vmatprep.subr.bf16.mxu0 0
      %4061 = vmatpush1.bf16.msra.mxu0 0
      %4062 = vmatprep.subr.bf16.mxu0 0
      %4063 = vmatpush1.bf16.msra.mxu0 0
      %4064 = vmatprep.subr.bf16.mxu0 %v4047
      %4065 = vmatpush1.bf16.msra.mxu0 %v4046
      %4066 = vmatprep.subr.bf16.mxu0 %v4045
      %4067 = vmatpush1.bf16.msra.mxu0 %v4044
      %4068 = vmatprep.subr.bf16.mxu0 %v4043
      %4069 = vmatpush1.bf16.msra.mxu0 %v4042
      %4070 = vmatprep.subr.bf16.mxu0 %v4041
      %4071 = vmatpush1.bf16.msra.mxu0 %v4040
      %4072 = vmatprep.subr.bf16.mxu0 0
      %4073 = vmatpush2.bf16.msra.mxu0 0
      %4074 = vmatprep.subr.bf16.mxu0 0
      %4075 = vmatpush2.bf16.msra.mxu0 0
      %4076 = vmatprep.subr.bf16.mxu0 0
      %4077 = vmatpush2.bf16.msra.mxu0 0
      %4078 = vmatprep.subr.bf16.mxu0 0
      %4079 = vmatpush2.bf16.msra.mxu0 0
      %4080 = vmatprep.subr.bf16.mxu0 0
      %4081 = vmatpush2.bf16.msra.mxu0 0
      %4082 = vmatprep.subr.bf16.mxu0 0
      %4083 = vmatpush2.bf16.msra.mxu0 0
      %4084 = vmatprep.subr.bf16.mxu0 0
      %4085 = vmatpush2.bf16.msra.mxu0 0
      %4086 = vmatprep.subr.bf16.mxu0 0
      %4087 = vmatpush2.bf16.msra.mxu0 0
      %4088 = vmatprep.mubr.bf16.mxu0 0
      %4089 = vmatmul.mubr.bf16.gmra.mxu0 %v3946
      %v4090 = vpop.f32.mrf.mxu0
      %v4091 = vadd.f32 0.0, %v4090
      %v4092 = vpop.f32.mrf.mxu0
      %v4093 = vadd.f32 0.0, %v4092
      %v4094 = vpop.f32.mrf.mxu0
      %v4095 = vpop.f32.mrf.mxu0
      %4096 = vdwg.mxu0
      %v4099 = vcombine.low %v4091, %v4093
      %v4101 = vunpack.c.l.s4 1966171168
      %v4102 = vunpack.c.0.s8 %v4101
      %v4103 = vlaneseq
      %v4104 = vshrl.u32 %v4103, 7
      %v4105 = vsub.s32 %v4102, %v4104
      %v4106 = vrot.slane %v4099, %v4105
      %v4108 = vunpack.c.l.s4 1966171168
      %v4109 = vunpack.c.0.s8 %v4108
      %v4110 = vlaneseq
      %v4111 = vshrl.u32 %v4110, 7
      %v4112 = vsub.s32 %v4109, %v4111
      %v4113 = vrot.slane %v4106, %v4112
      %v4115 = vadd.f32 %v3896, %v4113
      %v4116 = vmax.f32 %v4007, 0.0
      %v4118 = vlaneseq
      %v4119 = vshrl.u32 %v4118, 7
      %v4120 = vsub.s32 0, %v4119
      %v4121 = vrot.slane %v4116, %v4120
      %v4122 = vlaneseq
      %v4123 = vshrl.u32 %v4122, 7
      %v4124 = vsub.s32 1, %v4123
      %v4125 = vrot.slane %v4116, %v4124
      %v4128 = vpack.c.bf16 %v4121, %v4121
      %v4129 = vpack.c.bf16 %v4125, %v4125
      %v4130 = vmax.f32 %v4115, 0.0
      %v4132 = vlaneseq
      %v4133 = vshrl.u32 %v4132, 7
      %v4134 = vsub.s32 0, %v4133
      %v4135 = vrot.slane %v4130, %v4134
      %v4136 = vlaneseq
      %v4137 = vshrl.u32 %v4136, 7
      %v4138 = vsub.s32 1, %v4137
      %v4139 = vrot.slane %v4130, %v4138
      %v4142 = vpack.c.bf16 %v4135, %v4135
      %v4143 = vpack.c.bf16 %v4139, %v4139
      %v4144 = vld [vmem:[%s11] sm:$0xff]
      %v4145 = vld [vmem:[%s11 + $0x8] sm:$0xf]
      %v4146 = vld [vmem:[%s11 + $0xc] sm:$0xff]
      %v4147 = vld [vmem:[%s11 + $0x14] sm:$0xf]
      %v4148 = vld [vmem:[%s11 + $0x18] sm:$0xff]
      %v4149 = vld [vmem:[%s11 + $0x20] sm:$0xf]
      %v4150 = vld [vmem:[%s11 + $0x24] sm:$0xff]
      %v4151 = vld [vmem:[%s11 + $0x2c] sm:$0xf]
      %v4152 = vld [vmem:[%s11 + $0x30] sm:$0xff]
      %v4153 = vld [vmem:[%s11 + $0x38] sm:$0xf]
      %v4154 = vld [vmem:[%s11 + $0x3c] sm:$0xff]
      %v4155 = vld [vmem:[%s11 + $0x44] sm:$0xf]
      %v4156 = vld [vmem:[%s11 + $0x48] sm:$0xff]
      %v4157 = vld [vmem:[%s11 + $0x50] sm:$0xf]
      %v4158 = vld [vmem:[%s11 + $0x54] sm:$0xff]
      %v4159 = vld [vmem:[%s11 + $0x5c] sm:$0xf]
      %v4160 = vld [vmem:[%s11 + $0x60] sm:$0xff]
      %v4161 = vld [vmem:[%s11 + $0x68] sm:$0xf]
      %v4162 = vld [vmem:[%s11 + $0x6c] sm:$0xff]
      %v4163 = vld [vmem:[%s11 + $0x74] sm:$0xf]
      %v4164 = vld [vmem:[%s11 + $0x78] sm:$0xff]
      %v4165 = vld [vmem:[%s11 + $0x80] sm:$0xf]
      %v4166 = vld [vmem:[%s11 + $0x84] sm:$0xff]
      %v4167 = vld [vmem:[%s11 + $0x8c] sm:$0xf]
      %v4168 = vld [vmem:[%s11 + $0x90] sm:$0xff]
      %v4169 = vld [vmem:[%s11 + $0x98] sm:$0xf]
      %v4170 = vld [vmem:[%s11 + $0x9c] sm:$0xff]
      %v4171 = vld [vmem:[%s11 + $0xa4] sm:$0xf]
      %v4172 = vld [vmem:[%s11 + $0xa8] sm:$0xff]
      %v4173 = vld [vmem:[%s11 + $0xb0] sm:$0xf]
      %v4174 = vld [vmem:[%s11 + $0xb4] sm:$0xff]
      %v4175 = vld [vmem:[%s11 + $0xbc] sm:$0xf]
      %v4176 = vld [vmem:[%s11 + $0xc0] sm:$0xff]
      %v4177 = vld [vmem:[%s11 + $0xc8] sm:$0xf]
      %v4178 = vld [vmem:[%s11 + $0xcc] sm:$0xff]
      %v4179 = vld [vmem:[%s11 + $0xd4] sm:$0xf]
      %v4180 = vld [vmem:[%s11 + $0xd8] sm:$0xff]
      %v4181 = vld [vmem:[%s11 + $0xe0] sm:$0xf]
      %v4182 = vld [vmem:[%s11 + $0xe4] sm:$0xff]
      %v4183 = vld [vmem:[%s11 + $0xec] sm:$0xf]
      %v4184 = vld [vmem:[%s11 + $0xf0] sm:$0xff]
      %v4185 = vld [vmem:[%s11 + $0xf8] sm:$0xf]
      %v4186 = vld [vmem:[%s11 + $0xfc] sm:$0xff]
      %v4187 = vld [vmem:[%s11 + $0x104] sm:$0xf]
      %v4188 = vld [vmem:[%s11 + $0x108] sm:$0xff]
      %v4189 = vld [vmem:[%s11 + $0x110] sm:$0xf]
      %v4190 = vld [vmem:[%s11 + $0x114] sm:$0xff]
      %v4191 = vld [vmem:[%s11 + $0x11c] sm:$0xf]
      %v4192 = vld [vmem:[%s12] sm:$0x7]
      %v4241 = vunpack.c.l.b16 %v4144
      %v4242 = vunpack.c.h.b16 %v4144
      %v4243 = vunpack.c.l.b16 %v4145
      %v4244 = vunpack.c.l.b16 %v4146
      %v4245 = vunpack.c.h.b16 %v4146
      %v4246 = vunpack.c.l.b16 %v4147
      %v4247 = vunpack.c.l.b16 %v4148
      %v4248 = vunpack.c.h.b16 %v4148
      %v4249 = vunpack.c.l.b16 %v4149
      %v4250 = vunpack.c.l.b16 %v4150
      %v4251 = vunpack.c.h.b16 %v4150
      %v4252 = vunpack.c.l.b16 %v4151
      %v4253 = vunpack.c.l.b16 %v4152
      %v4254 = vunpack.c.h.b16 %v4152
      %v4255 = vunpack.c.l.b16 %v4153
      %v4256 = vunpack.c.l.b16 %v4154
      %v4257 = vunpack.c.h.b16 %v4154
      %v4258 = vunpack.c.l.b16 %v4155
      %v4259 = vunpack.c.l.b16 %v4156
      %v4260 = vunpack.c.h.b16 %v4156
      %v4261 = vunpack.c.l.b16 %v4157
      %v4262 = vunpack.c.l.b16 %v4158
      %v4263 = vunpack.c.h.b16 %v4158
      %v4264 = vunpack.c.l.b16 %v4159
      %v4265 = vunpack.c.l.b16 %v4160
      %v4266 = vunpack.c.h.b16 %v4160
      %v4267 = vunpack.c.l.b16 %v4161
      %v4268 = vunpack.c.l.b16 %v4162
      %v4269 = vunpack.c.h.b16 %v4162
      %v4270 = vunpack.c.l.b16 %v4163
      %v4271 = vunpack.c.l.b16 %v4164
      %v4272 = vunpack.c.h.b16 %v4164
      %v4273 = vunpack.c.l.b16 %v4165
      %v4274 = vunpack.c.l.b16 %v4166
      %v4275 = vunpack.c.h.b16 %v4166
      %v4276 = vunpack.c.l.b16 %v4167
      %v4277 = vunpack.c.l.b16 %v4168
      %v4278 = vunpack.c.h.b16 %v4168
      %v4279 = vunpack.c.l.b16 %v4169
      %v4280 = vunpack.c.l.b16 %v4170
      %v4281 = vunpack.c.h.b16 %v4170
      %v4282 = vunpack.c.l.b16 %v4171
      %v4283 = vunpack.c.l.b16 %v4172
      %v4284 = vunpack.c.h.b16 %v4172
      %v4285 = vunpack.c.l.b16 %v4173
      %v4286 = vunpack.c.l.b16 %v4174
      %v4287 = vunpack.c.h.b16 %v4174
      %v4288 = vunpack.c.l.b16 %v4175
      %v4289 = vunpack.c.l.b16 %v4176
      %v4290 = vunpack.c.h.b16 %v4176
      %v4291 = vunpack.c.l.b16 %v4177
      %v4292 = vunpack.c.l.b16 %v4178
      %v4293 = vunpack.c.h.b16 %v4178
      %v4294 = vunpack.c.l.b16 %v4179
      %v4295 = vunpack.c.l.b16 %v4180
      %v4296 = vunpack.c.h.b16 %v4180
      %v4297 = vunpack.c.l.b16 %v4181
      %v4298 = vunpack.c.l.b16 %v4182
      %v4299 = vunpack.c.h.b16 %v4182
      %v4300 = vunpack.c.l.b16 %v4183
      %v4301 = vunpack.c.l.b16 %v4184
      %v4302 = vunpack.c.h.b16 %v4184
      %v4303 = vunpack.c.l.b16 %v4185
      %v4304 = vunpack.c.l.b16 %v4186
      %v4305 = vunpack.c.h.b16 %v4186
      %v4306 = vunpack.c.l.b16 %v4187
      %v4307 = vunpack.c.l.b16 %v4188
      %v4308 = vunpack.c.h.b16 %v4188
      %v4309 = vunpack.c.l.b16 %v4189
      %v4310 = vunpack.c.l.b16 %v4190
      %v4311 = vunpack.c.h.b16 %v4190
      %v4312 = vunpack.c.l.b16 %v4191
      %v4313 = vpack.c.b16 %v4244, %v4241
      %v4314 = vpack.c.b16 %v4245, %v4242
      %v4315 = vpack.c.b16 %v4246, %v4243
      %v4316 = vpack.c.b16 %v4250, %v4247
      %v4317 = vpack.c.b16 %v4251, %v4248
      %v4318 = vpack.c.b16 %v4252, %v4249
      %v4319 = vpack.c.b16 %v4256, %v4253
      %v4320 = vpack.c.b16 %v4257, %v4254
      %v4321 = vpack.c.b16 %v4258, %v4255
      %v4322 = vpack.c.b16 %v4262, %v4259
      %v4323 = vpack.c.b16 %v4263, %v4260
      %v4324 = vpack.c.b16 %v4264, %v4261
      %v4325 = vpack.c.b16 %v4268, %v4265
      %v4326 = vpack.c.b16 %v4269, %v4266
      %v4327 = vpack.c.b16 %v4270, %v4267
      %v4328 = vpack.c.b16 %v4274, %v4271
      %v4329 = vpack.c.b16 %v4275, %v4272
      %v4330 = vpack.c.b16 %v4276, %v4273
      %v4331 = vpack.c.b16 %v4280, %v4277
      %v4332 = vpack.c.b16 %v4281, %v4278
      %v4333 = vpack.c.b16 %v4282, %v4279
      %v4334 = vpack.c.b16 %v4286, %v4283
      %v4335 = vpack.c.b16 %v4287, %v4284
      %v4336 = vpack.c.b16 %v4288, %v4285
      %v4337 = vpack.c.b16 %v4292, %v4289
      %v4338 = vpack.c.b16 %v4293, %v4290
      %v4339 = vpack.c.b16 %v4294, %v4291
      %v4340 = vpack.c.b16 %v4298, %v4295
      %v4341 = vpack.c.b16 %v4299, %v4296
      %v4342 = vpack.c.b16 %v4300, %v4297
      %v4343 = vpack.c.b16 %v4304, %v4301
      %v4344 = vpack.c.b16 %v4305, %v4302
      %v4345 = vpack.c.b16 %v4306, %v4303
      %v4346 = vpack.c.b16 %v4310, %v4307
      %v4347 = vpack.c.b16 %v4311, %v4308
      %v4348 = vpack.c.b16 %v4312, %v4309
      %v4386 = vlaneseq
      %v4387 = vshrl.u32 %v4386, 7
      %v4388 = vsub.s32 0, %v4387
      %v4389 = vrot.slane %v4192, %v4388
      %v4390 = vlaneseq
      %v4391 = vshrl.u32 %v4390, 7
      %v4392 = vsub.s32 1, %v4391
      %v4393 = vrot.slane %v4192, %v4392
      %v4394 = vlaneseq
      %v4395 = vshrl.u32 %v4394, 7
      %v4396 = vsub.s32 2, %v4395
      %v4397 = vrot.slane %v4192, %v4396
      %v4402 = vsel %vm923, %v4129, 0
      %4404 = vmatprep.subr.bf16.mxu0 %v4335
      %4405 = vmatpush1.bf16.msra.mxu0 %v4334
      %4406 = vmatprep.subr.bf16.mxu0 %v4332
      %4407 = vmatpush1.bf16.msra.mxu0 %v4331
      %4408 = vmatprep.subr.bf16.mxu0 %v4329
      %4409 = vmatpush1.bf16.msra.mxu0 %v4328
      %4410 = vmatprep.subr.bf16.mxu0 %v4326
      %4411 = vmatpush1.bf16.msra.mxu0 %v4325
      %4412 = vmatprep.subr.bf16.mxu0 %v4323
      %4413 = vmatpush1.bf16.msra.mxu0 %v4322
      %4414 = vmatprep.subr.bf16.mxu0 %v4320
      %4415 = vmatpush1.bf16.msra.mxu0 %v4319
      %4416 = vmatprep.subr.bf16.mxu0 %v4317
      %4417 = vmatpush1.bf16.msra.mxu0 %v4316
      %4418 = vmatprep.subr.bf16.mxu0 %v4314
      %4419 = vmatpush1.bf16.msra.mxu0 %v4313
      %4420 = vmatprep.subr.bf16.mxu0 0
      %4421 = vmatpush2.bf16.msra.mxu0 0
      %4422 = vmatprep.subr.bf16.mxu0 0
      %4423 = vmatpush2.bf16.msra.mxu0 0
      %4424 = vmatprep.subr.bf16.mxu0 0
      %4425 = vmatpush2.bf16.msra.mxu0 0
      %4426 = vmatprep.subr.bf16.mxu0 0
      %4427 = vmatpush2.bf16.msra.mxu0 0
      %4428 = vmatprep.subr.bf16.mxu0 %v4347
      %4429 = vmatpush2.bf16.msra.mxu0 %v4346
      %4430 = vmatprep.subr.bf16.mxu0 %v4344
      %4431 = vmatpush2.bf16.msra.mxu0 %v4343
      %4432 = vmatprep.subr.bf16.mxu0 %v4341
      %4433 = vmatpush2.bf16.msra.mxu0 %v4340
      %4434 = vmatprep.subr.bf16.mxu0 %v4338
      %4435 = vmatpush2.bf16.msra.mxu0 %v4337
      %4436 = vmatprep.mubr.bf16.mxu0 %v4402
      %4437 = vmatmul.mubr.bf16.gmra.mxu0 %v4128
      %v4438 = vpop.f32.mrf.mxu0
      %v4439 = vadd.f32 %v4389, %v4438
      %v4440 = vpop.f32.mrf.mxu0
      %v4441 = vadd.f32 %v4393, %v4440
      %v4442 = vpop.f32.mrf.mxu0
      %v4443 = vpop.f32.mrf.mxu0
      %4444 = vdwg.mxu0
      %4445 = vmatprep.subr.bf16.mxu0 0
      %4446 = vmatpush1.bf16.msra.mxu0 %v4336
      %4447 = vmatprep.subr.bf16.mxu0 0
      %4448 = vmatpush1.bf16.msra.mxu0 %v4333
      %4449 = vmatprep.subr.bf16.mxu0 0
      %4450 = vmatpush1.bf16.msra.mxu0 %v4330
      %4451 = vmatprep.subr.bf16.mxu0 0
      %4452 = vmatpush1.bf16.msra.mxu0 %v4327
      %4453 = vmatprep.subr.bf16.mxu0 0
      %4454 = vmatpush1.bf16.msra.mxu0 %v4324
      %4455 = vmatprep.subr.bf16.mxu0 0
      %4456 = vmatpush1.bf16.msra.mxu0 %v4321
      %4457 = vmatprep.subr.bf16.mxu0 0
      %4458 = vmatpush1.bf16.msra.mxu0 %v4318
      %4459 = vmatprep.subr.bf16.mxu0 0
      %4460 = vmatpush1.bf16.msra.mxu0 %v4315
      %4461 = vmatprep.subr.bf16.mxu0 0
      %4462 = vmatpush2.bf16.msra.mxu0 0
      %4463 = vmatprep.subr.bf16.mxu0 0
      %4464 = vmatpush2.bf16.msra.mxu0 0
      %4465 = vmatprep.subr.bf16.mxu0 0
      %4466 = vmatpush2.bf16.msra.mxu0 0
      %4467 = vmatprep.subr.bf16.mxu0 0
      %4468 = vmatpush2.bf16.msra.mxu0 0
      %4469 = vmatprep.subr.bf16.mxu0 0
      %4470 = vmatpush2.bf16.msra.mxu0 %v4348
      %4471 = vmatprep.subr.bf16.mxu0 0
      %4472 = vmatpush2.bf16.msra.mxu0 %v4345
      %4473 = vmatprep.subr.bf16.mxu0 0
      %4474 = vmatpush2.bf16.msra.mxu0 %v4342
      %4475 = vmatprep.subr.bf16.mxu0 0
      %4476 = vmatpush2.bf16.msra.mxu0 %v4339
      %4477 = vmatprep.mubr.bf16.mxu0 %v4402
      %4478 = vmatmul.mubr.bf16.gmra.mxu0 %v4128
      %v4479 = vpop.f32.mrf.mxu0
      %v4480 = vadd.f32 %v4397, %v4479
      %v4481 = vpop.f32.mrf.mxu0
      %v4482 = vpop.f32.mrf.mxu0
      %v4483 = vpop.f32.mrf.mxu0
      %4484 = vdwg.mxu0
      %v4485 = vmax.f32 %v4439, 0.0
      %v4486 = vmax.f32 %v4441, 0.0
      %v4487 = vmax.f32 %v4480, 0.0
      %v4488 = vpack.c.bf16 %v4485, %v4485
      %v4489 = vpack.c.bf16 %v4486, %v4486
      %v4490 = vpack.c.bf16 %v4487, %v4487
      %v4491 = vld [vmem:[%s17] sm:$0xff]
      %v4492 = vld [vmem:[%s17 + $0x8] sm:$0xf]
      %v4493 = vld [vmem:[%s17 + $0xc] sm:$0xff]
      %v4494 = vld [vmem:[%s17 + $0x14] sm:$0xf]
      %v4495 = vld [vmem:[%s17 + $0x18] sm:$0xff]
      %v4496 = vld [vmem:[%s17 + $0x20] sm:$0xf]
      %v4497 = vld [vmem:[%s17 + $0x24] sm:$0xff]
      %v4498 = vld [vmem:[%s17 + $0x2c] sm:$0xf]
      %v4499 = vld [vmem:[%s17 + $0x30] sm:$0xff]
      %v4500 = vld [vmem:[%s17 + $0x38] sm:$0xf]
      %v4501 = vld [vmem:[%s17 + $0x3c] sm:$0xff]
      %v4502 = vld [vmem:[%s17 + $0x44] sm:$0xf]
      %v4503 = vld [vmem:[%s17 + $0x48] sm:$0xff]
      %v4504 = vld [vmem:[%s17 + $0x50] sm:$0xf]
      %v4505 = vld [vmem:[%s17 + $0x54] sm:$0xff]
      %v4506 = vld [vmem:[%s17 + $0x5c] sm:$0xf]
      %v4507 = vld [vmem:[%s17 + $0x60] sm:$0xff]
      %v4508 = vld [vmem:[%s17 + $0x68] sm:$0xf]
      %v4509 = vld [vmem:[%s17 + $0x6c] sm:$0xff]
      %v4510 = vld [vmem:[%s17 + $0x74] sm:$0xf]
      %v4511 = vld [vmem:[%s17 + $0x78] sm:$0xff]
      %v4512 = vld [vmem:[%s17 + $0x80] sm:$0xf]
      %v4513 = vld [vmem:[%s17 + $0x84] sm:$0xff]
      %v4514 = vld [vmem:[%s17 + $0x8c] sm:$0xf]
      %v4515 = vld [vmem:[%s17 + $0x90] sm:$0xff]
      %v4516 = vld [vmem:[%s17 + $0x98] sm:$0xf]
      %v4517 = vld [vmem:[%s17 + $0x9c] sm:$0xff]
      %v4518 = vld [vmem:[%s17 + $0xa4] sm:$0xf]
      %v4519 = vld [vmem:[%s17 + $0xa8] sm:$0xff]
      %v4520 = vld [vmem:[%s17 + $0xb0] sm:$0xf]
      %v4521 = vld [vmem:[%s17 + $0xb4] sm:$0xff]
      %v4522 = vld [vmem:[%s17 + $0xbc] sm:$0xf]
      %v4523 = vld [vmem:[%s17 + $0xc0] sm:$0xff]
      %v4524 = vld [vmem:[%s17 + $0xc8] sm:$0xf]
      %v4525 = vld [vmem:[%s17 + $0xcc] sm:$0xff]
      %v4526 = vld [vmem:[%s17 + $0xd4] sm:$0xf]
      %v4527 = vld [vmem:[%s17 + $0xd8] sm:$0xff]
      %v4528 = vld [vmem:[%s17 + $0xe0] sm:$0xf]
      %v4529 = vld [vmem:[%s17 + $0xe4] sm:$0xff]
      %v4530 = vld [vmem:[%s17 + $0xec] sm:$0xf]
      %v4531 = vld [vmem:[%s17 + $0xf0] sm:$0xff]
      %v4532 = vld [vmem:[%s17 + $0xf8] sm:$0xf]
      %v4533 = vld [vmem:[%s17 + $0xfc] sm:$0xff]
      %v4534 = vld [vmem:[%s17 + $0x104] sm:$0xf]
      %v4535 = vld [vmem:[%s17 + $0x108] sm:$0xff]
      %v4536 = vld [vmem:[%s17 + $0x110] sm:$0xf]
      %v4537 = vld [vmem:[%s17 + $0x114] sm:$0xff]
      %v4538 = vld [vmem:[%s17 + $0x11c] sm:$0xf]
      %v4539 = vld [vmem:[%s18] sm:$0x7]
      %v4588 = vunpack.c.l.b16 %v4491
      %v4589 = vunpack.c.h.b16 %v4491
      %v4590 = vunpack.c.l.b16 %v4492
      %v4591 = vunpack.c.l.b16 %v4493
      %v4592 = vunpack.c.h.b16 %v4493
      %v4593 = vunpack.c.l.b16 %v4494
      %v4594 = vunpack.c.l.b16 %v4495
      %v4595 = vunpack.c.h.b16 %v4495
      %v4596 = vunpack.c.l.b16 %v4496
      %v4597 = vunpack.c.l.b16 %v4497
      %v4598 = vunpack.c.h.b16 %v4497
      %v4599 = vunpack.c.l.b16 %v4498
      %v4600 = vunpack.c.l.b16 %v4499
      %v4601 = vunpack.c.h.b16 %v4499
      %v4602 = vunpack.c.l.b16 %v4500
      %v4603 = vunpack.c.l.b16 %v4501
      %v4604 = vunpack.c.h.b16 %v4501
      %v4605 = vunpack.c.l.b16 %v4502
      %v4606 = vunpack.c.l.b16 %v4503
      %v4607 = vunpack.c.h.b16 %v4503
      %v4608 = vunpack.c.l.b16 %v4504
      %v4609 = vunpack.c.l.b16 %v4505
      %v4610 = vunpack.c.h.b16 %v4505
      %v4611 = vunpack.c.l.b16 %v4506
      %v4612 = vunpack.c.l.b16 %v4507
      %v4613 = vunpack.c.h.b16 %v4507
      %v4614 = vunpack.c.l.b16 %v4508
      %v4615 = vunpack.c.l.b16 %v4509
      %v4616 = vunpack.c.h.b16 %v4509
      %v4617 = vunpack.c.l.b16 %v4510
      %v4618 = vunpack.c.l.b16 %v4511
      %v4619 = vunpack.c.h.b16 %v4511
      %v4620 = vunpack.c.l.b16 %v4512
      %v4621 = vunpack.c.l.b16 %v4513
      %v4622 = vunpack.c.h.b16 %v4513
      %v4623 = vunpack.c.l.b16 %v4514
      %v4624 = vunpack.c.l.b16 %v4515
      %v4625 = vunpack.c.h.b16 %v4515
      %v4626 = vunpack.c.l.b16 %v4516
      %v4627 = vunpack.c.l.b16 %v4517
      %v4628 = vunpack.c.h.b16 %v4517
      %v4629 = vunpack.c.l.b16 %v4518
      %v4630 = vunpack.c.l.b16 %v4519
      %v4631 = vunpack.c.h.b16 %v4519
      %v4632 = vunpack.c.l.b16 %v4520
      %v4633 = vunpack.c.l.b16 %v4521
      %v4634 = vunpack.c.h.b16 %v4521
      %v4635 = vunpack.c.l.b16 %v4522
      %v4636 = vunpack.c.l.b16 %v4523
      %v4637 = vunpack.c.h.b16 %v4523
      %v4638 = vunpack.c.l.b16 %v4524
      %v4639 = vunpack.c.l.b16 %v4525
      %v4640 = vunpack.c.h.b16 %v4525
      %v4641 = vunpack.c.l.b16 %v4526
      %v4642 = vunpack.c.l.b16 %v4527
      %v4643 = vunpack.c.h.b16 %v4527
      %v4644 = vunpack.c.l.b16 %v4528
      %v4645 = vunpack.c.l.b16 %v4529
      %v4646 = vunpack.c.h.b16 %v4529
      %v4647 = vunpack.c.l.b16 %v4530
      %v4648 = vunpack.c.l.b16 %v4531
      %v4649 = vunpack.c.h.b16 %v4531
      %v4650 = vunpack.c.l.b16 %v4532
      %v4651 = vunpack.c.l.b16 %v4533
      %v4652 = vunpack.c.h.b16 %v4533
      %v4653 = vunpack.c.l.b16 %v4534
      %v4654 = vunpack.c.l.b16 %v4535
      %v4655 = vunpack.c.h.b16 %v4535
      %v4656 = vunpack.c.l.b16 %v4536
      %v4657 = vunpack.c.l.b16 %v4537
      %v4658 = vunpack.c.h.b16 %v4537
      %v4659 = vunpack.c.l.b16 %v4538
      %v4660 = vpack.c.b16 %v4591, %v4588
      %v4661 = vpack.c.b16 %v4592, %v4589
      %v4662 = vpack.c.b16 %v4593, %v4590
      %v4663 = vpack.c.b16 %v4597, %v4594
      %v4664 = vpack.c.b16 %v4598, %v4595
      %v4665 = vpack.c.b16 %v4599, %v4596
      %v4666 = vpack.c.b16 %v4603, %v4600
      %v4667 = vpack.c.b16 %v4604, %v4601
      %v4668 = vpack.c.b16 %v4605, %v4602
      %v4669 = vpack.c.b16 %v4609, %v4606
      %v4670 = vpack.c.b16 %v4610, %v4607
      %v4671 = vpack.c.b16 %v4611, %v4608
      %v4672 = vpack.c.b16 %v4615, %v4612
      %v4673 = vpack.c.b16 %v4616, %v4613
      %v4674 = vpack.c.b16 %v4617, %v4614
      %v4675 = vpack.c.b16 %v4621, %v4618
      %v4676 = vpack.c.b16 %v4622, %v4619
      %v4677 = vpack.c.b16 %v4623, %v4620
      %v4678 = vpack.c.b16 %v4627, %v4624
      %v4679 = vpack.c.b16 %v4628, %v4625
      %v4680 = vpack.c.b16 %v4629, %v4626
      %v4681 = vpack.c.b16 %v4633, %v4630
      %v4682 = vpack.c.b16 %v4634, %v4631
      %v4683 = vpack.c.b16 %v4635, %v4632
      %v4684 = vpack.c.b16 %v4639, %v4636
      %v4685 = vpack.c.b16 %v4640, %v4637
      %v4686 = vpack.c.b16 %v4641, %v4638
      %v4687 = vpack.c.b16 %v4645, %v4642
      %v4688 = vpack.c.b16 %v4646, %v4643
      %v4689 = vpack.c.b16 %v4647, %v4644
      %v4690 = vpack.c.b16 %v4651, %v4648
      %v4691 = vpack.c.b16 %v4652, %v4649
      %v4692 = vpack.c.b16 %v4653, %v4650
      %v4693 = vpack.c.b16 %v4657, %v4654
      %v4694 = vpack.c.b16 %v4658, %v4655
      %v4695 = vpack.c.b16 %v4659, %v4656
      %v4733 = vlaneseq
      %v4734 = vshrl.u32 %v4733, 7
      %v4735 = vsub.s32 0, %v4734
      %v4736 = vrot.slane %v4539, %v4735
      %v4737 = vlaneseq
      %v4738 = vshrl.u32 %v4737, 7
      %v4739 = vsub.s32 1, %v4738
      %v4740 = vrot.slane %v4539, %v4739
      %v4741 = vlaneseq
      %v4742 = vshrl.u32 %v4741, 7
      %v4743 = vsub.s32 2, %v4742
      %v4744 = vrot.slane %v4539, %v4743
      %v4749 = vsel %vm923, %v4143, 0
      %4751 = vmatprep.subr.bf16.mxu0 %v4682
      %4752 = vmatpush1.bf16.msra.mxu0 %v4681
      %4753 = vmatprep.subr.bf16.mxu0 %v4679
      %4754 = vmatpush1.bf16.msra.mxu0 %v4678
      %4755 = vmatprep.subr.bf16.mxu0 %v4676
      %4756 = vmatpush1.bf16.msra.mxu0 %v4675
      %4757 = vmatprep.subr.bf16.mxu0 %v4673
      %4758 = vmatpush1.bf16.msra.mxu0 %v4672
      %4759 = vmatprep.subr.bf16.mxu0 %v4670
      %4760 = vmatpush1.bf16.msra.mxu0 %v4669
      %4761 = vmatprep.subr.bf16.mxu0 %v4667
      %4762 = vmatpush1.bf16.msra.mxu0 %v4666
      %4763 = vmatprep.subr.bf16.mxu0 %v4664
      %4764 = vmatpush1.bf16.msra.mxu0 %v4663
      %4765 = vmatprep.subr.bf16.mxu0 %v4661
      %4766 = vmatpush1.bf16.msra.mxu0 %v4660
      %4767 = vmatprep.subr.bf16.mxu0 0
      %4768 = vmatpush2.bf16.msra.mxu0 0
      %4769 = vmatprep.subr.bf16.mxu0 0
      %4770 = vmatpush2.bf16.msra.mxu0 0
      %4771 = vmatprep.subr.bf16.mxu0 0
      %4772 = vmatpush2.bf16.msra.mxu0 0
      %4773 = vmatprep.subr.bf16.mxu0 0
      %4774 = vmatpush2.bf16.msra.mxu0 0
      %4775 = vmatprep.subr.bf16.mxu0 %v4694
      %4776 = vmatpush2.bf16.msra.mxu0 %v4693
      %4777 = vmatprep.subr.bf16.mxu0 %v4691
      %4778 = vmatpush2.bf16.msra.mxu0 %v4690
      %4779 = vmatprep.subr.bf16.mxu0 %v4688
      %4780 = vmatpush2.bf16.msra.mxu0 %v4687
      %4781 = vmatprep.subr.bf16.mxu0 %v4685
      %4782 = vmatpush2.bf16.msra.mxu0 %v4684
      %4783 = vmatprep.mubr.bf16.mxu0 %v4749
      %4784 = vmatmul.mubr.bf16.gmra.mxu0 %v4142
      %v4785 = vpop.f32.mrf.mxu0
      %v4786 = vadd.f32 %v4736, %v4785
      %v4787 = vpop.f32.mrf.mxu0
      %v4788 = vadd.f32 %v4740, %v4787
      %v4789 = vpop.f32.mrf.mxu0
      %v4790 = vpop.f32.mrf.mxu0
      %4791 = vdwg.mxu0
      %4792 = vmatprep.subr.bf16.mxu0 0
      %4793 = vmatpush1.bf16.msra.mxu0 %v4683
      %4794 = vmatprep.subr.bf16.mxu0 0
      %4795 = vmatpush1.bf16.msra.mxu0 %v4680
      %4796 = vmatprep.subr.bf16.mxu0 0
      %4797 = vmatpush1.bf16.msra.mxu0 %v4677
      %4798 = vmatprep.subr.bf16.mxu0 0
      %4799 = vmatpush1.bf16.msra.mxu0 %v4674
      %4800 = vmatprep.subr.bf16.mxu0 0
      %4801 = vmatpush1.bf16.msra.mxu0 %v4671
      %4802 = vmatprep.subr.bf16.mxu0 0
      %4803 = vmatpush1.bf16.msra.mxu0 %v4668
      %4804 = vmatprep.subr.bf16.mxu0 0
      %4805 = vmatpush1.bf16.msra.mxu0 %v4665
      %4806 = vmatprep.subr.bf16.mxu0 0
      %4807 = vmatpush1.bf16.msra.mxu0 %v4662
      %4808 = vmatprep.subr.bf16.mxu0 0
      %4809 = vmatpush2.bf16.msra.mxu0 0
      %4810 = vmatprep.subr.bf16.mxu0 0
      %4811 = vmatpush2.bf16.msra.mxu0 0
      %4812 = vmatprep.subr.bf16.mxu0 0
      %4813 = vmatpush2.bf16.msra.mxu0 0
      %4814 = vmatprep.subr.bf16.mxu0 0
      %4815 = vmatpush2.bf16.msra.mxu0 0
      %4816 = vmatprep.subr.bf16.mxu0 0
      %4817 = vmatpush2.bf16.msra.mxu0 %v4695
      %4818 = vmatprep.subr.bf16.mxu0 0
      %4819 = vmatpush2.bf16.msra.mxu0 %v4692
      %4820 = vmatprep.subr.bf16.mxu0 0
      %4821 = vmatpush2.bf16.msra.mxu0 %v4689
      %4822 = vmatprep.subr.bf16.mxu0 0
      %4823 = vmatpush2.bf16.msra.mxu0 %v4686
      %4824 = vmatprep.mubr.bf16.mxu0 %v4749
      %4825 = vmatmul.mubr.bf16.gmra.mxu0 %v4142
      %v4826 = vpop.f32.mrf.mxu0
      %v4827 = vadd.f32 %v4744, %v4826
      %v4828 = vpop.f32.mrf.mxu0
      %v4829 = vpop.f32.mrf.mxu0
      %v4830 = vpop.f32.mrf.mxu0
      %4831 = vdwg.mxu0
      %v4832 = vmax.f32 %v4786, 0.0
      %v4833 = vmax.f32 %v4788, 0.0
      %v4834 = vmax.f32 %v4827, 0.0
      %v4835 = vpack.c.bf16 %v4832, %v4832
      %v4836 = vpack.c.bf16 %v4833, %v4833
      %v4837 = vpack.c.bf16 %v4834, %v4834
      %v4838 = vld [vmem:[%s13] sm:$0xf]
      %v4839 = vld [vmem:[%s13 + $0x4] sm:$0xf]
      %v4840 = vld [vmem:[%s13 + $0x8] sm:$0xf]
      %v4841 = vld [vmem:[%s13 + $0xc] sm:$0xf]
      %v4842 = vld [vmem:[%s13 + $0x10] sm:$0xf]
      %v4843 = vld [vmem:[%s13 + $0x14] sm:$0xf]
      %v4844 = vld [vmem:[%s13 + $0x18] sm:$0xf]
      %v4845 = vld [vmem:[%s13 + $0x1c] sm:$0xf]
      %v4846 = vld [vmem:[%s13 + $0x20] sm:$0xf]
      %v4847 = vld [vmem:[%s13 + $0x24] sm:$0xf]
      %v4848 = vld [vmem:[%s13 + $0x28] sm:$0xf]
      %v4849 = vld [vmem:[%s13 + $0x2c] sm:$0xf]
      %v4850 = vld [vmem:[%s13 + $0x30] sm:$0xf]
      %v4851 = vld [vmem:[%s13 + $0x34] sm:$0xf]
      %v4852 = vld [vmem:[%s13 + $0x38] sm:$0xf]
      %v4853 = vld [vmem:[%s13 + $0x3c] sm:$0xf]
      %v4854 = vld [vmem:[%s13 + $0x40] sm:$0xf]
      %v4855 = vld [vmem:[%s13 + $0x44] sm:$0xf]
      %v4856 = vld [vmem:[%s13 + $0x48] sm:$0xf]
      %v4857 = vld [vmem:[%s13 + $0x4c] sm:$0xf]
      %v4858 = vld [vmem:[%s13 + $0x50] sm:$0xf]
      %v4859 = vld [vmem:[%s13 + $0x54] sm:$0xf]
      %v4860 = vld [vmem:[%s13 + $0x58] sm:$0xf]
      %v4861 = vld [vmem:[%s13 + $0x5c] sm:$0xf]
      %v4862 = vld [vmem:[%s13 + $0x60] sm:$0xf]
      %v4863 = vld [vmem:[%s13 + $0x64] sm:$0xf]
      %v4864 = vld [vmem:[%s13 + $0x68] sm:$0xf]
      %v4865 = vld [vmem:[%s13 + $0x6c] sm:$0xf]
      %v4866 = vld [vmem:[%s13 + $0x70] sm:$0xf]
      %v4867 = vld [vmem:[%s13 + $0x74] sm:$0xf]
      %v4868 = vld [vmem:[%s13 + $0x78] sm:$0xf]
      %v4869 = vld [vmem:[%s13 + $0x7c] sm:$0xf]
      %v4870 = vld [vmem:[%s13 + $0x80] sm:$0xf]
      %v4871 = vld [vmem:[%s13 + $0x84] sm:$0xf]
      %v4872 = vld [vmem:[%s13 + $0x88] sm:$0xf]
      %v4873 = vld [vmem:[%s13 + $0x8c] sm:$0xf]
      %v4874 = vld [vmem:[%s13 + $0x90] sm:$0xf]
      %v4875 = vld [vmem:[%s13 + $0x94] sm:$0xf]
      %v4876 = vld [vmem:[%s13 + $0x98] sm:$0xf]
      %v4877 = vld [vmem:[%s13 + $0x9c] sm:$0xf]
      %v4878 = vld [vmem:[%s13 + $0xa0] sm:$0xf]
      %v4879 = vld [vmem:[%s13 + $0xa4] sm:$0xf]
      %v4880 = vld [vmem:[%s13 + $0xa8] sm:$0xf]
      %v4881 = vld [vmem:[%s13 + $0xac] sm:$0xf]
      %v4882 = vld [vmem:[%s13 + $0xb0] sm:$0xf]
      %v4883 = vld [vmem:[%s13 + $0xb4] sm:$0xf]
      %v4884 = vld [vmem:[%s13 + $0xb8] sm:$0xf]
      %v4885 = vld [vmem:[%s13 + $0xbc] sm:$0xf]
      %v4886 = vld [vmem:[%s14] sm:$0x1]
      %v4935 = vunpack.c.l.b16 %v4838
      %v4936 = vunpack.c.l.b16 %v4839
      %v4937 = vunpack.c.l.b16 %v4840
      %v4938 = vunpack.c.l.b16 %v4841
      %v4939 = vunpack.c.l.b16 %v4842
      %v4940 = vunpack.c.l.b16 %v4843
      %v4941 = vunpack.c.l.b16 %v4844
      %v4942 = vunpack.c.l.b16 %v4845
      %v4943 = vunpack.c.l.b16 %v4846
      %v4944 = vunpack.c.l.b16 %v4847
      %v4945 = vunpack.c.l.b16 %v4848
      %v4946 = vunpack.c.l.b16 %v4849
      %v4947 = vunpack.c.l.b16 %v4850
      %v4948 = vunpack.c.l.b16 %v4851
      %v4949 = vunpack.c.l.b16 %v4852
      %v4950 = vunpack.c.l.b16 %v4853
      %v4951 = vunpack.c.l.b16 %v4854
      %v4952 = vunpack.c.l.b16 %v4855
      %v4953 = vunpack.c.l.b16 %v4856
      %v4954 = vunpack.c.l.b16 %v4857
      %v4955 = vunpack.c.l.b16 %v4858
      %v4956 = vunpack.c.l.b16 %v4859
      %v4957 = vunpack.c.l.b16 %v4860
      %v4958 = vunpack.c.l.b16 %v4861
      %v4959 = vunpack.c.l.b16 %v4862
      %v4960 = vunpack.c.l.b16 %v4863
      %v4961 = vunpack.c.l.b16 %v4864
      %v4962 = vunpack.c.l.b16 %v4865
      %v4963 = vunpack.c.l.b16 %v4866
      %v4964 = vunpack.c.l.b16 %v4867
      %v4965 = vunpack.c.l.b16 %v4868
      %v4966 = vunpack.c.l.b16 %v4869
      %v4967 = vunpack.c.l.b16 %v4870
      %v4968 = vunpack.c.l.b16 %v4871
      %v4969 = vunpack.c.l.b16 %v4872
      %v4970 = vunpack.c.l.b16 %v4873
      %v4971 = vunpack.c.l.b16 %v4874
      %v4972 = vunpack.c.l.b16 %v4875
      %v4973 = vunpack.c.l.b16 %v4876
      %v4974 = vunpack.c.l.b16 %v4877
      %v4975 = vunpack.c.l.b16 %v4878
      %v4976 = vunpack.c.l.b16 %v4879
      %v4977 = vunpack.c.l.b16 %v4880
      %v4978 = vunpack.c.l.b16 %v4881
      %v4979 = vunpack.c.l.b16 %v4882
      %v4980 = vunpack.c.l.b16 %v4883
      %v4981 = vunpack.c.l.b16 %v4884
      %v4982 = vunpack.c.l.b16 %v4885
      %v4983 = vpack.c.b16 %v4936, %v4935
      %v4984 = vpack.c.b16 %v4938, %v4937
      %v4985 = vpack.c.b16 %v4940, %v4939
      %v4986 = vpack.c.b16 %v4942, %v4941
      %v4987 = vpack.c.b16 %v4944, %v4943
      %v4988 = vpack.c.b16 %v4946, %v4945
      %v4989 = vpack.c.b16 %v4948, %v4947
      %v4990 = vpack.c.b16 %v4950, %v4949
      %v4991 = vpack.c.b16 %v4952, %v4951
      %v4992 = vpack.c.b16 %v4954, %v4953
      %v4993 = vpack.c.b16 %v4956, %v4955
      %v4994 = vpack.c.b16 %v4958, %v4957
      %v4995 = vpack.c.b16 %v4960, %v4959
      %v4996 = vpack.c.b16 %v4962, %v4961
      %v4997 = vpack.c.b16 %v4964, %v4963
      %v4998 = vpack.c.b16 %v4966, %v4965
      %v4999 = vpack.c.b16 %v4968, %v4967
      %v5000 = vpack.c.b16 %v4970, %v4969
      %v5001 = vpack.c.b16 %v4972, %v4971
      %v5002 = vpack.c.b16 %v4974, %v4973
      %v5003 = vpack.c.b16 %v4976, %v4975
      %v5004 = vpack.c.b16 %v4978, %v4977
      %v5005 = vpack.c.b16 %v4980, %v4979
      %v5006 = vpack.c.b16 %v4982, %v4981
      %5031 = vmatprep.subr.bf16.mxu0 0
      %5032 = vmatpush1.bf16.msra.mxu0 %v4990
      %5033 = vmatprep.subr.bf16.mxu0 0
      %5034 = vmatpush1.bf16.msra.mxu0 %v4989
      %5035 = vmatprep.subr.bf16.mxu0 0
      %5036 = vmatpush1.bf16.msra.mxu0 %v4988
      %5037 = vmatprep.subr.bf16.mxu0 0
      %5038 = vmatpush1.bf16.msra.mxu0 %v4987
      %5039 = vmatprep.subr.bf16.mxu0 0
      %5040 = vmatpush1.bf16.msra.mxu0 %v4986
      %5041 = vmatprep.subr.bf16.mxu0 0
      %5042 = vmatpush1.bf16.msra.mxu0 %v4985
      %5043 = vmatprep.subr.bf16.mxu0 0
      %5044 = vmatpush1.bf16.msra.mxu0 %v4984
      %5045 = vmatprep.subr.bf16.mxu0 0
      %5046 = vmatpush1.bf16.msra.mxu0 %v4983
      %5047 = vmatprep.subr.bf16.mxu0 0
      %5048 = vmatpush2.bf16.msra.mxu0 %v4998
      %5049 = vmatprep.subr.bf16.mxu0 0
      %5050 = vmatpush2.bf16.msra.mxu0 %v4997
      %5051 = vmatprep.subr.bf16.mxu0 0
      %5052 = vmatpush2.bf16.msra.mxu0 %v4996
      %5053 = vmatprep.subr.bf16.mxu0 0
      %5054 = vmatpush2.bf16.msra.mxu0 %v4995
      %5055 = vmatprep.subr.bf16.mxu0 0
      %5056 = vmatpush2.bf16.msra.mxu0 %v4994
      %5057 = vmatprep.subr.bf16.mxu0 0
      %5058 = vmatpush2.bf16.msra.mxu0 %v4993
      %5059 = vmatprep.subr.bf16.mxu0 0
      %5060 = vmatpush2.bf16.msra.mxu0 %v4992
      %5061 = vmatprep.subr.bf16.mxu0 0
      %5062 = vmatpush2.bf16.msra.mxu0 %v4991
      %5063 = vmatprep.mubr.bf16.mxu0 %v4489
      %5064 = vmatmul.mubr.bf16.gmra.mxu0 %v4488
      %v5065 = vpop.f32.mrf.mxu0
      %v5066 = vadd.f32 %v4886, %v5065
      %v5067 = vpop.f32.mrf.mxu0
      %v5068 = vpop.f32.mrf.mxu0
      %v5069 = vpop.f32.mrf.mxu0
      %5070 = vdwg.mxu0
      %5071 = vmatprep.subr.bf16.mxu0 0
      %5072 = vmatpush1.bf16.msra.mxu0 %v5006
      %5073 = vmatprep.subr.bf16.mxu0 0
      %5074 = vmatpush1.bf16.msra.mxu0 %v5005
      %5075 = vmatprep.subr.bf16.mxu0 0
      %5076 = vmatpush1.bf16.msra.mxu0 %v5004
      %5077 = vmatprep.subr.bf16.mxu0 0
      %5078 = vmatpush1.bf16.msra.mxu0 %v5003
      %5079 = vmatprep.subr.bf16.mxu0 0
      %5080 = vmatpush1.bf16.msra.mxu0 %v5002
      %5081 = vmatprep.subr.bf16.mxu0 0
      %5082 = vmatpush1.bf16.msra.mxu0 %v5001
      %5083 = vmatprep.subr.bf16.mxu0 0
      %5084 = vmatpush1.bf16.msra.mxu0 %v5000
      %5085 = vmatprep.subr.bf16.mxu0 0
      %5086 = vmatpush1.bf16.msra.mxu0 %v4999
      %5087 = vmatprep.subr.bf16.mxu0 0
      %5088 = vmatpush2.bf16.msra.mxu0 0
      %5089 = vmatprep.subr.bf16.mxu0 0
      %5090 = vmatpush2.bf16.msra.mxu0 0
      %5091 = vmatprep.subr.bf16.mxu0 0
      %5092 = vmatpush2.bf16.msra.mxu0 0
      %5093 = vmatprep.subr.bf16.mxu0 0
      %5094 = vmatpush2.bf16.msra.mxu0 0
      %5095 = vmatprep.subr.bf16.mxu0 0
      %5096 = vmatpush2.bf16.msra.mxu0 0
      %5097 = vmatprep.subr.bf16.mxu0 0
      %5098 = vmatpush2.bf16.msra.mxu0 0
      %5099 = vmatprep.subr.bf16.mxu0 0
      %5100 = vmatpush2.bf16.msra.mxu0 0
      %5101 = vmatprep.subr.bf16.mxu0 0
      %5102 = vmatpush2.bf16.msra.mxu0 0
      %5103 = vmatprep.mubr.bf16.mxu0 0
      %5104 = vmatmul.mubr.bf16.gmra.mxu0 %v4490
      %v5105 = vpop.f32.mrf.mxu0
      %v5106 = vadd.f32 %v5066, %v5105
      %v5107 = vpop.f32.mrf.mxu0
      %v5108 = vpop.f32.mrf.mxu0
      %v5109 = vpop.f32.mrf.mxu0
      %5110 = vdwg.mxu0
      %vm5111 = vcmask 40960
      %v5112 = vsel %vm5111, %v5106, -inf
      %5113 = vmax.xlane.f32.xlu0 %v5112
      %v5114 = vpop.xlane.xlu0 %5113
      %v5115 = vsub.f32 %v5106, %v5114
      %v5116 = vmul.f32 %v5115, 1.442695
      %v5117 = vpow.pop %v5116
      %v5118 = vsel %vm5111, %v5117, 0.0
      %5119 = vadd.xlane.f32.xlu0 %v5118
      %v5120 = vpop.xlane.xlu0 %5119
      %v5121 = vrcp.pop %v5120
      %v5122 = vmul.f32 %v5117, %v5121
      %v5123 = vld [vmem:[%s19] sm:$0xf]
      %v5124 = vld [vmem:[%s19 + $0x4] sm:$0xf]
      %v5125 = vld [vmem:[%s19 + $0x8] sm:$0xf]
      %v5126 = vld [vmem:[%s19 + $0xc] sm:$0xf]
      %v5127 = vld [vmem:[%s19 + $0x10] sm:$0xf]
      %v5128 = vld [vmem:[%s19 + $0x14] sm:$0xf]
      %v5129 = vld [vmem:[%s19 + $0x18] sm:$0xf]
      %v5130 = vld [vmem:[%s19 + $0x1c] sm:$0xf]
      %v5131 = vld [vmem:[%s19 + $0x20] sm:$0xf]
      %v5132 = vld [vmem:[%s19 + $0x24] sm:$0xf]
      %v5133 = vld [vmem:[%s19 + $0x28] sm:$0xf]
      %v5134 = vld [vmem:[%s19 + $0x2c] sm:$0xf]
      %v5135 = vld [vmem:[%s19 + $0x30] sm:$0xf]
      %v5136 = vld [vmem:[%s19 + $0x34] sm:$0xf]
      %v5137 = vld [vmem:[%s19 + $0x38] sm:$0xf]
      %v5138 = vld [vmem:[%s19 + $0x3c] sm:$0xf]
      %v5139 = vld [vmem:[%s19 + $0x40] sm:$0xf]
      %v5140 = vld [vmem:[%s19 + $0x44] sm:$0xf]
      %v5141 = vld [vmem:[%s19 + $0x48] sm:$0xf]
      %v5142 = vld [vmem:[%s19 + $0x4c] sm:$0xf]
      %v5143 = vld [vmem:[%s19 + $0x50] sm:$0xf]
      %v5144 = vld [vmem:[%s19 + $0x54] sm:$0xf]
      %v5145 = vld [vmem:[%s19 + $0x58] sm:$0xf]
      %v5146 = vld [vmem:[%s19 + $0x5c] sm:$0xf]
      %v5147 = vld [vmem:[%s19 + $0x60] sm:$0xf]
      %v5148 = vld [vmem:[%s19 + $0x64] sm:$0xf]
      %v5149 = vld [vmem:[%s19 + $0x68] sm:$0xf]
      %v5150 = vld [vmem:[%s19 + $0x6c] sm:$0xf]
      %v5151 = vld [vmem:[%s19 + $0x70] sm:$0xf]
      %v5152 = vld [vmem:[%s19 + $0x74] sm:$0xf]
      %v5153 = vld [vmem:[%s19 + $0x78] sm:$0xf]
      %v5154 = vld [vmem:[%s19 + $0x7c] sm:$0xf]
      %v5155 = vld [vmem:[%s19 + $0x80] sm:$0xf]
      %v5156 = vld [vmem:[%s19 + $0x84] sm:$0xf]
      %v5157 = vld [vmem:[%s19 + $0x88] sm:$0xf]
      %v5158 = vld [vmem:[%s19 + $0x8c] sm:$0xf]
      %v5159 = vld [vmem:[%s19 + $0x90] sm:$0xf]
      %v5160 = vld [vmem:[%s19 + $0x94] sm:$0xf]
      %v5161 = vld [vmem:[%s19 + $0x98] sm:$0xf]
      %v5162 = vld [vmem:[%s19 + $0x9c] sm:$0xf]
      %v5163 = vld [vmem:[%s19 + $0xa0] sm:$0xf]
      %v5164 = vld [vmem:[%s19 + $0xa4] sm:$0xf]
      %v5165 = vld [vmem:[%s19 + $0xa8] sm:$0xf]
      %v5166 = vld [vmem:[%s19 + $0xac] sm:$0xf]
      %v5167 = vld [vmem:[%s19 + $0xb0] sm:$0xf]
      %v5168 = vld [vmem:[%s19 + $0xb4] sm:$0xf]
      %v5169 = vld [vmem:[%s19 + $0xb8] sm:$0xf]
      %v5170 = vld [vmem:[%s19 + $0xbc] sm:$0xf]
      %v5171 = vld [vmem:[#allocation2] sm:$0x1]
      %v5220 = vunpack.c.l.b16 %v5123
      %v5221 = vunpack.c.l.b16 %v5124
      %v5222 = vunpack.c.l.b16 %v5125
      %v5223 = vunpack.c.l.b16 %v5126
      %v5224 = vunpack.c.l.b16 %v5127
      %v5225 = vunpack.c.l.b16 %v5128
      %v5226 = vunpack.c.l.b16 %v5129
      %v5227 = vunpack.c.l.b16 %v5130
      %v5228 = vunpack.c.l.b16 %v5131
      %v5229 = vunpack.c.l.b16 %v5132
      %v5230 = vunpack.c.l.b16 %v5133
      %v5231 = vunpack.c.l.b16 %v5134
      %v5232 = vunpack.c.l.b16 %v5135
      %v5233 = vunpack.c.l.b16 %v5136
      %v5234 = vunpack.c.l.b16 %v5137
      %v5235 = vunpack.c.l.b16 %v5138
      %v5236 = vunpack.c.l.b16 %v5139
      %v5237 = vunpack.c.l.b16 %v5140
      %v5238 = vunpack.c.l.b16 %v5141
      %v5239 = vunpack.c.l.b16 %v5142
      %v5240 = vunpack.c.l.b16 %v5143
      %v5241 = vunpack.c.l.b16 %v5144
      %v5242 = vunpack.c.l.b16 %v5145
      %v5243 = vunpack.c.l.b16 %v5146
      %v5244 = vunpack.c.l.b16 %v5147
      %v5245 = vunpack.c.l.b16 %v5148
      %v5246 = vunpack.c.l.b16 %v5149
      %v5247 = vunpack.c.l.b16 %v5150
      %v5248 = vunpack.c.l.b16 %v5151
      %v5249 = vunpack.c.l.b16 %v5152
      %v5250 = vunpack.c.l.b16 %v5153
      %v5251 = vunpack.c.l.b16 %v5154
      %v5252 = vunpack.c.l.b16 %v5155
      %v5253 = vunpack.c.l.b16 %v5156
      %v5254 = vunpack.c.l.b16 %v5157
      %v5255 = vunpack.c.l.b16 %v5158
      %v5256 = vunpack.c.l.b16 %v5159
      %v5257 = vunpack.c.l.b16 %v5160
      %v5258 = vunpack.c.l.b16 %v5161
      %v5259 = vunpack.c.l.b16 %v5162
      %v5260 = vunpack.c.l.b16 %v5163
      %v5261 = vunpack.c.l.b16 %v5164
      %v5262 = vunpack.c.l.b16 %v5165
      %v5263 = vunpack.c.l.b16 %v5166
      %v5264 = vunpack.c.l.b16 %v5167
      %v5265 = vunpack.c.l.b16 %v5168
      %v5266 = vunpack.c.l.b16 %v5169
      %v5267 = vunpack.c.l.b16 %v5170
      %v5268 = vpack.c.b16 %v5221, %v5220
      %v5269 = vpack.c.b16 %v5223, %v5222
      %v5270 = vpack.c.b16 %v5225, %v5224
      %v5271 = vpack.c.b16 %v5227, %v5226
      %v5272 = vpack.c.b16 %v5229, %v5228
      %v5273 = vpack.c.b16 %v5231, %v5230
      %v5274 = vpack.c.b16 %v5233, %v5232
      %v5275 = vpack.c.b16 %v5235, %v5234
      %v5276 = vpack.c.b16 %v5237, %v5236
      %v5277 = vpack.c.b16 %v5239, %v5238
      %v5278 = vpack.c.b16 %v5241, %v5240
      %v5279 = vpack.c.b16 %v5243, %v5242
      %v5280 = vpack.c.b16 %v5245, %v5244
      %v5281 = vpack.c.b16 %v5247, %v5246
      %v5282 = vpack.c.b16 %v5249, %v5248
      %v5283 = vpack.c.b16 %v5251, %v5250
      %v5284 = vpack.c.b16 %v5253, %v5252
      %v5285 = vpack.c.b16 %v5255, %v5254
      %v5286 = vpack.c.b16 %v5257, %v5256
      %v5287 = vpack.c.b16 %v5259, %v5258
      %v5288 = vpack.c.b16 %v5261, %v5260
      %v5289 = vpack.c.b16 %v5263, %v5262
      %v5290 = vpack.c.b16 %v5265, %v5264
      %v5291 = vpack.c.b16 %v5267, %v5266
      %5316 = vmatprep.subr.bf16.mxu0 0
      %5317 = vmatpush1.bf16.msra.mxu0 %v5275
      %5318 = vmatprep.subr.bf16.mxu0 0
      %5319 = vmatpush1.bf16.msra.mxu0 %v5274
      %5320 = vmatprep.subr.bf16.mxu0 0
      %5321 = vmatpush1.bf16.msra.mxu0 %v5273
      %5322 = vmatprep.subr.bf16.mxu0 0
      %5323 = vmatpush1.bf16.msra.mxu0 %v5272
      %5324 = vmatprep.subr.bf16.mxu0 0
      %5325 = vmatpush1.bf16.msra.mxu0 %v5271
      %5326 = vmatprep.subr.bf16.mxu0 0
      %5327 = vmatpush1.bf16.msra.mxu0 %v5270
      %5328 = vmatprep.subr.bf16.mxu0 0
      %5329 = vmatpush1.bf16.msra.mxu0 %v5269
      %5330 = vmatprep.subr.bf16.mxu0 0
      %5331 = vmatpush1.bf16.msra.mxu0 %v5268
      %5332 = vmatprep.subr.bf16.mxu0 0
      %5333 = vmatpush2.bf16.msra.mxu0 %v5283
      %5334 = vmatprep.subr.bf16.mxu0 0
      %5335 = vmatpush2.bf16.msra.mxu0 %v5282
      %5336 = vmatprep.subr.bf16.mxu0 0
      %5337 = vmatpush2.bf16.msra.mxu0 %v5281
      %5338 = vmatprep.subr.bf16.mxu0 0
      %5339 = vmatpush2.bf16.msra.mxu0 %v5280
      %5340 = vmatprep.subr.bf16.mxu0 0
      %5341 = vmatpush2.bf16.msra.mxu0 %v5279
      %5342 = vmatprep.subr.bf16.mxu0 0
      %5343 = vmatpush2.bf16.msra.mxu0 %v5278
      %5344 = vmatprep.subr.bf16.mxu0 0
      %5345 = vmatpush2.bf16.msra.mxu0 %v5277
      %5346 = vmatprep.subr.bf16.mxu0 0
      %5347 = vmatpush2.bf16.msra.mxu0 %v5276
      %5348 = vmatprep.mubr.bf16.mxu0 %v4836
      %5349 = vmatmul.mubr.bf16.gmra.mxu0 %v4835
      %v5350 = vpop.f32.mrf.mxu0
      %v5351 = vadd.f32 %v5171, %v5350
      %v5352 = vpop.f32.mrf.mxu0
      %v5353 = vpop.f32.mrf.mxu0
      %v5354 = vpop.f32.mrf.mxu0
      %5355 = vdwg.mxu0
      %5356 = vmatprep.subr.bf16.mxu0 0
      %5357 = vmatpush1.bf16.msra.mxu0 %v5291
      %5358 = vmatprep.subr.bf16.mxu0 0
      %5359 = vmatpush1.bf16.msra.mxu0 %v5290
      %5360 = vmatprep.subr.bf16.mxu0 0
      %5361 = vmatpush1.bf16.msra.mxu0 %v5289
      %5362 = vmatprep.subr.bf16.mxu0 0
      %5363 = vmatpush1.bf16.msra.mxu0 %v5288
      %5364 = vmatprep.subr.bf16.mxu0 0
      %5365 = vmatpush1.bf16.msra.mxu0 %v5287
      %5366 = vmatprep.subr.bf16.mxu0 0
      %5367 = vmatpush1.bf16.msra.mxu0 %v5286
      %5368 = vmatprep.subr.bf16.mxu0 0
      %5369 = vmatpush1.bf16.msra.mxu0 %v5285
      %5370 = vmatprep.subr.bf16.mxu0 0
      %5371 = vmatpush1.bf16.msra.mxu0 %v5284
      %5372 = vmatprep.subr.bf16.mxu0 0
      %5373 = vmatpush2.bf16.msra.mxu0 0
      %5374 = vmatprep.subr.bf16.mxu0 0
      %5375 = vmatpush2.bf16.msra.mxu0 0
      %5376 = vmatprep.subr.bf16.mxu0 0
      %5377 = vmatpush2.bf16.msra.mxu0 0
      %5378 = vmatprep.subr.bf16.mxu0 0
      %5379 = vmatpush2.bf16.msra.mxu0 0
      %5380 = vmatprep.subr.bf16.mxu0 0
      %5381 = vmatpush2.bf16.msra.mxu0 0
      %5382 = vmatprep.subr.bf16.mxu0 0
      %5383 = vmatpush2.bf16.msra.mxu0 0
      %5384 = vmatprep.subr.bf16.mxu0 0
      %5385 = vmatpush2.bf16.msra.mxu0 0
      %5386 = vmatprep.subr.bf16.mxu0 0
      %5387 = vmatpush2.bf16.msra.mxu0 0
      %5388 = vmatprep.mubr.bf16.mxu0 0
      %5389 = vmatmul.mubr.bf16.gmra.mxu0 %v4837
      %v5390 = vpop.f32.mrf.mxu0
      %v5391 = vadd.f32 %v5351, %v5390
      %v5392 = vpop.f32.mrf.mxu0
      %v5393 = vpop.f32.mrf.mxu0
      %v5394 = vpop.f32.mrf.mxu0
      %5395 = vdwg.mxu0
      %5397 = vrot.lane.b32.xlu0 %v5391, 6
      %v5398 = vpop.permute.xlu0 %5397
      %vm5400 = vcmask 48128
      %v5401 = vsel %vm5400, %v5122, %v5398
      %vm5402 = vcmask 56320
      %v5403 = vsel %vm5402, %v5401, 0.0
      %5404 = vst [vmem:[%s654] sm:$0x1] %v5403
      %p5405 = scmp.lt.s32.totalorder %s34, 1
      %s5406 = scalar_select %p5405, %s34, 1
      %s5407 = scalar_lea.vmem %s21, %s5406
      // Predicated region
      $region105: #{ppo_forward.1} parent=103 // pred_check
        %p5408 = pneg %p498
      $region106: #{ppo_forward.1} parent=103 // pred_check_branch
        %5410 = sbr.rel (%p5408) target = $region108
      $region107: #{ppo_forward.1} parent=103 // pred_region
        _
      $region108: #{ppo_forward.1} parent=103 // pred_fallthru
        _
    $region104: #{ppo_forward.1} parent=5 // pred_fallthru
      _
    %p5411 = scmp.le.s32.totalorder 2, %s29
    // Predicated region
    $region109: #{ppo_forward.1} parent=5 // pred_check
      %p5412 = pneg %p5411
    $region110: #{ppo_forward.1} parent=5 // pred_check_branch
      %5414 = sbr.rel (%p5412) target = $region112
    $region111: #{ppo_forward.1} parent=5 // pred_region
      %s5415 = ssub.s32 %s29, 2
      // Predicated region
      $region113: #{ppo_forward.1} parent=111 // pred_check
        %p5416 = pneg %p504
      $region114: #{ppo_forward.1} parent=111 // pred_check_branch
        %5418 = sbr.rel (%p5416) target = $region116
      $region115: #{ppo_forward.1} parent=111 // pred_region
        %p5419 = scmp.lt.s32.totalorder %s35, 1
        %s5420 = scalar_select %p5419, %s35, 1
        %s5421 = scalar_lea.vmem %s21, %s5420
      $region116: #{ppo_forward.1} parent=111 // pred_fallthru
        _
    $region112: #{ppo_forward.1} parent=5 // pred_fallthru
      _
  $region6: #{ppo_forward.1} parent=0 // loop_footer
    %s33 = sadd.s32 1, %s29
  $region7: #{ppo_forward.1} parent=0 // loop_footer_branch
    %28 = sbr.rel target = $region3
  $region8: #{ppo_forward.1} parent=0 // loop_exit
    _

</llo_original>
